<compile_context>
chip_gen: v7x
topology: tpu7x:2x2x1
jax: 0.10.0
libtpu: 0.0.40
codegen_flags: <defaults>
</compile_context>

<pallas_src>
import numpy as np
import jax
import jax.numpy as jnp
from jax.experimental import pallas as pl
from jax.experimental.pallas import tpu as pltpu

N_QUBITS = 10
N_LAYERS = 3
N_STATES = 1 << N_QUBITS  # 1024


# ----------------------------------------------------------------------------------
# Host-side (parameter setup, NOT per-forward work): build the StronglyEntanglingLayers
# unitary and fold the embedding phase + PauliZ(0) observable into one real matrix.
# ----------------------------------------------------------------------------------
def _rot_matrix(phi, theta, omega):
    # qml.Rot(phi, theta, omega) = RZ(omega) RY(theta) RZ(phi)
    c = np.cos(theta / 2.0)
    s = np.sin(theta / 2.0)
    return np.array(
        [
            [np.exp(-0.5j * (phi + omega)) * c, -np.exp(0.5j * (phi - omega)) * s],
            [np.exp(-0.5j * (phi - omega)) * s, np.exp(0.5j * (phi + omega)) * c],
        ],
        dtype=np.complex128,
    )


def _apply_single_qubit_gate(U, gate, wire, n):
    # Left-multiply U by (I ⊗ gate ⊗ I) acting on `wire` (wire 0 = MSB).
    N = 1 << n
    U = U.reshape(1 << wire, 2, -1)
    U = np.einsum("ab,ibj->iaj", gate, U)
    return U.reshape(N, N)


def _apply_cnot(U, control, target, n):
    # Left-multiply U by CNOT(control, target) (an involutive permutation).
    N = 1 << n
    k = np.arange(N)
    cbit = (k >> (n - 1 - control)) & 1
    perm = np.where(cbit == 1, k ^ (1 << (n - 1 - target)), k)
    return U[perm, :]


def strongly_entangling_unitary(weights, n):
    """weights: (n_layers, n, 3) float64 -> full (2^n, 2^n) complex128 unitary."""
    N = 1 << n
    U = np.eye(N, dtype=np.complex128)
    n_layers = weights.shape[0]
    for l in range(n_layers):
        for q in range(n):
            g = _rot_matrix(weights[l, q, 0], weights[l, q, 1], weights[l, q, 2])
            U = _apply_single_qubit_gate(U, g, q, n)
        r = (l % (n - 1)) + 1  # PennyLane default ranges
        for i in range(n):
            t = (i + r) % n
            if t != i:
                U = _apply_cnot(U, i, t, n)
    return U


def build_observable_matrix(weights_np):
    """Fold AngleEmbedding phases + circuit unitary + PauliZ(0) into one real
    symmetric (2^n, 2^n) float32 matrix M such that  <Z0> = mag^T M mag,
    where mag[k] = prod_q (cos(x_q/2) if bit_q(k)==0 else sin(x_q/2))."""
    U = strongly_entangling_unitary(weights_np.astype(np.float64), N_QUBITS)
    k = np.arange(N_STATES)
    pop = np.array([bin(int(kk)).count("1") for kk in k], dtype=np.int64)
    D = (-1j) ** pop                                   # AngleEmbedding (-i)^popcount phase
    z = 1.0 - 2.0 * ((k >> (N_QUBITS - 1)) & 1)        # Z on wire 0 (MSB)
    UD = U * D[None, :]                                # U @ diag(D)
    M = UD.conj().T @ (z[:, None] * UD)                # Hermitian observable
    # mag is real -> the anti-symmetric Im(M) contributes nothing to the quadratic form.
    return U, np.ascontiguousarray(M.real).astype(np.float32)


# ----------------------------------------------------------------------------------
# Pallas kernel: real product-state prep + one MXU matmul quadratic form + sigmoid.
# ----------------------------------------------------------------------------------
def _fraud_kernel(x_ref, m_ref, o_ref):
    NQ = N_QUBITS
    N = N_STATES

    # Basis-state index row vector (1, N); wire 0 is the MSB.
    k = jax.lax.broadcasted_iota(jnp.int32, (1, N), 1)

    # AngleEmbedding magnitude (phase has been folded into M on the host):
    #   mag[b, k] = prod_q (cos(x_q/2) if bit_q(k)==0 else sin(x_q/2))
    xh = x_ref[...] * 0.5                        # (TB, NQ)
    c_all = jnp.cos(xh)
    s_all = jnp.sin(xh)

    mag = None
    for q in range(NQ):                          # static unroll over 10 qubits
        bit = (k >> (NQ - 1 - q)) & 1            # (1, N)
        fac = jnp.where(bit == 1, s_all[:, q:q + 1], c_all[:, q:q + 1])  # (TB, N)
        mag = fac if mag is None else mag * fac

    # <Z0> = mag^T M mag  (single f32 matmul on the MXU, f32 accumulation).
    y = jnp.dot(mag, m_ref[...], preferred_element_type=jnp.float32)    # (TB, N)
    expz = jnp.sum(mag * y, axis=1, keepdims=True)                       # (TB, 1)

    # torch.sigmoid
    o_ref[...] = 1.0 / (1.0 + jnp.exp(-expz))


def quantum_fraud_detector(x, m_r, *, tb=None):
    """x: (B, n_qubits) f32 rotation angles;  m_r: (2^n, 2^n) f32 folded observable."""
    x = x.astype(jnp.float32)
    B = x.shape[0]

    # Batch tile: MXU-friendly 512 rows for large batches; otherwise round the (tiny)
    # batch up to a multiple of 8 sublanes so block shapes stay TPU-legal.
    if tb is None:
        tb = 512 if B >= 512 else max(8, pl.cdiv(B, 8) * 8)
    Bp = pl.cdiv(B, tb) * tb
    if Bp != B:
        x = jnp.pad(x, ((0, Bp - B), (0, 0)))
    grid = (Bp // tb,)

    out = pl.pallas_call(
        _fraud_kernel,
        out_shape=jax.ShapeDtypeStruct((Bp, 1), jnp.float32),
        grid_spec=pltpu.PrefetchScalarGridSpec(
            num_scalar_prefetch=0,
            grid=grid,
            in_specs=[
                pl.BlockSpec((tb, N_QUBITS), lambda i: (i, 0)),
                # Constant index_map: the 4 MiB observable stays VMEM-resident
                # (no per-step re-DMA) across the whole batch grid.
                pl.BlockSpec((N_STATES, N_STATES), lambda i: (0, 0)),
            ],
            out_specs=pl.BlockSpec((tb, 1), lambda i: (i, 0)),
        ),
        compiler_params=pltpu.CompilerParams(
            dimension_semantics=("parallel",),        # megacore-shard the batch axis
            vmem_limit_bytes=40 * 1024 * 1024,        # fits v7x's 64 MiB physical VMEM
        ),
        cost_estimate=pl.CostEstimate(
            flops=2 * Bp * N_STATES * N_STATES + 25 * Bp * N_STATES,
            transcendentals=2 * Bp * N_QUBITS + Bp,
            bytes_accessed=4 * (Bp * N_QUBITS + N_STATES * N_STATES + Bp),
        ),
    )(x, m_r)
    return out[:B, 0]


# ----------------------------------------------------------------------------------
# Pure NumPy reference (float64) of the same circuit, for a correctness check.
# ----------------------------------------------------------------------------------
def _reference(x_np, U):
    outs = []
    N = 1 << N_QUBITS
    z = np.array([1.0 if ((kk >> (N_QUBITS - 1)) & 1) == 0 else -1.0 for kk in range(N)])
    for b in range(x_np.shape[0]):
        psi = np.array([1.0 + 0j])
        for i in range(N_QUBITS):
            a = x_np[b, i] / 2.0
            psi = np.kron(psi, np.array([np.cos(a), -1j * np.sin(a)]))
        phi = U @ psi
        e = float(np.sum(np.abs(phi) ** 2 * z))
        outs.append(1.0 / (1.0 + np.exp(-e)))
    return np.array(outs)


if __name__ == "__main__":
    key = jax.random.PRNGKey(0)
    kx, kw = jax.random.split(key)

    B = 2
    # Deterministic synthetic inputs / parameters (TorchLayer default init: U(0, 2*pi)).
    x = jax.random.uniform(kx, (B, N_QUBITS), jnp.float32, minval=-np.pi, maxval=np.pi)
    weights = jax.random.uniform(kw, (N_LAYERS, N_QUBITS, 3), jnp.float32,
                                 minval=0.0, maxval=2.0 * np.pi)

    # Host-side parameter setup: fold weights + embedding phase + Z0 into one matrix.
    U, m_r_np = build_observable_matrix(np.asarray(weights))
    m_r = jnp.asarray(m_r_np)

    out = quantum_fraud_detector(x, m_r)
    out = jax.block_until_ready(out)

    ref = _reference(np.asarray(x, dtype=np.float64), U)
    assert out.shape == (B,)
    assert np.allclose(np.asarray(out), ref, atol=1e-3), (np.asarray(out), ref)

    print("KERNEL_OK")
</pallas_src>

<mosaic_0001>
module attributes {stable_mosaic.version = 11 : i64} {
  func.func @_fraud_kernel(%arg0: i32, %arg1: memref<8x10xf32, #tpu.memory_space<vmem>>, %arg2: memref<1024x1024xf32, #tpu.memory_space<vmem>>, %arg3: memref<8x1xf32, #tpu.memory_space<vmem>>) attributes {dimension_semantics = [#tpu.dimension_semantics<parallel>], iteration_bounds = array<i64: 1>, scalar_prefetch = 0 : i64, scratch_operands = 0 : i64, tpu.core_type = #tpu.core_type<tc>, window_params = [{transform_indices = @transform_0, window_bounds = array<i64: 8, 10>}, {pipeline_mode = #tpu.pipeline_mode<synchronous>, transform_indices = @transform_1, window_bounds = array<i64: 1024, 1024>}, {transform_indices = @transform_2, window_bounds = array<i64: 8, 1>}]} {
    %0 = tpu.iota {dimensions = array<i32: 1>} : vector<1x1024xi32>
    %c0 = arith.constant 0 : index
    %c0_0 = arith.constant 0 : index
    %1 = vector.load %arg1[%c0, %c0_0] : memref<8x10xf32, #tpu.memory_space<vmem>>, vector<8x10xf32>
    %cst = arith.constant 5.000000e-01 : f32
    %2 = vector.broadcast %cst : f32 to vector<8x10xf32>
    %3 = arith.mulf %1, %2 : vector<8x10xf32>
    %4 = math.cos %3 : vector<8x10xf32>
    %5 = math.sin %3 : vector<8x10xf32>
    %c9_i32 = arith.constant 9 : i32
    %6 = vector.broadcast %c9_i32 : i32 to vector<1x1024xi32>
    %7 = arith.shrsi %0, %6 : vector<1x1024xi32>
    %c1_i32 = arith.constant 1 : i32
    %8 = vector.broadcast %c1_i32 : i32 to vector<1x1024xi32>
    %9 = arith.andi %7, %8 : vector<1x1024xi32>
    %c1_i32_1 = arith.constant 1 : i32
    %10 = vector.broadcast %c1_i32_1 : i32 to vector<1x1024xi32>
    %11 = arith.cmpi eq, %9, %10 : vector<1x1024xi32>
    %12 = vector.extract_strided_slice %5 {offsets = [0, 0], sizes = [8, 1], strides = [1, 1]} : vector<8x10xf32> to vector<8x1xf32>
    %13 = vector.extract_strided_slice %4 {offsets = [0, 0], sizes = [8, 1], strides = [1, 1]} : vector<8x10xf32> to vector<8x1xf32>
    %14 = vector.shape_cast %11 : vector<1x1024xi1> to vector<1x1024xi1>
    %15 = vector.broadcast %14 : vector<1x1024xi1> to vector<8x1024xi1>
    %16 = vector.shape_cast %12 : vector<8x1xf32> to vector<8x1xf32>
    %17 = vector.broadcast %16 : vector<8x1xf32> to vector<8x1024xf32>
    %18 = vector.shape_cast %13 : vector<8x1xf32> to vector<8x1xf32>
    %19 = vector.broadcast %18 : vector<8x1xf32> to vector<8x1024xf32>
    %20 = arith.select %15, %17, %19 : vector<8x1024xi1>, vector<8x1024xf32>
    %c8_i32 = arith.constant 8 : i32
    %21 = vector.broadcast %c8_i32 : i32 to vector<1x1024xi32>
    %22 = arith.shrsi %0, %21 : vector<1x1024xi32>
    %c1_i32_2 = arith.constant 1 : i32
    %23 = vector.broadcast %c1_i32_2 : i32 to vector<1x1024xi32>
    %24 = arith.andi %22, %23 : vector<1x1024xi32>
    %c1_i32_3 = arith.constant 1 : i32
    %25 = vector.broadcast %c1_i32_3 : i32 to vector<1x1024xi32>
    %26 = arith.cmpi eq, %24, %25 : vector<1x1024xi32>
    %27 = vector.extract_strided_slice %5 {offsets = [0, 1], sizes = [8, 1], strides = [1, 1]} : vector<8x10xf32> to vector<8x1xf32>
    %28 = vector.extract_strided_slice %4 {offsets = [0, 1], sizes = [8, 1], strides = [1, 1]} : vector<8x10xf32> to vector<8x1xf32>
    %29 = vector.shape_cast %26 : vector<1x1024xi1> to vector<1x1024xi1>
    %30 = vector.broadcast %29 : vector<1x1024xi1> to vector<8x1024xi1>
    %31 = vector.shape_cast %27 : vector<8x1xf32> to vector<8x1xf32>
    %32 = vector.broadcast %31 : vector<8x1xf32> to vector<8x1024xf32>
    %33 = vector.shape_cast %28 : vector<8x1xf32> to vector<8x1xf32>
    %34 = vector.broadcast %33 : vector<8x1xf32> to vector<8x1024xf32>
    %35 = arith.select %30, %32, %34 : vector<8x1024xi1>, vector<8x1024xf32>
    %36 = arith.mulf %20, %35 : vector<8x1024xf32>
    %c7_i32 = arith.constant 7 : i32
    %37 = vector.broadcast %c7_i32 : i32 to vector<1x1024xi32>
    %38 = arith.shrsi %0, %37 : vector<1x1024xi32>
    %c1_i32_4 = arith.constant 1 : i32
    %39 = vector.broadcast %c1_i32_4 : i32 to vector<1x1024xi32>
    %40 = arith.andi %38, %39 : vector<1x1024xi32>
    %c1_i32_5 = arith.constant 1 : i32
    %41 = vector.broadcast %c1_i32_5 : i32 to vector<1x1024xi32>
    %42 = arith.cmpi eq, %40, %41 : vector<1x1024xi32>
    %43 = vector.extract_strided_slice %5 {offsets = [0, 2], sizes = [8, 1], strides = [1, 1]} : vector<8x10xf32> to vector<8x1xf32>
    %44 = vector.extract_strided_slice %4 {offsets = [0, 2], sizes = [8, 1], strides = [1, 1]} : vector<8x10xf32> to vector<8x1xf32>
    %45 = vector.shape_cast %42 : vector<1x1024xi1> to vector<1x1024xi1>
    %46 = vector.broadcast %45 : vector<1x1024xi1> to vector<8x1024xi1>
    %47 = vector.shape_cast %43 : vector<8x1xf32> to vector<8x1xf32>
    %48 = vector.broadcast %47 : vector<8x1xf32> to vector<8x1024xf32>
    %49 = vector.shape_cast %44 : vector<8x1xf32> to vector<8x1xf32>
    %50 = vector.broadcast %49 : vector<8x1xf32> to vector<8x1024xf32>
    %51 = arith.select %46, %48, %50 : vector<8x1024xi1>, vector<8x1024xf32>
    %52 = arith.mulf %36, %51 : vector<8x1024xf32>
    %c6_i32 = arith.constant 6 : i32
    %53 = vector.broadcast %c6_i32 : i32 to vector<1x1024xi32>
    %54 = arith.shrsi %0, %53 : vector<1x1024xi32>
    %c1_i32_6 = arith.constant 1 : i32
    %55 = vector.broadcast %c1_i32_6 : i32 to vector<1x1024xi32>
    %56 = arith.andi %54, %55 : vector<1x1024xi32>
    %c1_i32_7 = arith.constant 1 : i32
    %57 = vector.broadcast %c1_i32_7 : i32 to vector<1x1024xi32>
    %58 = arith.cmpi eq, %56, %57 : vector<1x1024xi32>
    %59 = vector.extract_strided_slice %5 {offsets = [0, 3], sizes = [8, 1], strides = [1, 1]} : vector<8x10xf32> to vector<8x1xf32>
    %60 = vector.extract_strided_slice %4 {offsets = [0, 3], sizes = [8, 1], strides = [1, 1]} : vector<8x10xf32> to vector<8x1xf32>
    %61 = vector.shape_cast %58 : vector<1x1024xi1> to vector<1x1024xi1>
    %62 = vector.broadcast %61 : vector<1x1024xi1> to vector<8x1024xi1>
    %63 = vector.shape_cast %59 : vector<8x1xf32> to vector<8x1xf32>
    %64 = vector.broadcast %63 : vector<8x1xf32> to vector<8x1024xf32>
    %65 = vector.shape_cast %60 : vector<8x1xf32> to vector<8x1xf32>
    %66 = vector.broadcast %65 : vector<8x1xf32> to vector<8x1024xf32>
    %67 = arith.select %62, %64, %66 : vector<8x1024xi1>, vector<8x1024xf32>
    %68 = arith.mulf %52, %67 : vector<8x1024xf32>
    %c5_i32 = arith.constant 5 : i32
    %69 = vector.broadcast %c5_i32 : i32 to vector<1x1024xi32>
    %70 = arith.shrsi %0, %69 : vector<1x1024xi32>
    %c1_i32_8 = arith.constant 1 : i32
    %71 = vector.broadcast %c1_i32_8 : i32 to vector<1x1024xi32>
    %72 = arith.andi %70, %71 : vector<1x1024xi32>
    %c1_i32_9 = arith.constant 1 : i32
    %73 = vector.broadcast %c1_i32_9 : i32 to vector<1x1024xi32>
    %74 = arith.cmpi eq, %72, %73 : vector<1x1024xi32>
    %75 = vector.extract_strided_slice %5 {offsets = [0, 4], sizes = [8, 1], strides = [1, 1]} : vector<8x10xf32> to vector<8x1xf32>
    %76 = vector.extract_strided_slice %4 {offsets = [0, 4], sizes = [8, 1], strides = [1, 1]} : vector<8x10xf32> to vector<8x1xf32>
    %77 = vector.shape_cast %74 : vector<1x1024xi1> to vector<1x1024xi1>
    %78 = vector.broadcast %77 : vector<1x1024xi1> to vector<8x1024xi1>
    %79 = vector.shape_cast %75 : vector<8x1xf32> to vector<8x1xf32>
    %80 = vector.broadcast %79 : vector<8x1xf32> to vector<8x1024xf32>
    %81 = vector.shape_cast %76 : vector<8x1xf32> to vector<8x1xf32>
    %82 = vector.broadcast %81 : vector<8x1xf32> to vector<8x1024xf32>
    %83 = arith.select %78, %80, %82 : vector<8x1024xi1>, vector<8x1024xf32>
    %84 = arith.mulf %68, %83 : vector<8x1024xf32>
    %c4_i32 = arith.constant 4 : i32
    %85 = vector.broadcast %c4_i32 : i32 to vector<1x1024xi32>
    %86 = arith.shrsi %0, %85 : vector<1x1024xi32>
    %c1_i32_10 = arith.constant 1 : i32
    %87 = vector.broadcast %c1_i32_10 : i32 to vector<1x1024xi32>
    %88 = arith.andi %86, %87 : vector<1x1024xi32>
    %c1_i32_11 = arith.constant 1 : i32
    %89 = vector.broadcast %c1_i32_11 : i32 to vector<1x1024xi32>
    %90 = arith.cmpi eq, %88, %89 : vector<1x1024xi32>
    %91 = vector.extract_strided_slice %5 {offsets = [0, 5], sizes = [8, 1], strides = [1, 1]} : vector<8x10xf32> to vector<8x1xf32>
    %92 = vector.extract_strided_slice %4 {offsets = [0, 5], sizes = [8, 1], strides = [1, 1]} : vector<8x10xf32> to vector<8x1xf32>
    %93 = vector.shape_cast %90 : vector<1x1024xi1> to vector<1x1024xi1>
    %94 = vector.broadcast %93 : vector<1x1024xi1> to vector<8x1024xi1>
    %95 = vector.shape_cast %91 : vector<8x1xf32> to vector<8x1xf32>
    %96 = vector.broadcast %95 : vector<8x1xf32> to vector<8x1024xf32>
    %97 = vector.shape_cast %92 : vector<8x1xf32> to vector<8x1xf32>
    %98 = vector.broadcast %97 : vector<8x1xf32> to vector<8x1024xf32>
    %99 = arith.select %94, %96, %98 : vector<8x1024xi1>, vector<8x1024xf32>
    %100 = arith.mulf %84, %99 : vector<8x1024xf32>
    %c3_i32 = arith.constant 3 : i32
    %101 = vector.broadcast %c3_i32 : i32 to vector<1x1024xi32>
    %102 = arith.shrsi %0, %101 : vector<1x1024xi32>
    %c1_i32_12 = arith.constant 1 : i32
    %103 = vector.broadcast %c1_i32_12 : i32 to vector<1x1024xi32>
    %104 = arith.andi %102, %103 : vector<1x1024xi32>
    %c1_i32_13 = arith.constant 1 : i32
    %105 = vector.broadcast %c1_i32_13 : i32 to vector<1x1024xi32>
    %106 = arith.cmpi eq, %104, %105 : vector<1x1024xi32>
    %107 = vector.extract_strided_slice %5 {offsets = [0, 6], sizes = [8, 1], strides = [1, 1]} : vector<8x10xf32> to vector<8x1xf32>
    %108 = vector.extract_strided_slice %4 {offsets = [0, 6], sizes = [8, 1], strides = [1, 1]} : vector<8x10xf32> to vector<8x1xf32>
    %109 = vector.shape_cast %106 : vector<1x1024xi1> to vector<1x1024xi1>
    %110 = vector.broadcast %109 : vector<1x1024xi1> to vector<8x1024xi1>
    %111 = vector.shape_cast %107 : vector<8x1xf32> to vector<8x1xf32>
    %112 = vector.broadcast %111 : vector<8x1xf32> to vector<8x1024xf32>
    %113 = vector.shape_cast %108 : vector<8x1xf32> to vector<8x1xf32>
    %114 = vector.broadcast %113 : vector<8x1xf32> to vector<8x1024xf32>
    %115 = arith.select %110, %112, %114 : vector<8x1024xi1>, vector<8x1024xf32>
    %116 = arith.mulf %100, %115 : vector<8x1024xf32>
    %c2_i32 = arith.constant 2 : i32
    %117 = vector.broadcast %c2_i32 : i32 to vector<1x1024xi32>
    %118 = arith.shrsi %0, %117 : vector<1x1024xi32>
    %c1_i32_14 = arith.constant 1 : i32
    %119 = vector.broadcast %c1_i32_14 : i32 to vector<1x1024xi32>
    %120 = arith.andi %118, %119 : vector<1x1024xi32>
    %c1_i32_15 = arith.constant 1 : i32
    %121 = vector.broadcast %c1_i32_15 : i32 to vector<1x1024xi32>
    %122 = arith.cmpi eq, %120, %121 : vector<1x1024xi32>
    %123 = vector.extract_strided_slice %5 {offsets = [0, 7], sizes = [8, 1], strides = [1, 1]} : vector<8x10xf32> to vector<8x1xf32>
    %124 = vector.extract_strided_slice %4 {offsets = [0, 7], sizes = [8, 1], strides = [1, 1]} : vector<8x10xf32> to vector<8x1xf32>
    %125 = vector.shape_cast %122 : vector<1x1024xi1> to vector<1x1024xi1>
    %126 = vector.broadcast %125 : vector<1x1024xi1> to vector<8x1024xi1>
    %127 = vector.shape_cast %123 : vector<8x1xf32> to vector<8x1xf32>
    %128 = vector.broadcast %127 : vector<8x1xf32> to vector<8x1024xf32>
    %129 = vector.shape_cast %124 : vector<8x1xf32> to vector<8x1xf32>
    %130 = vector.broadcast %129 : vector<8x1xf32> to vector<8x1024xf32>
    %131 = arith.select %126, %128, %130 : vector<8x1024xi1>, vector<8x1024xf32>
    %132 = arith.mulf %116, %131 : vector<8x1024xf32>
    %c1_i32_16 = arith.constant 1 : i32
    %133 = vector.broadcast %c1_i32_16 : i32 to vector<1x1024xi32>
    %134 = arith.shrsi %0, %133 : vector<1x1024xi32>
    %c1_i32_17 = arith.constant 1 : i32
    %135 = vector.broadcast %c1_i32_17 : i32 to vector<1x1024xi32>
    %136 = arith.andi %134, %135 : vector<1x1024xi32>
    %c1_i32_18 = arith.constant 1 : i32
    %137 = vector.broadcast %c1_i32_18 : i32 to vector<1x1024xi32>
    %138 = arith.cmpi eq, %136, %137 : vector<1x1024xi32>
    %139 = vector.extract_strided_slice %5 {offsets = [0, 8], sizes = [8, 1], strides = [1, 1]} : vector<8x10xf32> to vector<8x1xf32>
    %140 = vector.extract_strided_slice %4 {offsets = [0, 8], sizes = [8, 1], strides = [1, 1]} : vector<8x10xf32> to vector<8x1xf32>
    %141 = vector.shape_cast %138 : vector<1x1024xi1> to vector<1x1024xi1>
    %142 = vector.broadcast %141 : vector<1x1024xi1> to vector<8x1024xi1>
    %143 = vector.shape_cast %139 : vector<8x1xf32> to vector<8x1xf32>
    %144 = vector.broadcast %143 : vector<8x1xf32> to vector<8x1024xf32>
    %145 = vector.shape_cast %140 : vector<8x1xf32> to vector<8x1xf32>
    %146 = vector.broadcast %145 : vector<8x1xf32> to vector<8x1024xf32>
    %147 = arith.select %142, %144, %146 : vector<8x1024xi1>, vector<8x1024xf32>
    %148 = arith.mulf %132, %147 : vector<8x1024xf32>
    %c0_i32 = arith.constant 0 : i32
    %149 = vector.broadcast %c0_i32 : i32 to vector<1x1024xi32>
    %150 = arith.shrsi %0, %149 : vector<1x1024xi32>
    %c1_i32_19 = arith.constant 1 : i32
    %151 = vector.broadcast %c1_i32_19 : i32 to vector<1x1024xi32>
    %152 = arith.andi %150, %151 : vector<1x1024xi32>
    %c1_i32_20 = arith.constant 1 : i32
    %153 = vector.broadcast %c1_i32_20 : i32 to vector<1x1024xi32>
    %154 = arith.cmpi eq, %152, %153 : vector<1x1024xi32>
    %155 = vector.extract_strided_slice %5 {offsets = [0, 9], sizes = [8, 1], strides = [1, 1]} : vector<8x10xf32> to vector<8x1xf32>
    %156 = vector.extract_strided_slice %4 {offsets = [0, 9], sizes = [8, 1], strides = [1, 1]} : vector<8x10xf32> to vector<8x1xf32>
    %157 = vector.shape_cast %154 : vector<1x1024xi1> to vector<1x1024xi1>
    %158 = vector.broadcast %157 : vector<1x1024xi1> to vector<8x1024xi1>
    %159 = vector.shape_cast %155 : vector<8x1xf32> to vector<8x1xf32>
    %160 = vector.broadcast %159 : vector<8x1xf32> to vector<8x1024xf32>
    %161 = vector.shape_cast %156 : vector<8x1xf32> to vector<8x1xf32>
    %162 = vector.broadcast %161 : vector<8x1xf32> to vector<8x1024xf32>
    %163 = arith.select %158, %160, %162 : vector<8x1024xi1>, vector<8x1024xf32>
    %164 = arith.mulf %148, %163 : vector<8x1024xf32>
    %c0_21 = arith.constant 0 : index
    %c0_22 = arith.constant 0 : index
    %165 = vector.load %arg2[%c0_21, %c0_22] : memref<1024x1024xf32, #tpu.memory_space<vmem>>, vector<1024x1024xf32>
    %cst_23 = arith.constant dense<0.000000e+00> : vector<8x1024xf32>
    %166 = tpu.matmul %164, %165, %cst_23 {dimension_numbers = #tpu.dot_dimension_numbers<[1], [0], [0], [1], [0, 0, 1, 1], [], []>} : vector<8x1024xf32>, vector<1024x1024xf32>, vector<8x1024xf32> -> vector<8x1024xf32>
    %167 = arith.mulf %164, %166 : vector<8x1024xf32>
    %cst_24 = arith.constant dense<0.000000e+00> : vector<8xf32>
    %168 = vector.multi_reduction <add>, %167, %cst_24 [1] : vector<8x1024xf32> to vector<8xf32>
    %169 = vector.shape_cast %168 : vector<8xf32> to vector<8x1xf32>
    %cst_25 = arith.constant 0.000000e+00 : f32
    %170 = vector.broadcast %cst_25 : f32 to vector<8x1xf32>
    %171 = arith.subf %170, %169 : vector<8x1xf32>
    %172 = math.exp %171 : vector<8x1xf32>
    %cst_26 = arith.constant 1.000000e+00 : f32
    %173 = vector.broadcast %cst_26 : f32 to vector<8x1xf32>
    %174 = arith.addf %173, %172 : vector<8x1xf32>
    %cst_27 = arith.constant 1.000000e+00 : f32
    %175 = vector.broadcast %cst_27 : f32 to vector<8x1xf32>
    %176 = arith.divf %175, %174 : vector<8x1xf32>
    %c0_28 = arith.constant 0 : index
    %c0_29 = arith.constant 0 : index
    %177 = vector.load %arg3[%c0_28, %c0_29] : memref<8x1xf32, #tpu.memory_space<vmem>>, vector<8x1xf32>
    tpu.vector_store %arg3[%c0_28, %c0_29], %176 {strides = array<i32>} : memref<8x1xf32, #tpu.memory_space<vmem>>, vector<8x1xf32>,
    return
  }
  func.func @transform_0(%arg0: i32) -> (i32, i32) {
    %c0_i32 = arith.constant 0 : i32
    %c0_i32_0 = arith.constant 0 : i32
    return %arg0, %c0_i32 : i32, i32
  }
  func.func @transform_1(%arg0: i32) -> (i32, i32) {
    %c0_i32 = arith.constant 0 : i32
    %c0_i32_0 = arith.constant 0 : i32
    %c0_i32_1 = arith.constant 0 : i32
    return %c0_i32, %c0_i32_0 : i32, i32
  }
  func.func @transform_2(%arg0: i32) -> (i32, i32) {
    %c0_i32 = arith.constant 0 : i32
    %c0_i32_0 = arith.constant 0 : i32
    return %arg0, %c0_i32 : i32, i32
  }
}

</mosaic_0001>

<llo_original>
// kernel: tpu_custom_call.1
$region0: #{tpu_custom_call.1}
  #allocation0 [shape = 'u32[]', space=smem, size = 0x4, offset = 0x4, fixed_abs, tag = 'smem constant byte address 0x4 - core index']
  #allocation1 [shape = 'u32[144,128]{1,0:T(1,128)}', space=vmem, size = 0x12000, scoped, tag = 'internal scratch']
  %s0 = inlined_call_operand.hbm [shape: f32[8,10], index: 0, kind: input, shape index: {}]
  %s1 = inlined_call_operand.hbm [shape: f32[1024,1024], index: 1, kind: input, shape index: {}]
  %s2 = inlined_call_operand.vmem [shape: f32[8,1], index: 2, kind: output, shape index: {}]
  %s3 = sld [smem:[#allocation0]]
  $region26: #{tpu_custom_call.1} parent=0
    _
  %s5 = ssub.s32 1, %s3
  %s6 = scalar_select 0, %s5, %s3
  $region1: #{tpu_custom_call.1} parent=0
    #allocation2 [shape = 'u8[4096]{0}', space=vmem, size = 0x1000, scoped, tag = 'input window, operand 0, single buffered']
    #allocation3 [shape = 's32[1]{0}', space=sflag, size = 0x4, scoped, tag = 'scoped memory for tpu_custom_call.1']
    #allocation4 [shape = 'u8[4194304]{0}', space=vmem, size = 0x400000, scoped, tag = 'input window, operand 1, single buffered']
    #allocation5 [shape = 's32[1]{0}', space=sflag, size = 0x4, scoped, tag = 'scoped memory for tpu_custom_call.1']
    %7 = vsyncpa [#allocation3], 0
    %8 = vsyncpa [#allocation5], 0
    // Predicated region
    $region2: #{tpu_custom_call.1} parent=1 // pred_check
      _
    $region3: #{tpu_custom_call.1} parent=1 // pred_check_branch
      %10 = sbr.rel (0) target = $region5
    $region4: #{tpu_custom_call.1} parent=1 // pred_region
      %s12 = ssub.s32 128, 128
      %13 = vsyncadd [#allocation3], %s12
      %s15 = sshll.u32 [#allocation2], 4
      %s16 = int_to_ptr.vmem [resolvable:$true] %s15
      %18 = dma.hbm_to_vmem [thread:$0]  %s0, 128, %s16, [#allocation3]
    $region5: #{tpu_custom_call.1} parent=1 // pred_fallthru
      _
    // Predicated region
    $region6: #{tpu_custom_call.1} parent=1 // pred_check
      _
    $region7: #{tpu_custom_call.1} parent=1 // pred_check_branch
      %20 = sbr.rel (0) target = $region9
    $region8: #{tpu_custom_call.1} parent=1 // pred_region
      %s22 = ssub.s32 131072, 131072
      %23 = vsyncadd [#allocation5], %s22
      %s24 = sshll.u32 [#allocation4], 4
      %s25 = int_to_ptr.vmem [resolvable:$true] %s24
      %30 = dma.hbm_to_vmem [thread:$0]  %s1, 131072, %s25, [#allocation5], 1024, 1024, 64
    $region9: #{tpu_custom_call.1} parent=1 // pred_fallthru
      _
    // Predicated region
    $region10: #{tpu_custom_call.1} parent=1 // pred_check
      _
    $region11: #{tpu_custom_call.1} parent=1 // pred_check_branch
      %32 = sbr.rel (0) target = $region13
    $region12: #{tpu_custom_call.1} parent=1 // pred_region
      %33 = dma.done [#allocation3], 128
    $region13: #{tpu_custom_call.1} parent=1 // pred_fallthru
      _
    // Predicated region
    $region14: #{tpu_custom_call.1} parent=1 // pred_check
      _
    $region15: #{tpu_custom_call.1} parent=1 // pred_check_branch
      %35 = sbr.rel (0) target = $region17
    $region16: #{tpu_custom_call.1} parent=1 // pred_region
      %36 = dma.done [#allocation5], 131072
    $region17: #{tpu_custom_call.1} parent=1 // pred_fallthru
      _
    %v37 = vlaneseq
    %v38 = vand.u32 %v37, 127
    %v39 = vadd.s32 %v38, 128
    %v40 = vadd.s32 %v38, 256
    %v41 = vadd.s32 %v38, 384
    %v42 = vadd.s32 %v38, 512
    %v43 = vadd.s32 %v38, 640
    %v44 = vadd.s32 %v38, 768
    %v45 = vadd.s32 %v38, 896
    %v46 = vld [vmem:[#allocation2] sm:$0xff]
    %v47 = vmul.f32 %v46, 0.5
    %v48 = vand.u32 2147483647, %v47
    %vm49 = vcmp.le.f32.partialorder %v48, 0.7853982
    %vm50 = vcmp.lt.s32.totalorder %v47, 0
    %v51 = vand.u32 %v47, 2139095040
    %v52 = vshrl.u32 %v51, 23
    %v53 = vsub.s32 %v52, 127
    %v54 = vand.u32 2147483647, %v47
    %v55 = vand.u32 %v54, 8388607
    %v56 = vor.u32 %v55, 8388608
    %v57 = vsub.s32 0, %v56
    %v58 = vadd.s32 %v53, 1
    %vm59 = vcmp.gt.s32.totalorder %v58, 0
    %v60 = vsel %vm59, %v58, 0
    %v61 = vshrl.u32 %v60, 5
    %v62 = vand.u32 %v60, 31
    %v63 = vsub.s32 32, %v62
    %v64 = vshrl.u32 683565275, %v63
    %v65 = vshll.u32 683565275, %v62
    %v66 = vshrl.u32 2475754826, %v63
    %v67 = vor.u32 %v65, %v66
    %v68 = vshll.u32 2475754826, %v62
    %v69 = vshrl.u32 2131351028, %v63
    %v70 = vor.u32 %v68, %v69
    %v71 = vshll.u32 2131351028, %v62
    %v72 = vshrl.u32 2102212464, %v63
    %v73 = vor.u32 %v71, %v72
    %v74 = vshll.u32 2102212464, %v62
    %v75 = vshrl.u32 920167782, %v63
    %v76 = vor.u32 %v74, %v75
    %v77 = vshll.u32 920167782, %v62
    %v78 = vshrl.u32 1326507024, %v63
    %v79 = vor.u32 %v77, %v78
    %vm80 = vcmp.lt.s32.totalorder %v61, 1
    %vm81 = vcmp.lt.s32.totalorder %v61, 2
    %vm82 = vcmp.lt.s32.totalorder %v61, 3
    %vm83 = vcmp.lt.s32.totalorder %v61, 4
    %v84 = vsel %vm80, %v64, %v67
    %v85 = vsel %vm83, %v73, 2102212464
    %v86 = vsel %vm82, %v70, %v85
    %v87 = vsel %vm81, %v84, %v86
    %v88 = vsel %vm80, %v67, %v70
    %v89 = vsel %vm83, %v76, 920167782
    %v90 = vsel %vm82, %v73, %v89
    %v91 = vsel %vm81, %v88, %v90
    %v92 = vsel %vm80, %v70, %v73
    %v93 = vsel %vm83, %v79, 1326507024
    %v94 = vsel %vm82, %v76, %v93
    %v95 = vsel %vm81, %v92, %v94
    %v96 = vshll.u32 %v56, 8
    %v97 = vmul.u32.u64.compose %v96, %v95
    %v98 = vextract.low.u32 %v97
    %v99 = vextract.high.u32 %v97
    %v100 = vmul.u32.u64.compose %v96, %v91
    %v101 = vextract.low.u32 %v100
    %v102 = vextract.high.u32 %v100
    %v103 = vmul.u32 %v96, %v87
    %v104 = vadd.s32 %v99, %v101
    %vm105 = vc.u32 %v99, %v101
    %v106 = vadd.s32 %v102, 1
    %v107 = vsel %vm105, %v106, %v102
    %v108 = vadd.s32 %v103, %v107
    %v109 = vadd.s32 %v108, 536870912
    %v110 = vshrl.u32 %v109, 30
    %v111 = vshll.u32 %v110, 30
    %v112 = vsub.s32 %v108, %v111
    %vm113 = vcmp.lt.s32.totalorder %v112, 0
    %v114 = vsub.s32 0, %v112
    %v115 = vsel %vm113, %v114, %v112
    %v116 = vclz %v115
    %v117 = vsub.s32 %v116, 2
    %vm118 = vcmp.gt.s32.totalorder 0, %v117
    %v119 = vsel %vm118, 0, %v117
    %v120 = vsub.s32 32, %v119
    %v121 = vshll.u32 %v112, %v119
    %v122 = vshrl.u32 %v104, %v120
    %v123 = vor.u32 %v121, %v122
    %v124 = vsub.s32 4294967266, %v119
    %v125 = vadd.s32 %v124, 127
    %v126 = vshll.u32 %v125, 23
    %v127 = vor.u32 4788187, %v126
    %v128 = vand.u32 2147483647, %v127
    %v130 = vcvt.s32.f32 %v123
    %v131 = vmul.f32 %v130, %v128
    %v132 = vxor.u32 %v131, 2147483648
    %v133 = vsel %vm50, %v132, %v131
    %v134 = vsub.s32 4, %v110
    %v135 = vsel %vm50, %v134, %v110
    %v136 = vsel %vm49, %v47, %v133
    %v137 = vsel %vm49, 0, %v135
    %v138 = vcosq.f32.pop %v136
    %v139 = vsinq.f32.pop %v136
    %vm140 = vweird.f32 %v47
    %v141 = vand.u32 %v137, 3
    %vm142 = vcmp.lt.s32.totalorder %v141, 2
    %vm143 = vcmp.eq.s32.totalorder %v141, 0
    %v144 = vxor.u32 %v139, 2147483648
    %v145 = vsel %vm143, %v138, %v144
    %vm146 = vcmp.eq.s32.totalorder %v141, 2
    %v147 = vxor.u32 %v138, 2147483648
    %v148 = vsel %vm146, %v147, %v139
    %v149 = vsel %vm142, %v145, %v148
    %v150 = vsel %vm140, nan, %v149
    %v151 = vand.u32 2147483647, %v47
    %vm152 = vcmp.le.f32.partialorder %v151, 0.7853982
    %vm153 = vcmp.lt.s32.totalorder %v47, 0
    %v154 = vand.u32 %v47, 2139095040
    %v155 = vshrl.u32 %v154, 23
    %v156 = vsub.s32 %v155, 127
    %v157 = vand.u32 2147483647, %v47
    %v158 = vand.u32 %v157, 8388607
    %v159 = vor.u32 %v158, 8388608
    %v160 = vsub.s32 0, %v159
    %v161 = vadd.s32 %v156, 1
    %vm162 = vcmp.gt.s32.totalorder %v161, 0
    %v163 = vsel %vm162, %v161, 0
    %v164 = vshrl.u32 %v163, 5
    %v165 = vand.u32 %v163, 31
    %v166 = vsub.s32 32, %v165
    %v167 = vshrl.u32 683565275, %v166
    %v168 = vshll.u32 683565275, %v165
    %v169 = vshrl.u32 2475754826, %v166
    %v170 = vor.u32 %v168, %v169
    %v171 = vshll.u32 2475754826, %v165
    %v172 = vshrl.u32 2131351028, %v166
    %v173 = vor.u32 %v171, %v172
    %v174 = vshll.u32 2131351028, %v165
    %v175 = vshrl.u32 2102212464, %v166
    %v176 = vor.u32 %v174, %v175
    %v177 = vshll.u32 2102212464, %v165
    %v178 = vshrl.u32 920167782, %v166
    %v179 = vor.u32 %v177, %v178
    %v180 = vshll.u32 920167782, %v165
    %v181 = vshrl.u32 1326507024, %v166
    %v182 = vor.u32 %v180, %v181
    %vm183 = vcmp.lt.s32.totalorder %v164, 1
    %vm184 = vcmp.lt.s32.totalorder %v164, 2
    %vm185 = vcmp.lt.s32.totalorder %v164, 3
    %vm186 = vcmp.lt.s32.totalorder %v164, 4
    %v187 = vsel %vm183, %v167, %v170
    %v188 = vsel %vm186, %v176, 2102212464
    %v189 = vsel %vm185, %v173, %v188
    %v190 = vsel %vm184, %v187, %v189
    %v191 = vsel %vm183, %v170, %v173
    %v192 = vsel %vm186, %v179, 920167782
    %v193 = vsel %vm185, %v176, %v192
    %v194 = vsel %vm184, %v191, %v193
    %v195 = vsel %vm183, %v173, %v176
    %v196 = vsel %vm186, %v182, 1326507024
    %v197 = vsel %vm185, %v179, %v196
    %v198 = vsel %vm184, %v195, %v197
    %v199 = vshll.u32 %v159, 8
    %v200 = vmul.u32.u64.compose %v199, %v198
    %v201 = vextract.low.u32 %v200
    %v202 = vextract.high.u32 %v200
    %v203 = vmul.u32.u64.compose %v199, %v194
    %v204 = vextract.low.u32 %v203
    %v205 = vextract.high.u32 %v203
    %v206 = vmul.u32 %v199, %v190
    %v207 = vadd.s32 %v202, %v204
    %vm208 = vc.u32 %v202, %v204
    %v209 = vadd.s32 %v205, 1
    %v210 = vsel %vm208, %v209, %v205
    %v211 = vadd.s32 %v206, %v210
    %v212 = vadd.s32 %v211, 536870912
    %v213 = vshrl.u32 %v212, 30
    %v214 = vshll.u32 %v213, 30
    %v215 = vsub.s32 %v211, %v214
    %vm216 = vcmp.lt.s32.totalorder %v215, 0
    %v217 = vsub.s32 0, %v215
    %v218 = vsel %vm216, %v217, %v215
    %v219 = vclz %v218
    %v220 = vsub.s32 %v219, 2
    %vm221 = vcmp.gt.s32.totalorder 0, %v220
    %v222 = vsel %vm221, 0, %v220
    %v223 = vsub.s32 32, %v222
    %v224 = vshll.u32 %v215, %v222
    %v225 = vshrl.u32 %v207, %v223
    %v226 = vor.u32 %v224, %v225
    %v227 = vsub.s32 4294967266, %v222
    %v228 = vadd.s32 %v227, 127
    %v229 = vshll.u32 %v228, 23
    %v230 = vor.u32 4788187, %v229
    %v231 = vand.u32 2147483647, %v230
    %v233 = vcvt.s32.f32 %v226
    %v234 = vmul.f32 %v233, %v231
    %v235 = vxor.u32 %v234, 2147483648
    %v236 = vsel %vm153, %v235, %v234
    %v237 = vsub.s32 4, %v213
    %v238 = vsel %vm153, %v237, %v213
    %v239 = vsel %vm152, %v47, %v236
    %v240 = vsel %vm152, 0, %v238
    %v241 = vcosq.f32.pop %v239
    %v242 = vsinq.f32.pop %v239
    %vm243 = vweird.f32 %v47
    %v244 = vadd.s32 %v240, 3
    %v245 = vand.u32 %v244, 3
    %vm246 = vcmp.lt.s32.totalorder %v245, 2
    %vm247 = vcmp.eq.s32.totalorder %v245, 0
    %v248 = vxor.u32 %v242, 2147483648
    %v249 = vsel %vm247, %v241, %v248
    %vm250 = vcmp.eq.s32.totalorder %v245, 2
    %v251 = vxor.u32 %v241, 2147483648
    %v252 = vsel %vm250, %v251, %v242
    %v253 = vsel %vm246, %v249, %v252
    %v254 = vsel %vm243, nan, %v253
    %v255 = vshra.s32 %v38, 9
    %v256 = vshra.s32 %v39, 9
    %v257 = vshra.s32 %v40, 9
    %v258 = vshra.s32 %v41, 9
    %v259 = vshra.s32 %v42, 9
    %v260 = vshra.s32 %v43, 9
    %v261 = vshra.s32 %v44, 9
    %v262 = vshra.s32 %v45, 9
    %v263 = vand.u32 %v255, 1
    %v264 = vand.u32 %v256, 1
    %v265 = vand.u32 %v257, 1
    %v266 = vand.u32 %v258, 1
    %v267 = vand.u32 %v259, 1
    %v268 = vand.u32 %v260, 1
    %v269 = vand.u32 %v261, 1
    %v270 = vand.u32 %v262, 1
    %vm271 = vcmp.eq.s32.totalorder %v263, 1
    %vm272 = vcmp.eq.s32.totalorder %v264, 1
    %vm273 = vcmp.eq.s32.totalorder %v265, 1
    %vm274 = vcmp.eq.s32.totalorder %v266, 1
    %vm275 = vcmp.eq.s32.totalorder %v267, 1
    %vm276 = vcmp.eq.s32.totalorder %v268, 1
    %vm277 = vcmp.eq.s32.totalorder %v269, 1
    %vm278 = vcmp.eq.s32.totalorder %v270, 1
    %v279 = vsel %vm271, 1, 0
    %v280 = vsel %vm272, 1, 0
    %v281 = vsel %vm273, 1, 0
    %v282 = vsel %vm274, 1, 0
    %v283 = vsel %vm275, 1, 0
    %v284 = vsel %vm276, 1, 0
    %v285 = vsel %vm277, 1, 0
    %v286 = vsel %vm278, 1, 0
    %vm287 = vcmp.eq.s32.totalorder %v279, 1
    %vm288 = vcmp.eq.s32.totalorder %v280, 1
    %vm289 = vcmp.eq.s32.totalorder %v281, 1
    %vm290 = vcmp.eq.s32.totalorder %v282, 1
    %vm291 = vcmp.eq.s32.totalorder %v283, 1
    %vm292 = vcmp.eq.s32.totalorder %v284, 1
    %vm293 = vcmp.eq.s32.totalorder %v285, 1
    %vm294 = vcmp.eq.s32.totalorder %v286, 1
    %296 = vset.pattern.permute.xlu0 0
    %297 = vperm.xlu0 %296, %v254
    %v298 = vpop.permute.xlu0 %297
    %301 = vset.pattern.permute.xlu0 0
    %302 = vperm.xlu0 %301, %v150
    %v303 = vpop.permute.xlu0 %302
    %v305 = vsel %vm287, %v298, %v303
    %v306 = vsel %vm288, %v298, %v303
    %v307 = vsel %vm289, %v298, %v303
    %v308 = vsel %vm290, %v298, %v303
    %v309 = vsel %vm291, %v298, %v303
    %v310 = vsel %vm292, %v298, %v303
    %v311 = vsel %vm293, %v298, %v303
    %v312 = vsel %vm294, %v298, %v303
    %v313 = vshra.s32 %v38, 8
    %v314 = vshra.s32 %v39, 8
    %v315 = vshra.s32 %v40, 8
    %v316 = vshra.s32 %v41, 8
    %v317 = vshra.s32 %v42, 8
    %v318 = vshra.s32 %v43, 8
    %v319 = vshra.s32 %v44, 8
    %v320 = vshra.s32 %v45, 8
    %v321 = vand.u32 %v313, 1
    %v322 = vand.u32 %v314, 1
    %v323 = vand.u32 %v315, 1
    %v324 = vand.u32 %v316, 1
    %v325 = vand.u32 %v317, 1
    %v326 = vand.u32 %v318, 1
    %v327 = vand.u32 %v319, 1
    %v328 = vand.u32 %v320, 1
    %vm329 = vcmp.eq.s32.totalorder %v321, 1
    %vm330 = vcmp.eq.s32.totalorder %v322, 1
    %vm331 = vcmp.eq.s32.totalorder %v323, 1
    %vm332 = vcmp.eq.s32.totalorder %v324, 1
    %vm333 = vcmp.eq.s32.totalorder %v325, 1
    %vm334 = vcmp.eq.s32.totalorder %v326, 1
    %vm335 = vcmp.eq.s32.totalorder %v327, 1
    %vm336 = vcmp.eq.s32.totalorder %v328, 1
    %v337 = vsel %vm329, 1, 0
    %v338 = vsel %vm330, 1, 0
    %v339 = vsel %vm331, 1, 0
    %v340 = vsel %vm332, 1, 0
    %v341 = vsel %vm333, 1, 0
    %v342 = vsel %vm334, 1, 0
    %v343 = vsel %vm335, 1, 0
    %v344 = vsel %vm336, 1, 0
    %vm345 = vcmp.eq.s32.totalorder %v337, 1
    %vm346 = vcmp.eq.s32.totalorder %v338, 1
    %vm347 = vcmp.eq.s32.totalorder %v339, 1
    %vm348 = vcmp.eq.s32.totalorder %v340, 1
    %vm349 = vcmp.eq.s32.totalorder %v341, 1
    %vm350 = vcmp.eq.s32.totalorder %v342, 1
    %vm351 = vcmp.eq.s32.totalorder %v343, 1
    %vm352 = vcmp.eq.s32.totalorder %v344, 1
    %353 = vset.pattern.permute.xlu0 1
    %354 = vperm.xlu0 %353, %v254
    %v355 = vpop.permute.xlu0 %354
    %357 = vset.pattern.permute.xlu0 1
    %358 = vperm.xlu0 %357, %v150
    %v359 = vpop.permute.xlu0 %358
    %v361 = vsel %vm345, %v355, %v359
    %v362 = vsel %vm346, %v355, %v359
    %v363 = vsel %vm347, %v355, %v359
    %v364 = vsel %vm348, %v355, %v359
    %v365 = vsel %vm349, %v355, %v359
    %v366 = vsel %vm350, %v355, %v359
    %v367 = vsel %vm351, %v355, %v359
    %v368 = vsel %vm352, %v355, %v359
    %v369 = vmul.f32 %v305, %v361
    %v370 = vmul.f32 %v306, %v362
    %v371 = vmul.f32 %v307, %v363
    %v372 = vmul.f32 %v308, %v364
    %v373 = vmul.f32 %v309, %v365
    %v374 = vmul.f32 %v310, %v366
    %v375 = vmul.f32 %v311, %v367
    %v376 = vmul.f32 %v312, %v368
    %v377 = vshra.s32 %v38, 7
    %v378 = vshra.s32 %v39, 7
    %v379 = vshra.s32 %v40, 7
    %v380 = vshra.s32 %v41, 7
    %v381 = vshra.s32 %v42, 7
    %v382 = vshra.s32 %v43, 7
    %v383 = vshra.s32 %v44, 7
    %v384 = vshra.s32 %v45, 7
    %v385 = vand.u32 %v377, 1
    %v386 = vand.u32 %v378, 1
    %v387 = vand.u32 %v379, 1
    %v388 = vand.u32 %v380, 1
    %v389 = vand.u32 %v381, 1
    %v390 = vand.u32 %v382, 1
    %v391 = vand.u32 %v383, 1
    %v392 = vand.u32 %v384, 1
    %vm393 = vcmp.eq.s32.totalorder %v385, 1
    %vm394 = vcmp.eq.s32.totalorder %v386, 1
    %vm395 = vcmp.eq.s32.totalorder %v387, 1
    %vm396 = vcmp.eq.s32.totalorder %v388, 1
    %vm397 = vcmp.eq.s32.totalorder %v389, 1
    %vm398 = vcmp.eq.s32.totalorder %v390, 1
    %vm399 = vcmp.eq.s32.totalorder %v391, 1
    %vm400 = vcmp.eq.s32.totalorder %v392, 1
    %v401 = vsel %vm393, 1, 0
    %v402 = vsel %vm394, 1, 0
    %v403 = vsel %vm395, 1, 0
    %v404 = vsel %vm396, 1, 0
    %v405 = vsel %vm397, 1, 0
    %v406 = vsel %vm398, 1, 0
    %v407 = vsel %vm399, 1, 0
    %v408 = vsel %vm400, 1, 0
    %vm409 = vcmp.eq.s32.totalorder %v401, 1
    %vm410 = vcmp.eq.s32.totalorder %v402, 1
    %vm411 = vcmp.eq.s32.totalorder %v403, 1
    %vm412 = vcmp.eq.s32.totalorder %v404, 1
    %vm413 = vcmp.eq.s32.totalorder %v405, 1
    %vm414 = vcmp.eq.s32.totalorder %v406, 1
    %vm415 = vcmp.eq.s32.totalorder %v407, 1
    %vm416 = vcmp.eq.s32.totalorder %v408, 1
    %417 = vset.pattern.permute.xlu0 2
    %418 = vperm.xlu0 %417, %v254
    %v419 = vpop.permute.xlu0 %418
    %421 = vset.pattern.permute.xlu0 2
    %422 = vperm.xlu0 %421, %v150
    %v423 = vpop.permute.xlu0 %422
    %v425 = vsel %vm409, %v419, %v423
    %v426 = vsel %vm410, %v419, %v423
    %v427 = vsel %vm411, %v419, %v423
    %v428 = vsel %vm412, %v419, %v423
    %v429 = vsel %vm413, %v419, %v423
    %v430 = vsel %vm414, %v419, %v423
    %v431 = vsel %vm415, %v419, %v423
    %v432 = vsel %vm416, %v419, %v423
    %v433 = vmul.f32 %v369, %v425
    %v434 = vmul.f32 %v370, %v426
    %v435 = vmul.f32 %v371, %v427
    %v436 = vmul.f32 %v372, %v428
    %v437 = vmul.f32 %v373, %v429
    %v438 = vmul.f32 %v374, %v430
    %v439 = vmul.f32 %v375, %v431
    %v440 = vmul.f32 %v376, %v432
    %v441 = vshra.s32 %v38, 6
    %v442 = vshra.s32 %v39, 6
    %v443 = vshra.s32 %v40, 6
    %v444 = vshra.s32 %v41, 6
    %v445 = vshra.s32 %v42, 6
    %v446 = vshra.s32 %v43, 6
    %v447 = vshra.s32 %v44, 6
    %v448 = vshra.s32 %v45, 6
    %v449 = vand.u32 %v441, 1
    %v450 = vand.u32 %v442, 1
    %v451 = vand.u32 %v443, 1
    %v452 = vand.u32 %v444, 1
    %v453 = vand.u32 %v445, 1
    %v454 = vand.u32 %v446, 1
    %v455 = vand.u32 %v447, 1
    %v456 = vand.u32 %v448, 1
    %vm457 = vcmp.eq.s32.totalorder %v449, 1
    %vm458 = vcmp.eq.s32.totalorder %v450, 1
    %vm459 = vcmp.eq.s32.totalorder %v451, 1
    %vm460 = vcmp.eq.s32.totalorder %v452, 1
    %vm461 = vcmp.eq.s32.totalorder %v453, 1
    %vm462 = vcmp.eq.s32.totalorder %v454, 1
    %vm463 = vcmp.eq.s32.totalorder %v455, 1
    %vm464 = vcmp.eq.s32.totalorder %v456, 1
    %v465 = vsel %vm457, 1, 0
    %v466 = vsel %vm458, 1, 0
    %v467 = vsel %vm459, 1, 0
    %v468 = vsel %vm460, 1, 0
    %v469 = vsel %vm461, 1, 0
    %v470 = vsel %vm462, 1, 0
    %v471 = vsel %vm463, 1, 0
    %v472 = vsel %vm464, 1, 0
    %vm473 = vcmp.eq.s32.totalorder %v465, 1
    %vm474 = vcmp.eq.s32.totalorder %v466, 1
    %vm475 = vcmp.eq.s32.totalorder %v467, 1
    %vm476 = vcmp.eq.s32.totalorder %v468, 1
    %vm477 = vcmp.eq.s32.totalorder %v469, 1
    %vm478 = vcmp.eq.s32.totalorder %v470, 1
    %vm479 = vcmp.eq.s32.totalorder %v471, 1
    %vm480 = vcmp.eq.s32.totalorder %v472, 1
    %481 = vset.pattern.permute.xlu0 3
    %482 = vperm.xlu0 %481, %v254
    %v483 = vpop.permute.xlu0 %482
    %485 = vset.pattern.permute.xlu0 3
    %486 = vperm.xlu0 %485, %v150
    %v487 = vpop.permute.xlu0 %486
    %v489 = vsel %vm473, %v483, %v487
    %v490 = vsel %vm474, %v483, %v487
    %v491 = vsel %vm475, %v483, %v487
    %v492 = vsel %vm476, %v483, %v487
    %v493 = vsel %vm477, %v483, %v487
    %v494 = vsel %vm478, %v483, %v487
    %v495 = vsel %vm479, %v483, %v487
    %v496 = vsel %vm480, %v483, %v487
    %v497 = vmul.f32 %v433, %v489
    %v498 = vmul.f32 %v434, %v490
    %v499 = vmul.f32 %v435, %v491
    %v500 = vmul.f32 %v436, %v492
    %v501 = vmul.f32 %v437, %v493
    %v502 = vmul.f32 %v438, %v494
    %v503 = vmul.f32 %v439, %v495
    %v504 = vmul.f32 %v440, %v496
    %v505 = vshra.s32 %v38, 5
    %v506 = vshra.s32 %v39, 5
    %v507 = vshra.s32 %v40, 5
    %v508 = vshra.s32 %v41, 5
    %v509 = vshra.s32 %v42, 5
    %v510 = vshra.s32 %v43, 5
    %v511 = vshra.s32 %v44, 5
    %v512 = vshra.s32 %v45, 5
    %v513 = vand.u32 %v505, 1
    %v514 = vand.u32 %v506, 1
    %v515 = vand.u32 %v507, 1
    %v516 = vand.u32 %v508, 1
    %v517 = vand.u32 %v509, 1
    %v518 = vand.u32 %v510, 1
    %v519 = vand.u32 %v511, 1
    %v520 = vand.u32 %v512, 1
    %vm521 = vcmp.eq.s32.totalorder %v513, 1
    %vm522 = vcmp.eq.s32.totalorder %v514, 1
    %vm523 = vcmp.eq.s32.totalorder %v515, 1
    %vm524 = vcmp.eq.s32.totalorder %v516, 1
    %vm525 = vcmp.eq.s32.totalorder %v517, 1
    %vm526 = vcmp.eq.s32.totalorder %v518, 1
    %vm527 = vcmp.eq.s32.totalorder %v519, 1
    %vm528 = vcmp.eq.s32.totalorder %v520, 1
    %v529 = vsel %vm521, 1, 0
    %v530 = vsel %vm522, 1, 0
    %v531 = vsel %vm523, 1, 0
    %v532 = vsel %vm524, 1, 0
    %v533 = vsel %vm525, 1, 0
    %v534 = vsel %vm526, 1, 0
    %v535 = vsel %vm527, 1, 0
    %v536 = vsel %vm528, 1, 0
    %vm537 = vcmp.eq.s32.totalorder %v529, 1
    %vm538 = vcmp.eq.s32.totalorder %v530, 1
    %vm539 = vcmp.eq.s32.totalorder %v531, 1
    %vm540 = vcmp.eq.s32.totalorder %v532, 1
    %vm541 = vcmp.eq.s32.totalorder %v533, 1
    %vm542 = vcmp.eq.s32.totalorder %v534, 1
    %vm543 = vcmp.eq.s32.totalorder %v535, 1
    %vm544 = vcmp.eq.s32.totalorder %v536, 1
    %545 = vset.pattern.permute.xlu0 4
    %546 = vperm.xlu0 %545, %v254
    %v547 = vpop.permute.xlu0 %546
    %549 = vset.pattern.permute.xlu0 4
    %550 = vperm.xlu0 %549, %v150
    %v551 = vpop.permute.xlu0 %550
    %v553 = vsel %vm537, %v547, %v551
    %v554 = vsel %vm538, %v547, %v551
    %v555 = vsel %vm539, %v547, %v551
    %v556 = vsel %vm540, %v547, %v551
    %v557 = vsel %vm541, %v547, %v551
    %v558 = vsel %vm542, %v547, %v551
    %v559 = vsel %vm543, %v547, %v551
    %v560 = vsel %vm544, %v547, %v551
    %v561 = vmul.f32 %v497, %v553
    %v562 = vmul.f32 %v498, %v554
    %v563 = vmul.f32 %v499, %v555
    %v564 = vmul.f32 %v500, %v556
    %v565 = vmul.f32 %v501, %v557
    %v566 = vmul.f32 %v502, %v558
    %v567 = vmul.f32 %v503, %v559
    %v568 = vmul.f32 %v504, %v560
    %v569 = vshra.s32 %v38, 4
    %v570 = vshra.s32 %v39, 4
    %v571 = vshra.s32 %v40, 4
    %v572 = vshra.s32 %v41, 4
    %v573 = vshra.s32 %v42, 4
    %v574 = vshra.s32 %v43, 4
    %v575 = vshra.s32 %v44, 4
    %v576 = vshra.s32 %v45, 4
    %v577 = vand.u32 %v569, 1
    %v578 = vand.u32 %v570, 1
    %v579 = vand.u32 %v571, 1
    %v580 = vand.u32 %v572, 1
    %v581 = vand.u32 %v573, 1
    %v582 = vand.u32 %v574, 1
    %v583 = vand.u32 %v575, 1
    %v584 = vand.u32 %v576, 1
    %vm585 = vcmp.eq.s32.totalorder %v577, 1
    %vm586 = vcmp.eq.s32.totalorder %v578, 1
    %vm587 = vcmp.eq.s32.totalorder %v579, 1
    %vm588 = vcmp.eq.s32.totalorder %v580, 1
    %vm589 = vcmp.eq.s32.totalorder %v581, 1
    %vm590 = vcmp.eq.s32.totalorder %v582, 1
    %vm591 = vcmp.eq.s32.totalorder %v583, 1
    %vm592 = vcmp.eq.s32.totalorder %v584, 1
    %v593 = vsel %vm585, 1, 0
    %v594 = vsel %vm586, 1, 0
    %v595 = vsel %vm587, 1, 0
    %v596 = vsel %vm588, 1, 0
    %v597 = vsel %vm589, 1, 0
    %v598 = vsel %vm590, 1, 0
    %v599 = vsel %vm591, 1, 0
    %v600 = vsel %vm592, 1, 0
    %vm601 = vcmp.eq.s32.totalorder %v593, 1
    %vm602 = vcmp.eq.s32.totalorder %v594, 1
    %vm603 = vcmp.eq.s32.totalorder %v595, 1
    %vm604 = vcmp.eq.s32.totalorder %v596, 1
    %vm605 = vcmp.eq.s32.totalorder %v597, 1
    %vm606 = vcmp.eq.s32.totalorder %v598, 1
    %vm607 = vcmp.eq.s32.totalorder %v599, 1
    %vm608 = vcmp.eq.s32.totalorder %v600, 1
    %609 = vset.pattern.permute.xlu0 5
    %610 = vperm.xlu0 %609, %v254
    %v611 = vpop.permute.xlu0 %610
    %613 = vset.pattern.permute.xlu0 5
    %614 = vperm.xlu0 %613, %v150
    %v615 = vpop.permute.xlu0 %614
    %v617 = vsel %vm601, %v611, %v615
    %v618 = vsel %vm602, %v611, %v615
    %v619 = vsel %vm603, %v611, %v615
    %v620 = vsel %vm604, %v611, %v615
    %v621 = vsel %vm605, %v611, %v615
    %v622 = vsel %vm606, %v611, %v615
    %v623 = vsel %vm607, %v611, %v615
    %v624 = vsel %vm608, %v611, %v615
    %v625 = vmul.f32 %v561, %v617
    %v626 = vmul.f32 %v562, %v618
    %v627 = vmul.f32 %v563, %v619
    %v628 = vmul.f32 %v564, %v620
    %v629 = vmul.f32 %v565, %v621
    %v630 = vmul.f32 %v566, %v622
    %v631 = vmul.f32 %v567, %v623
    %v632 = vmul.f32 %v568, %v624
    %v633 = vshra.s32 %v38, 3
    %v634 = vshra.s32 %v39, 3
    %v635 = vshra.s32 %v40, 3
    %v636 = vshra.s32 %v41, 3
    %v637 = vshra.s32 %v42, 3
    %v638 = vshra.s32 %v43, 3
    %v639 = vshra.s32 %v44, 3
    %v640 = vshra.s32 %v45, 3
    %v641 = vand.u32 %v633, 1
    %v642 = vand.u32 %v634, 1
    %v643 = vand.u32 %v635, 1
    %v644 = vand.u32 %v636, 1
    %v645 = vand.u32 %v637, 1
    %v646 = vand.u32 %v638, 1
    %v647 = vand.u32 %v639, 1
    %v648 = vand.u32 %v640, 1
    %vm649 = vcmp.eq.s32.totalorder %v641, 1
    %vm650 = vcmp.eq.s32.totalorder %v642, 1
    %vm651 = vcmp.eq.s32.totalorder %v643, 1
    %vm652 = vcmp.eq.s32.totalorder %v644, 1
    %vm653 = vcmp.eq.s32.totalorder %v645, 1
    %vm654 = vcmp.eq.s32.totalorder %v646, 1
    %vm655 = vcmp.eq.s32.totalorder %v647, 1
    %vm656 = vcmp.eq.s32.totalorder %v648, 1
    %v657 = vsel %vm649, 1, 0
    %v658 = vsel %vm650, 1, 0
    %v659 = vsel %vm651, 1, 0
    %v660 = vsel %vm652, 1, 0
    %v661 = vsel %vm653, 1, 0
    %v662 = vsel %vm654, 1, 0
    %v663 = vsel %vm655, 1, 0
    %v664 = vsel %vm656, 1, 0
    %vm665 = vcmp.eq.s32.totalorder %v657, 1
    %vm666 = vcmp.eq.s32.totalorder %v658, 1
    %vm667 = vcmp.eq.s32.totalorder %v659, 1
    %vm668 = vcmp.eq.s32.totalorder %v660, 1
    %vm669 = vcmp.eq.s32.totalorder %v661, 1
    %vm670 = vcmp.eq.s32.totalorder %v662, 1
    %vm671 = vcmp.eq.s32.totalorder %v663, 1
    %vm672 = vcmp.eq.s32.totalorder %v664, 1
    %673 = vset.pattern.permute.xlu0 6
    %674 = vperm.xlu0 %673, %v254
    %v675 = vpop.permute.xlu0 %674
    %677 = vset.pattern.permute.xlu0 6
    %678 = vperm.xlu0 %677, %v150
    %v679 = vpop.permute.xlu0 %678
    %v681 = vsel %vm665, %v675, %v679
    %v682 = vsel %vm666, %v675, %v679
    %v683 = vsel %vm667, %v675, %v679
    %v684 = vsel %vm668, %v675, %v679
    %v685 = vsel %vm669, %v675, %v679
    %v686 = vsel %vm670, %v675, %v679
    %v687 = vsel %vm671, %v675, %v679
    %v688 = vsel %vm672, %v675, %v679
    %v689 = vmul.f32 %v625, %v681
    %v690 = vmul.f32 %v626, %v682
    %v691 = vmul.f32 %v627, %v683
    %v692 = vmul.f32 %v628, %v684
    %v693 = vmul.f32 %v629, %v685
    %v694 = vmul.f32 %v630, %v686
    %v695 = vmul.f32 %v631, %v687
    %v696 = vmul.f32 %v632, %v688
    %v697 = vshra.s32 %v38, 2
    %v698 = vshra.s32 %v39, 2
    %v699 = vshra.s32 %v40, 2
    %v700 = vshra.s32 %v41, 2
    %v701 = vshra.s32 %v42, 2
    %v702 = vshra.s32 %v43, 2
    %v703 = vshra.s32 %v44, 2
    %v704 = vshra.s32 %v45, 2
    %v705 = vand.u32 %v697, 1
    %v706 = vand.u32 %v698, 1
    %v707 = vand.u32 %v699, 1
    %v708 = vand.u32 %v700, 1
    %v709 = vand.u32 %v701, 1
    %v710 = vand.u32 %v702, 1
    %v711 = vand.u32 %v703, 1
    %v712 = vand.u32 %v704, 1
    %vm713 = vcmp.eq.s32.totalorder %v705, 1
    %vm714 = vcmp.eq.s32.totalorder %v706, 1
    %vm715 = vcmp.eq.s32.totalorder %v707, 1
    %vm716 = vcmp.eq.s32.totalorder %v708, 1
    %vm717 = vcmp.eq.s32.totalorder %v709, 1
    %vm718 = vcmp.eq.s32.totalorder %v710, 1
    %vm719 = vcmp.eq.s32.totalorder %v711, 1
    %vm720 = vcmp.eq.s32.totalorder %v712, 1
    %v721 = vsel %vm713, 1, 0
    %v722 = vsel %vm714, 1, 0
    %v723 = vsel %vm715, 1, 0
    %v724 = vsel %vm716, 1, 0
    %v725 = vsel %vm717, 1, 0
    %v726 = vsel %vm718, 1, 0
    %v727 = vsel %vm719, 1, 0
    %v728 = vsel %vm720, 1, 0
    %vm729 = vcmp.eq.s32.totalorder %v721, 1
    %vm730 = vcmp.eq.s32.totalorder %v722, 1
    %vm731 = vcmp.eq.s32.totalorder %v723, 1
    %vm732 = vcmp.eq.s32.totalorder %v724, 1
    %vm733 = vcmp.eq.s32.totalorder %v725, 1
    %vm734 = vcmp.eq.s32.totalorder %v726, 1
    %vm735 = vcmp.eq.s32.totalorder %v727, 1
    %vm736 = vcmp.eq.s32.totalorder %v728, 1
    %737 = vset.pattern.permute.xlu0 7
    %738 = vperm.xlu0 %737, %v254
    %v739 = vpop.permute.xlu0 %738
    %741 = vset.pattern.permute.xlu0 7
    %742 = vperm.xlu0 %741, %v150
    %v743 = vpop.permute.xlu0 %742
    %v745 = vsel %vm729, %v739, %v743
    %v746 = vsel %vm730, %v739, %v743
    %v747 = vsel %vm731, %v739, %v743
    %v748 = vsel %vm732, %v739, %v743
    %v749 = vsel %vm733, %v739, %v743
    %v750 = vsel %vm734, %v739, %v743
    %v751 = vsel %vm735, %v739, %v743
    %v752 = vsel %vm736, %v739, %v743
    %v753 = vmul.f32 %v689, %v745
    %v754 = vmul.f32 %v690, %v746
    %v755 = vmul.f32 %v691, %v747
    %v756 = vmul.f32 %v692, %v748
    %v757 = vmul.f32 %v693, %v749
    %v758 = vmul.f32 %v694, %v750
    %v759 = vmul.f32 %v695, %v751
    %v760 = vmul.f32 %v696, %v752
    %v761 = vshra.s32 %v38, 1
    %v762 = vshra.s32 %v39, 1
    %v763 = vshra.s32 %v40, 1
    %v764 = vshra.s32 %v41, 1
    %v765 = vshra.s32 %v42, 1
    %v766 = vshra.s32 %v43, 1
    %v767 = vshra.s32 %v44, 1
    %v768 = vshra.s32 %v45, 1
    %v769 = vand.u32 %v761, 1
    %v770 = vand.u32 %v762, 1
    %v771 = vand.u32 %v763, 1
    %v772 = vand.u32 %v764, 1
    %v773 = vand.u32 %v765, 1
    %v774 = vand.u32 %v766, 1
    %v775 = vand.u32 %v767, 1
    %v776 = vand.u32 %v768, 1
    %vm777 = vcmp.eq.s32.totalorder %v769, 1
    %vm778 = vcmp.eq.s32.totalorder %v770, 1
    %vm779 = vcmp.eq.s32.totalorder %v771, 1
    %vm780 = vcmp.eq.s32.totalorder %v772, 1
    %vm781 = vcmp.eq.s32.totalorder %v773, 1
    %vm782 = vcmp.eq.s32.totalorder %v774, 1
    %vm783 = vcmp.eq.s32.totalorder %v775, 1
    %vm784 = vcmp.eq.s32.totalorder %v776, 1
    %v785 = vsel %vm777, 1, 0
    %v786 = vsel %vm778, 1, 0
    %v787 = vsel %vm779, 1, 0
    %v788 = vsel %vm780, 1, 0
    %v789 = vsel %vm781, 1, 0
    %v790 = vsel %vm782, 1, 0
    %v791 = vsel %vm783, 1, 0
    %v792 = vsel %vm784, 1, 0
    %vm793 = vcmp.eq.s32.totalorder %v785, 1
    %vm794 = vcmp.eq.s32.totalorder %v786, 1
    %vm795 = vcmp.eq.s32.totalorder %v787, 1
    %vm796 = vcmp.eq.s32.totalorder %v788, 1
    %vm797 = vcmp.eq.s32.totalorder %v789, 1
    %vm798 = vcmp.eq.s32.totalorder %v790, 1
    %vm799 = vcmp.eq.s32.totalorder %v791, 1
    %vm800 = vcmp.eq.s32.totalorder %v792, 1
    %801 = vset.pattern.permute.xlu0 8
    %802 = vperm.xlu0 %801, %v254
    %v803 = vpop.permute.xlu0 %802
    %805 = vset.pattern.permute.xlu0 8
    %806 = vperm.xlu0 %805, %v150
    %v807 = vpop.permute.xlu0 %806
    %v809 = vsel %vm793, %v803, %v807
    %v810 = vsel %vm794, %v803, %v807
    %v811 = vsel %vm795, %v803, %v807
    %v812 = vsel %vm796, %v803, %v807
    %v813 = vsel %vm797, %v803, %v807
    %v814 = vsel %vm798, %v803, %v807
    %v815 = vsel %vm799, %v803, %v807
    %v816 = vsel %vm800, %v803, %v807
    %v817 = vmul.f32 %v753, %v809
    %v818 = vmul.f32 %v754, %v810
    %v819 = vmul.f32 %v755, %v811
    %v820 = vmul.f32 %v756, %v812
    %v821 = vmul.f32 %v757, %v813
    %v822 = vmul.f32 %v758, %v814
    %v823 = vmul.f32 %v759, %v815
    %v824 = vmul.f32 %v760, %v816
    %v825 = vand.u32 %v38, 1
    %v826 = vand.u32 %v39, 1
    %v827 = vand.u32 %v40, 1
    %v828 = vand.u32 %v41, 1
    %v829 = vand.u32 %v42, 1
    %v830 = vand.u32 %v43, 1
    %v831 = vand.u32 %v44, 1
    %v832 = vand.u32 %v45, 1
    %vm833 = vcmp.eq.s32.totalorder %v825, 1
    %vm834 = vcmp.eq.s32.totalorder %v826, 1
    %vm835 = vcmp.eq.s32.totalorder %v827, 1
    %vm836 = vcmp.eq.s32.totalorder %v828, 1
    %vm837 = vcmp.eq.s32.totalorder %v829, 1
    %vm838 = vcmp.eq.s32.totalorder %v830, 1
    %vm839 = vcmp.eq.s32.totalorder %v831, 1
    %vm840 = vcmp.eq.s32.totalorder %v832, 1
    %v841 = vsel %vm833, 1, 0
    %v842 = vsel %vm834, 1, 0
    %v843 = vsel %vm835, 1, 0
    %v844 = vsel %vm836, 1, 0
    %v845 = vsel %vm837, 1, 0
    %v846 = vsel %vm838, 1, 0
    %v847 = vsel %vm839, 1, 0
    %v848 = vsel %vm840, 1, 0
    %vm849 = vcmp.eq.s32.totalorder %v841, 1
    %vm850 = vcmp.eq.s32.totalorder %v842, 1
    %vm851 = vcmp.eq.s32.totalorder %v843, 1
    %vm852 = vcmp.eq.s32.totalorder %v844, 1
    %vm853 = vcmp.eq.s32.totalorder %v845, 1
    %vm854 = vcmp.eq.s32.totalorder %v846, 1
    %vm855 = vcmp.eq.s32.totalorder %v847, 1
    %vm856 = vcmp.eq.s32.totalorder %v848, 1
    %857 = vset.pattern.permute.xlu0 9
    %858 = vperm.xlu0 %857, %v254
    %v859 = vpop.permute.xlu0 %858
    %861 = vset.pattern.permute.xlu0 9
    %862 = vperm.xlu0 %861, %v150
    %v863 = vpop.permute.xlu0 %862
    %v865 = vsel %vm849, %v859, %v863
    %v866 = vsel %vm850, %v859, %v863
    %v867 = vsel %vm851, %v859, %v863
    %v868 = vsel %vm852, %v859, %v863
    %v869 = vsel %vm853, %v859, %v863
    %v870 = vsel %vm854, %v859, %v863
    %v871 = vsel %vm855, %v859, %v863
    %v872 = vsel %vm856, %v859, %v863
    %v873 = vmul.f32 %v817, %v865
    %v874 = vmul.f32 %v818, %v866
    %v875 = vmul.f32 %v819, %v867
    %v876 = vmul.f32 %v820, %v868
    %v877 = vmul.f32 %v821, %v869
    %v878 = vmul.f32 %v822, %v870
    %v879 = vmul.f32 %v823, %v871
    %v880 = vmul.f32 %v824, %v872
    %v881 = vld [vmem:[#allocation4] sm:$0xff]
    %v882 = vld [vmem:[#allocation4 + $0x8] sm:$0xff]
    %v883 = vld [vmem:[#allocation4 + $0x10] sm:$0xff]
    %v884 = vld [vmem:[#allocation4 + $0x18] sm:$0xff]
    %v885 = vld [vmem:[#allocation4 + $0x20] sm:$0xff]
    %v886 = vld [vmem:[#allocation4 + $0x28] sm:$0xff]
    %v887 = vld [vmem:[#allocation4 + $0x30] sm:$0xff]
    %v888 = vld [vmem:[#allocation4 + $0x38] sm:$0xff]
    %v889 = vld [vmem:[#allocation4 + $0x40] sm:$0xff]
    %v890 = vld [vmem:[#allocation4 + $0x48] sm:$0xff]
    %v891 = vld [vmem:[#allocation4 + $0x50] sm:$0xff]
    %v892 = vld [vmem:[#allocation4 + $0x58] sm:$0xff]
    %v893 = vld [vmem:[#allocation4 + $0x60] sm:$0xff]
    %v894 = vld [vmem:[#allocation4 + $0x68] sm:$0xff]
    %v895 = vld [vmem:[#allocation4 + $0x70] sm:$0xff]
    %v896 = vld [vmem:[#allocation4 + $0x78] sm:$0xff]
    %v897 = vld [vmem:[#allocation4 + $0x80] sm:$0xff]
    %v898 = vld [vmem:[#allocation4 + $0x88] sm:$0xff]
    %v899 = vld [vmem:[#allocation4 + $0x90] sm:$0xff]
    %v900 = vld [vmem:[#allocation4 + $0x98] sm:$0xff]
    %v901 = vld [vmem:[#allocation4 + $0xa0] sm:$0xff]
    %v902 = vld [vmem:[#allocation4 + $0xa8] sm:$0xff]
    %v903 = vld [vmem:[#allocation4 + $0xb0] sm:$0xff]
    %v904 = vld [vmem:[#allocation4 + $0xb8] sm:$0xff]
    %v905 = vld [vmem:[#allocation4 + $0xc0] sm:$0xff]
    %v906 = vld [vmem:[#allocation4 + $0xc8] sm:$0xff]
    %v907 = vld [vmem:[#allocation4 + $0xd0] sm:$0xff]
    %v908 = vld [vmem:[#allocation4 + $0xd8] sm:$0xff]
    %v909 = vld [vmem:[#allocation4 + $0xe0] sm:$0xff]
    %v910 = vld [vmem:[#allocation4 + $0xe8] sm:$0xff]
    %v911 = vld [vmem:[#allocation4 + $0xf0] sm:$0xff]
    %v912 = vld [vmem:[#allocation4 + $0xf8] sm:$0xff]
    %v913 = vld [vmem:[#allocation4 + $0x100] sm:$0xff]
    %v914 = vld [vmem:[#allocation4 + $0x108] sm:$0xff]
    %v915 = vld [vmem:[#allocation4 + $0x110] sm:$0xff]
    %v916 = vld [vmem:[#allocation4 + $0x118] sm:$0xff]
    %v917 = vld [vmem:[#allocation4 + $0x120] sm:$0xff]
    %v918 = vld [vmem:[#allocation4 + $0x128] sm:$0xff]
    %v919 = vld [vmem:[#allocation4 + $0x130] sm:$0xff]
    %v920 = vld [vmem:[#allocation4 + $0x138] sm:$0xff]
    %v921 = vld [vmem:[#allocation4 + $0x140] sm:$0xff]
    %v922 = vld [vmem:[#allocation4 + $0x148] sm:$0xff]
    %v923 = vld [vmem:[#allocation4 + $0x150] sm:$0xff]
    %v924 = vld [vmem:[#allocation4 + $0x158] sm:$0xff]
    %v925 = vld [vmem:[#allocation4 + $0x160] sm:$0xff]
    %v926 = vld [vmem:[#allocation4 + $0x168] sm:$0xff]
    %v927 = vld [vmem:[#allocation4 + $0x170] sm:$0xff]
    %v928 = vld [vmem:[#allocation4 + $0x178] sm:$0xff]
    %v929 = vld [vmem:[#allocation4 + $0x180] sm:$0xff]
    %v930 = vld [vmem:[#allocation4 + $0x188] sm:$0xff]
    %v931 = vld [vmem:[#allocation4 + $0x190] sm:$0xff]
    %v932 = vld [vmem:[#allocation4 + $0x198] sm:$0xff]
    %v933 = vld [vmem:[#allocation4 + $0x1a0] sm:$0xff]
    %v934 = vld [vmem:[#allocation4 + $0x1a8] sm:$0xff]
    %v935 = vld [vmem:[#allocation4 + $0x1b0] sm:$0xff]
    %v936 = vld [vmem:[#allocation4 + $0x1b8] sm:$0xff]
    %v937 = vld [vmem:[#allocation4 + $0x1c0] sm:$0xff]
    %v938 = vld [vmem:[#allocation4 + $0x1c8] sm:$0xff]
    %v939 = vld [vmem:[#allocation4 + $0x1d0] sm:$0xff]
    %v940 = vld [vmem:[#allocation4 + $0x1d8] sm:$0xff]
    %v941 = vld [vmem:[#allocation4 + $0x1e0] sm:$0xff]
    %v942 = vld [vmem:[#allocation4 + $0x1e8] sm:$0xff]
    %v943 = vld [vmem:[#allocation4 + $0x1f0] sm:$0xff]
    %v944 = vld [vmem:[#allocation4 + $0x1f8] sm:$0xff]
    %v945 = vld [vmem:[#allocation4 + $0x200] sm:$0xff]
    %v946 = vld [vmem:[#allocation4 + $0x208] sm:$0xff]
    %v947 = vld [vmem:[#allocation4 + $0x210] sm:$0xff]
    %v948 = vld [vmem:[#allocation4 + $0x218] sm:$0xff]
    %v949 = vld [vmem:[#allocation4 + $0x220] sm:$0xff]
    %v950 = vld [vmem:[#allocation4 + $0x228] sm:$0xff]
    %v951 = vld [vmem:[#allocation4 + $0x230] sm:$0xff]
    %v952 = vld [vmem:[#allocation4 + $0x238] sm:$0xff]
    %v953 = vld [vmem:[#allocation4 + $0x240] sm:$0xff]
    %v954 = vld [vmem:[#allocation4 + $0x248] sm:$0xff]
    %v955 = vld [vmem:[#allocation4 + $0x250] sm:$0xff]
    %v956 = vld [vmem:[#allocation4 + $0x258] sm:$0xff]
    %v957 = vld [vmem:[#allocation4 + $0x260] sm:$0xff]
    %v958 = vld [vmem:[#allocation4 + $0x268] sm:$0xff]
    %v959 = vld [vmem:[#allocation4 + $0x270] sm:$0xff]
    %v960 = vld [vmem:[#allocation4 + $0x278] sm:$0xff]
    %v961 = vld [vmem:[#allocation4 + $0x280] sm:$0xff]
    %v962 = vld [vmem:[#allocation4 + $0x288] sm:$0xff]
    %v963 = vld [vmem:[#allocation4 + $0x290] sm:$0xff]
    %v964 = vld [vmem:[#allocation4 + $0x298] sm:$0xff]
    %v965 = vld [vmem:[#allocation4 + $0x2a0] sm:$0xff]
    %v966 = vld [vmem:[#allocation4 + $0x2a8] sm:$0xff]
    %v967 = vld [vmem:[#allocation4 + $0x2b0] sm:$0xff]
    %v968 = vld [vmem:[#allocation4 + $0x2b8] sm:$0xff]
    %v969 = vld [vmem:[#allocation4 + $0x2c0] sm:$0xff]
    %v970 = vld [vmem:[#allocation4 + $0x2c8] sm:$0xff]
    %v971 = vld [vmem:[#allocation4 + $0x2d0] sm:$0xff]
    %v972 = vld [vmem:[#allocation4 + $0x2d8] sm:$0xff]
    %v973 = vld [vmem:[#allocation4 + $0x2e0] sm:$0xff]
    %v974 = vld [vmem:[#allocation4 + $0x2e8] sm:$0xff]
    %v975 = vld [vmem:[#allocation4 + $0x2f0] sm:$0xff]
    %v976 = vld [vmem:[#allocation4 + $0x2f8] sm:$0xff]
    %v977 = vld [vmem:[#allocation4 + $0x300] sm:$0xff]
    %v978 = vld [vmem:[#allocation4 + $0x308] sm:$0xff]
    %v979 = vld [vmem:[#allocation4 + $0x310] sm:$0xff]
    %v980 = vld [vmem:[#allocation4 + $0x318] sm:$0xff]
    %v981 = vld [vmem:[#allocation4 + $0x320] sm:$0xff]
    %v982 = vld [vmem:[#allocation4 + $0x328] sm:$0xff]
    %v983 = vld [vmem:[#allocation4 + $0x330] sm:$0xff]
    %v984 = vld [vmem:[#allocation4 + $0x338] sm:$0xff]
    %v985 = vld [vmem:[#allocation4 + $0x340] sm:$0xff]
    %v986 = vld [vmem:[#allocation4 + $0x348] sm:$0xff]
    %v987 = vld [vmem:[#allocation4 + $0x350] sm:$0xff]
    %v988 = vld [vmem:[#allocation4 + $0x358] sm:$0xff]
    %v989 = vld [vmem:[#allocation4 + $0x360] sm:$0xff]
    %v990 = vld [vmem:[#allocation4 + $0x368] sm:$0xff]
    %v991 = vld [vmem:[#allocation4 + $0x370] sm:$0xff]
    %v992 = vld [vmem:[#allocation4 + $0x378] sm:$0xff]
    %v993 = vld [vmem:[#allocation4 + $0x380] sm:$0xff]
    %v994 = vld [vmem:[#allocation4 + $0x388] sm:$0xff]
    %v995 = vld [vmem:[#allocation4 + $0x390] sm:$0xff]
    %v996 = vld [vmem:[#allocation4 + $0x398] sm:$0xff]
    %v997 = vld [vmem:[#allocation4 + $0x3a0] sm:$0xff]
    %v998 = vld [vmem:[#allocation4 + $0x3a8] sm:$0xff]
    %v999 = vld [vmem:[#allocation4 + $0x3b0] sm:$0xff]
    %v1000 = vld [vmem:[#allocation4 + $0x3b8] sm:$0xff]
    %v1001 = vld [vmem:[#allocation4 + $0x3c0] sm:$0xff]
    %v1002 = vld [vmem:[#allocation4 + $0x3c8] sm:$0xff]
    %v1003 = vld [vmem:[#allocation4 + $0x3d0] sm:$0xff]
    %v1004 = vld [vmem:[#allocation4 + $0x3d8] sm:$0xff]
    %v1005 = vld [vmem:[#allocation4 + $0x3e0] sm:$0xff]
    %v1006 = vld [vmem:[#allocation4 + $0x3e8] sm:$0xff]
    %v1007 = vld [vmem:[#allocation4 + $0x3f0] sm:$0xff]
    %v1008 = vld [vmem:[#allocation4 + $0x3f8] sm:$0xff]
    %v1009 = vld [vmem:[#allocation4 + $0x400] sm:$0xff]
    %v1010 = vld [vmem:[#allocation4 + $0x408] sm:$0xff]
    %v1011 = vld [vmem:[#allocation4 + $0x410] sm:$0xff]
    %v1012 = vld [vmem:[#allocation4 + $0x418] sm:$0xff]
    %v1013 = vld [vmem:[#allocation4 + $0x420] sm:$0xff]
    %v1014 = vld [vmem:[#allocation4 + $0x428] sm:$0xff]
    %v1015 = vld [vmem:[#allocation4 + $0x430] sm:$0xff]
    %v1016 = vld [vmem:[#allocation4 + $0x438] sm:$0xff]
    %v1017 = vld [vmem:[#allocation4 + $0x440] sm:$0xff]
    %v1018 = vld [vmem:[#allocation4 + $0x448] sm:$0xff]
    %v1019 = vld [vmem:[#allocation4 + $0x450] sm:$0xff]
    %v1020 = vld [vmem:[#allocation4 + $0x458] sm:$0xff]
    %v1021 = vld [vmem:[#allocation4 + $0x460] sm:$0xff]
    %v1022 = vld [vmem:[#allocation4 + $0x468] sm:$0xff]
    %v1023 = vld [vmem:[#allocation4 + $0x470] sm:$0xff]
    %v1024 = vld [vmem:[#allocation4 + $0x478] sm:$0xff]
    %v1025 = vld [vmem:[#allocation4 + $0x480] sm:$0xff]
    %v1026 = vld [vmem:[#allocation4 + $0x488] sm:$0xff]
    %v1027 = vld [vmem:[#allocation4 + $0x490] sm:$0xff]
    %v1028 = vld [vmem:[#allocation4 + $0x498] sm:$0xff]
    %v1029 = vld [vmem:[#allocation4 + $0x4a0] sm:$0xff]
    %v1030 = vld [vmem:[#allocation4 + $0x4a8] sm:$0xff]
    %v1031 = vld [vmem:[#allocation4 + $0x4b0] sm:$0xff]
    %v1032 = vld [vmem:[#allocation4 + $0x4b8] sm:$0xff]
    %v1033 = vld [vmem:[#allocation4 + $0x4c0] sm:$0xff]
    %v1034 = vld [vmem:[#allocation4 + $0x4c8] sm:$0xff]
    %v1035 = vld [vmem:[#allocation4 + $0x4d0] sm:$0xff]
    %v1036 = vld [vmem:[#allocation4 + $0x4d8] sm:$0xff]
    %v1037 = vld [vmem:[#allocation4 + $0x4e0] sm:$0xff]
    %v1038 = vld [vmem:[#allocation4 + $0x4e8] sm:$0xff]
    %v1039 = vld [vmem:[#allocation4 + $0x4f0] sm:$0xff]
    %v1040 = vld [vmem:[#allocation4 + $0x4f8] sm:$0xff]
    %v1041 = vld [vmem:[#allocation4 + $0x500] sm:$0xff]
    %v1042 = vld [vmem:[#allocation4 + $0x508] sm:$0xff]
    %v1043 = vld [vmem:[#allocation4 + $0x510] sm:$0xff]
    %v1044 = vld [vmem:[#allocation4 + $0x518] sm:$0xff]
    %v1045 = vld [vmem:[#allocation4 + $0x520] sm:$0xff]
    %v1046 = vld [vmem:[#allocation4 + $0x528] sm:$0xff]
    %v1047 = vld [vmem:[#allocation4 + $0x530] sm:$0xff]
    %v1048 = vld [vmem:[#allocation4 + $0x538] sm:$0xff]
    %v1049 = vld [vmem:[#allocation4 + $0x540] sm:$0xff]
    %v1050 = vld [vmem:[#allocation4 + $0x548] sm:$0xff]
    %v1051 = vld [vmem:[#allocation4 + $0x550] sm:$0xff]
    %v1052 = vld [vmem:[#allocation4 + $0x558] sm:$0xff]
    %v1053 = vld [vmem:[#allocation4 + $0x560] sm:$0xff]
    %v1054 = vld [vmem:[#allocation4 + $0x568] sm:$0xff]
    %v1055 = vld [vmem:[#allocation4 + $0x570] sm:$0xff]
    %v1056 = vld [vmem:[#allocation4 + $0x578] sm:$0xff]
    %v1057 = vld [vmem:[#allocation4 + $0x580] sm:$0xff]
    %v1058 = vld [vmem:[#allocation4 + $0x588] sm:$0xff]
    %v1059 = vld [vmem:[#allocation4 + $0x590] sm:$0xff]
    %v1060 = vld [vmem:[#allocation4 + $0x598] sm:$0xff]
    %v1061 = vld [vmem:[#allocation4 + $0x5a0] sm:$0xff]
    %v1062 = vld [vmem:[#allocation4 + $0x5a8] sm:$0xff]
    %v1063 = vld [vmem:[#allocation4 + $0x5b0] sm:$0xff]
    %v1064 = vld [vmem:[#allocation4 + $0x5b8] sm:$0xff]
    %v1065 = vld [vmem:[#allocation4 + $0x5c0] sm:$0xff]
    %v1066 = vld [vmem:[#allocation4 + $0x5c8] sm:$0xff]
    %v1067 = vld [vmem:[#allocation4 + $0x5d0] sm:$0xff]
    %v1068 = vld [vmem:[#allocation4 + $0x5d8] sm:$0xff]
    %v1069 = vld [vmem:[#allocation4 + $0x5e0] sm:$0xff]
    %v1070 = vld [vmem:[#allocation4 + $0x5e8] sm:$0xff]
    %v1071 = vld [vmem:[#allocation4 + $0x5f0] sm:$0xff]
    %v1072 = vld [vmem:[#allocation4 + $0x5f8] sm:$0xff]
    %v1073 = vld [vmem:[#allocation4 + $0x600] sm:$0xff]
    %v1074 = vld [vmem:[#allocation4 + $0x608] sm:$0xff]
    %v1075 = vld [vmem:[#allocation4 + $0x610] sm:$0xff]
    %v1076 = vld [vmem:[#allocation4 + $0x618] sm:$0xff]
    %v1077 = vld [vmem:[#allocation4 + $0x620] sm:$0xff]
    %v1078 = vld [vmem:[#allocation4 + $0x628] sm:$0xff]
    %v1079 = vld [vmem:[#allocation4 + $0x630] sm:$0xff]
    %v1080 = vld [vmem:[#allocation4 + $0x638] sm:$0xff]
    %v1081 = vld [vmem:[#allocation4 + $0x640] sm:$0xff]
    %v1082 = vld [vmem:[#allocation4 + $0x648] sm:$0xff]
    %v1083 = vld [vmem:[#allocation4 + $0x650] sm:$0xff]
    %v1084 = vld [vmem:[#allocation4 + $0x658] sm:$0xff]
    %v1085 = vld [vmem:[#allocation4 + $0x660] sm:$0xff]
    %v1086 = vld [vmem:[#allocation4 + $0x668] sm:$0xff]
    %v1087 = vld [vmem:[#allocation4 + $0x670] sm:$0xff]
    %v1088 = vld [vmem:[#allocation4 + $0x678] sm:$0xff]
    %v1089 = vld [vmem:[#allocation4 + $0x680] sm:$0xff]
    %v1090 = vld [vmem:[#allocation4 + $0x688] sm:$0xff]
    %v1091 = vld [vmem:[#allocation4 + $0x690] sm:$0xff]
    %v1092 = vld [vmem:[#allocation4 + $0x698] sm:$0xff]
    %v1093 = vld [vmem:[#allocation4 + $0x6a0] sm:$0xff]
    %v1094 = vld [vmem:[#allocation4 + $0x6a8] sm:$0xff]
    %v1095 = vld [vmem:[#allocation4 + $0x6b0] sm:$0xff]
    %v1096 = vld [vmem:[#allocation4 + $0x6b8] sm:$0xff]
    %v1097 = vld [vmem:[#allocation4 + $0x6c0] sm:$0xff]
    %v1098 = vld [vmem:[#allocation4 + $0x6c8] sm:$0xff]
    %v1099 = vld [vmem:[#allocation4 + $0x6d0] sm:$0xff]
    %v1100 = vld [vmem:[#allocation4 + $0x6d8] sm:$0xff]
    %v1101 = vld [vmem:[#allocation4 + $0x6e0] sm:$0xff]
    %v1102 = vld [vmem:[#allocation4 + $0x6e8] sm:$0xff]
    %v1103 = vld [vmem:[#allocation4 + $0x6f0] sm:$0xff]
    %v1104 = vld [vmem:[#allocation4 + $0x6f8] sm:$0xff]
    %v1105 = vld [vmem:[#allocation4 + $0x700] sm:$0xff]
    %v1106 = vld [vmem:[#allocation4 + $0x708] sm:$0xff]
    %v1107 = vld [vmem:[#allocation4 + $0x710] sm:$0xff]
    %v1108 = vld [vmem:[#allocation4 + $0x718] sm:$0xff]
    %v1109 = vld [vmem:[#allocation4 + $0x720] sm:$0xff]
    %v1110 = vld [vmem:[#allocation4 + $0x728] sm:$0xff]
    %v1111 = vld [vmem:[#allocation4 + $0x730] sm:$0xff]
    %v1112 = vld [vmem:[#allocation4 + $0x738] sm:$0xff]
    %v1113 = vld [vmem:[#allocation4 + $0x740] sm:$0xff]
    %v1114 = vld [vmem:[#allocation4 + $0x748] sm:$0xff]
    %v1115 = vld [vmem:[#allocation4 + $0x750] sm:$0xff]
    %v1116 = vld [vmem:[#allocation4 + $0x758] sm:$0xff]
    %v1117 = vld [vmem:[#allocation4 + $0x760] sm:$0xff]
    %v1118 = vld [vmem:[#allocation4 + $0x768] sm:$0xff]
    %v1119 = vld [vmem:[#allocation4 + $0x770] sm:$0xff]
    %v1120 = vld [vmem:[#allocation4 + $0x778] sm:$0xff]
    %v1121 = vld [vmem:[#allocation4 + $0x780] sm:$0xff]
    %v1122 = vld [vmem:[#allocation4 + $0x788] sm:$0xff]
    %v1123 = vld [vmem:[#allocation4 + $0x790] sm:$0xff]
    %v1124 = vld [vmem:[#allocation4 + $0x798] sm:$0xff]
    %v1125 = vld [vmem:[#allocation4 + $0x7a0] sm:$0xff]
    %v1126 = vld [vmem:[#allocation4 + $0x7a8] sm:$0xff]
    %v1127 = vld [vmem:[#allocation4 + $0x7b0] sm:$0xff]
    %v1128 = vld [vmem:[#allocation4 + $0x7b8] sm:$0xff]
    %v1129 = vld [vmem:[#allocation4 + $0x7c0] sm:$0xff]
    %v1130 = vld [vmem:[#allocation4 + $0x7c8] sm:$0xff]
    %v1131 = vld [vmem:[#allocation4 + $0x7d0] sm:$0xff]
    %v1132 = vld [vmem:[#allocation4 + $0x7d8] sm:$0xff]
    %v1133 = vld [vmem:[#allocation4 + $0x7e0] sm:$0xff]
    %v1134 = vld [vmem:[#allocation4 + $0x7e8] sm:$0xff]
    %v1135 = vld [vmem:[#allocation4 + $0x7f0] sm:$0xff]
    %v1136 = vld [vmem:[#allocation4 + $0x7f8] sm:$0xff]
    %v1137 = vld [vmem:[#allocation4 + $0x800] sm:$0xff]
    %v1138 = vld [vmem:[#allocation4 + $0x808] sm:$0xff]
    %v1139 = vld [vmem:[#allocation4 + $0x810] sm:$0xff]
    %v1140 = vld [vmem:[#allocation4 + $0x818] sm:$0xff]
    %v1141 = vld [vmem:[#allocation4 + $0x820] sm:$0xff]
    %v1142 = vld [vmem:[#allocation4 + $0x828] sm:$0xff]
    %v1143 = vld [vmem:[#allocation4 + $0x830] sm:$0xff]
    %v1144 = vld [vmem:[#allocation4 + $0x838] sm:$0xff]
    %v1145 = vld [vmem:[#allocation4 + $0x840] sm:$0xff]
    %v1146 = vld [vmem:[#allocation4 + $0x848] sm:$0xff]
    %v1147 = vld [vmem:[#allocation4 + $0x850] sm:$0xff]
    %v1148 = vld [vmem:[#allocation4 + $0x858] sm:$0xff]
    %v1149 = vld [vmem:[#allocation4 + $0x860] sm:$0xff]
    %v1150 = vld [vmem:[#allocation4 + $0x868] sm:$0xff]
    %v1151 = vld [vmem:[#allocation4 + $0x870] sm:$0xff]
    %v1152 = vld [vmem:[#allocation4 + $0x878] sm:$0xff]
    %v1153 = vld [vmem:[#allocation4 + $0x880] sm:$0xff]
    %v1154 = vld [vmem:[#allocation4 + $0x888] sm:$0xff]
    %v1155 = vld [vmem:[#allocation4 + $0x890] sm:$0xff]
    %v1156 = vld [vmem:[#allocation4 + $0x898] sm:$0xff]
    %v1157 = vld [vmem:[#allocation4 + $0x8a0] sm:$0xff]
    %v1158 = vld [vmem:[#allocation4 + $0x8a8] sm:$0xff]
    %v1159 = vld [vmem:[#allocation4 + $0x8b0] sm:$0xff]
    %v1160 = vld [vmem:[#allocation4 + $0x8b8] sm:$0xff]
    %v1161 = vld [vmem:[#allocation4 + $0x8c0] sm:$0xff]
    %v1162 = vld [vmem:[#allocation4 + $0x8c8] sm:$0xff]
    %v1163 = vld [vmem:[#allocation4 + $0x8d0] sm:$0xff]
    %v1164 = vld [vmem:[#allocation4 + $0x8d8] sm:$0xff]
    %v1165 = vld [vmem:[#allocation4 + $0x8e0] sm:$0xff]
    %v1166 = vld [vmem:[#allocation4 + $0x8e8] sm:$0xff]
    %v1167 = vld [vmem:[#allocation4 + $0x8f0] sm:$0xff]
    %v1168 = vld [vmem:[#allocation4 + $0x8f8] sm:$0xff]
    %v1169 = vld [vmem:[#allocation4 + $0x900] sm:$0xff]
    %v1170 = vld [vmem:[#allocation4 + $0x908] sm:$0xff]
    %v1171 = vld [vmem:[#allocation4 + $0x910] sm:$0xff]
    %v1172 = vld [vmem:[#allocation4 + $0x918] sm:$0xff]
    %v1173 = vld [vmem:[#allocation4 + $0x920] sm:$0xff]
    %v1174 = vld [vmem:[#allocation4 + $0x928] sm:$0xff]
    %v1175 = vld [vmem:[#allocation4 + $0x930] sm:$0xff]
    %v1176 = vld [vmem:[#allocation4 + $0x938] sm:$0xff]
    %v1177 = vld [vmem:[#allocation4 + $0x940] sm:$0xff]
    %v1178 = vld [vmem:[#allocation4 + $0x948] sm:$0xff]
    %v1179 = vld [vmem:[#allocation4 + $0x950] sm:$0xff]
    %v1180 = vld [vmem:[#allocation4 + $0x958] sm:$0xff]
    %v1181 = vld [vmem:[#allocation4 + $0x960] sm:$0xff]
    %v1182 = vld [vmem:[#allocation4 + $0x968] sm:$0xff]
    %v1183 = vld [vmem:[#allocation4 + $0x970] sm:$0xff]
    %v1184 = vld [vmem:[#allocation4 + $0x978] sm:$0xff]
    %v1185 = vld [vmem:[#allocation4 + $0x980] sm:$0xff]
    %v1186 = vld [vmem:[#allocation4 + $0x988] sm:$0xff]
    %v1187 = vld [vmem:[#allocation4 + $0x990] sm:$0xff]
    %v1188 = vld [vmem:[#allocation4 + $0x998] sm:$0xff]
    %v1189 = vld [vmem:[#allocation4 + $0x9a0] sm:$0xff]
    %v1190 = vld [vmem:[#allocation4 + $0x9a8] sm:$0xff]
    %v1191 = vld [vmem:[#allocation4 + $0x9b0] sm:$0xff]
    %v1192 = vld [vmem:[#allocation4 + $0x9b8] sm:$0xff]
    %v1193 = vld [vmem:[#allocation4 + $0x9c0] sm:$0xff]
    %v1194 = vld [vmem:[#allocation4 + $0x9c8] sm:$0xff]
    %v1195 = vld [vmem:[#allocation4 + $0x9d0] sm:$0xff]
    %v1196 = vld [vmem:[#allocation4 + $0x9d8] sm:$0xff]
    %v1197 = vld [vmem:[#allocation4 + $0x9e0] sm:$0xff]
    %v1198 = vld [vmem:[#allocation4 + $0x9e8] sm:$0xff]
    %v1199 = vld [vmem:[#allocation4 + $0x9f0] sm:$0xff]
    %v1200 = vld [vmem:[#allocation4 + $0x9f8] sm:$0xff]
    %v1201 = vld [vmem:[#allocation4 + $0xa00] sm:$0xff]
    %v1202 = vld [vmem:[#allocation4 + $0xa08] sm:$0xff]
    %v1203 = vld [vmem:[#allocation4 + $0xa10] sm:$0xff]
    %v1204 = vld [vmem:[#allocation4 + $0xa18] sm:$0xff]
    %v1205 = vld [vmem:[#allocation4 + $0xa20] sm:$0xff]
    %v1206 = vld [vmem:[#allocation4 + $0xa28] sm:$0xff]
    %v1207 = vld [vmem:[#allocation4 + $0xa30] sm:$0xff]
    %v1208 = vld [vmem:[#allocation4 + $0xa38] sm:$0xff]
    %v1209 = vld [vmem:[#allocation4 + $0xa40] sm:$0xff]
    %v1210 = vld [vmem:[#allocation4 + $0xa48] sm:$0xff]
    %v1211 = vld [vmem:[#allocation4 + $0xa50] sm:$0xff]
    %v1212 = vld [vmem:[#allocation4 + $0xa58] sm:$0xff]
    %v1213 = vld [vmem:[#allocation4 + $0xa60] sm:$0xff]
    %v1214 = vld [vmem:[#allocation4 + $0xa68] sm:$0xff]
    %v1215 = vld [vmem:[#allocation4 + $0xa70] sm:$0xff]
    %v1216 = vld [vmem:[#allocation4 + $0xa78] sm:$0xff]
    %v1217 = vld [vmem:[#allocation4 + $0xa80] sm:$0xff]
    %v1218 = vld [vmem:[#allocation4 + $0xa88] sm:$0xff]
    %v1219 = vld [vmem:[#allocation4 + $0xa90] sm:$0xff]
    %v1220 = vld [vmem:[#allocation4 + $0xa98] sm:$0xff]
    %v1221 = vld [vmem:[#allocation4 + $0xaa0] sm:$0xff]
    %v1222 = vld [vmem:[#allocation4 + $0xaa8] sm:$0xff]
    %v1223 = vld [vmem:[#allocation4 + $0xab0] sm:$0xff]
    %v1224 = vld [vmem:[#allocation4 + $0xab8] sm:$0xff]
    %v1225 = vld [vmem:[#allocation4 + $0xac0] sm:$0xff]
    %v1226 = vld [vmem:[#allocation4 + $0xac8] sm:$0xff]
    %v1227 = vld [vmem:[#allocation4 + $0xad0] sm:$0xff]
    %v1228 = vld [vmem:[#allocation4 + $0xad8] sm:$0xff]
    %v1229 = vld [vmem:[#allocation4 + $0xae0] sm:$0xff]
    %v1230 = vld [vmem:[#allocation4 + $0xae8] sm:$0xff]
    %v1231 = vld [vmem:[#allocation4 + $0xaf0] sm:$0xff]
    %v1232 = vld [vmem:[#allocation4 + $0xaf8] sm:$0xff]
    %v1233 = vld [vmem:[#allocation4 + $0xb00] sm:$0xff]
    %v1234 = vld [vmem:[#allocation4 + $0xb08] sm:$0xff]
    %v1235 = vld [vmem:[#allocation4 + $0xb10] sm:$0xff]
    %v1236 = vld [vmem:[#allocation4 + $0xb18] sm:$0xff]
    %v1237 = vld [vmem:[#allocation4 + $0xb20] sm:$0xff]
    %v1238 = vld [vmem:[#allocation4 + $0xb28] sm:$0xff]
    %v1239 = vld [vmem:[#allocation4 + $0xb30] sm:$0xff]
    %v1240 = vld [vmem:[#allocation4 + $0xb38] sm:$0xff]
    %v1241 = vld [vmem:[#allocation4 + $0xb40] sm:$0xff]
    %v1242 = vld [vmem:[#allocation4 + $0xb48] sm:$0xff]
    %v1243 = vld [vmem:[#allocation4 + $0xb50] sm:$0xff]
    %v1244 = vld [vmem:[#allocation4 + $0xb58] sm:$0xff]
    %v1245 = vld [vmem:[#allocation4 + $0xb60] sm:$0xff]
    %v1246 = vld [vmem:[#allocation4 + $0xb68] sm:$0xff]
    %v1247 = vld [vmem:[#allocation4 + $0xb70] sm:$0xff]
    %v1248 = vld [vmem:[#allocation4 + $0xb78] sm:$0xff]
    %v1249 = vld [vmem:[#allocation4 + $0xb80] sm:$0xff]
    %v1250 = vld [vmem:[#allocation4 + $0xb88] sm:$0xff]
    %v1251 = vld [vmem:[#allocation4 + $0xb90] sm:$0xff]
    %v1252 = vld [vmem:[#allocation4 + $0xb98] sm:$0xff]
    %v1253 = vld [vmem:[#allocation4 + $0xba0] sm:$0xff]
    %v1254 = vld [vmem:[#allocation4 + $0xba8] sm:$0xff]
    %v1255 = vld [vmem:[#allocation4 + $0xbb0] sm:$0xff]
    %v1256 = vld [vmem:[#allocation4 + $0xbb8] sm:$0xff]
    %v1257 = vld [vmem:[#allocation4 + $0xbc0] sm:$0xff]
    %v1258 = vld [vmem:[#allocation4 + $0xbc8] sm:$0xff]
    %v1259 = vld [vmem:[#allocation4 + $0xbd0] sm:$0xff]
    %v1260 = vld [vmem:[#allocation4 + $0xbd8] sm:$0xff]
    %v1261 = vld [vmem:[#allocation4 + $0xbe0] sm:$0xff]
    %v1262 = vld [vmem:[#allocation4 + $0xbe8] sm:$0xff]
    %v1263 = vld [vmem:[#allocation4 + $0xbf0] sm:$0xff]
    %v1264 = vld [vmem:[#allocation4 + $0xbf8] sm:$0xff]
    %v1265 = vld [vmem:[#allocation4 + $0xc00] sm:$0xff]
    %v1266 = vld [vmem:[#allocation4 + $0xc08] sm:$0xff]
    %v1267 = vld [vmem:[#allocation4 + $0xc10] sm:$0xff]
    %v1268 = vld [vmem:[#allocation4 + $0xc18] sm:$0xff]
    %v1269 = vld [vmem:[#allocation4 + $0xc20] sm:$0xff]
    %v1270 = vld [vmem:[#allocation4 + $0xc28] sm:$0xff]
    %v1271 = vld [vmem:[#allocation4 + $0xc30] sm:$0xff]
    %v1272 = vld [vmem:[#allocation4 + $0xc38] sm:$0xff]
    %v1273 = vld [vmem:[#allocation4 + $0xc40] sm:$0xff]
    %v1274 = vld [vmem:[#allocation4 + $0xc48] sm:$0xff]
    %v1275 = vld [vmem:[#allocation4 + $0xc50] sm:$0xff]
    %v1276 = vld [vmem:[#allocation4 + $0xc58] sm:$0xff]
    %v1277 = vld [vmem:[#allocation4 + $0xc60] sm:$0xff]
    %v1278 = vld [vmem:[#allocation4 + $0xc68] sm:$0xff]
    %v1279 = vld [vmem:[#allocation4 + $0xc70] sm:$0xff]
    %v1280 = vld [vmem:[#allocation4 + $0xc78] sm:$0xff]
    %v1281 = vld [vmem:[#allocation4 + $0xc80] sm:$0xff]
    %v1282 = vld [vmem:[#allocation4 + $0xc88] sm:$0xff]
    %v1283 = vld [vmem:[#allocation4 + $0xc90] sm:$0xff]
    %v1284 = vld [vmem:[#allocation4 + $0xc98] sm:$0xff]
    %v1285 = vld [vmem:[#allocation4 + $0xca0] sm:$0xff]
    %v1286 = vld [vmem:[#allocation4 + $0xca8] sm:$0xff]
    %v1287 = vld [vmem:[#allocation4 + $0xcb0] sm:$0xff]
    %v1288 = vld [vmem:[#allocation4 + $0xcb8] sm:$0xff]
    %v1289 = vld [vmem:[#allocation4 + $0xcc0] sm:$0xff]
    %v1290 = vld [vmem:[#allocation4 + $0xcc8] sm:$0xff]
    %v1291 = vld [vmem:[#allocation4 + $0xcd0] sm:$0xff]
    %v1292 = vld [vmem:[#allocation4 + $0xcd8] sm:$0xff]
    %v1293 = vld [vmem:[#allocation4 + $0xce0] sm:$0xff]
    %v1294 = vld [vmem:[#allocation4 + $0xce8] sm:$0xff]
    %v1295 = vld [vmem:[#allocation4 + $0xcf0] sm:$0xff]
    %v1296 = vld [vmem:[#allocation4 + $0xcf8] sm:$0xff]
    %v1297 = vld [vmem:[#allocation4 + $0xd00] sm:$0xff]
    %v1298 = vld [vmem:[#allocation4 + $0xd08] sm:$0xff]
    %v1299 = vld [vmem:[#allocation4 + $0xd10] sm:$0xff]
    %v1300 = vld [vmem:[#allocation4 + $0xd18] sm:$0xff]
    %v1301 = vld [vmem:[#allocation4 + $0xd20] sm:$0xff]
    %v1302 = vld [vmem:[#allocation4 + $0xd28] sm:$0xff]
    %v1303 = vld [vmem:[#allocation4 + $0xd30] sm:$0xff]
    %v1304 = vld [vmem:[#allocation4 + $0xd38] sm:$0xff]
    %v1305 = vld [vmem:[#allocation4 + $0xd40] sm:$0xff]
    %v1306 = vld [vmem:[#allocation4 + $0xd48] sm:$0xff]
    %v1307 = vld [vmem:[#allocation4 + $0xd50] sm:$0xff]
    %v1308 = vld [vmem:[#allocation4 + $0xd58] sm:$0xff]
    %v1309 = vld [vmem:[#allocation4 + $0xd60] sm:$0xff]
    %v1310 = vld [vmem:[#allocation4 + $0xd68] sm:$0xff]
    %v1311 = vld [vmem:[#allocation4 + $0xd70] sm:$0xff]
    %v1312 = vld [vmem:[#allocation4 + $0xd78] sm:$0xff]
    %v1313 = vld [vmem:[#allocation4 + $0xd80] sm:$0xff]
    %v1314 = vld [vmem:[#allocation4 + $0xd88] sm:$0xff]
    %v1315 = vld [vmem:[#allocation4 + $0xd90] sm:$0xff]
    %v1316 = vld [vmem:[#allocation4 + $0xd98] sm:$0xff]
    %v1317 = vld [vmem:[#allocation4 + $0xda0] sm:$0xff]
    %v1318 = vld [vmem:[#allocation4 + $0xda8] sm:$0xff]
    %v1319 = vld [vmem:[#allocation4 + $0xdb0] sm:$0xff]
    %v1320 = vld [vmem:[#allocation4 + $0xdb8] sm:$0xff]
    %v1321 = vld [vmem:[#allocation4 + $0xdc0] sm:$0xff]
    %v1322 = vld [vmem:[#allocation4 + $0xdc8] sm:$0xff]
    %v1323 = vld [vmem:[#allocation4 + $0xdd0] sm:$0xff]
    %v1324 = vld [vmem:[#allocation4 + $0xdd8] sm:$0xff]
    %v1325 = vld [vmem:[#allocation4 + $0xde0] sm:$0xff]
    %v1326 = vld [vmem:[#allocation4 + $0xde8] sm:$0xff]
    %v1327 = vld [vmem:[#allocation4 + $0xdf0] sm:$0xff]
    %v1328 = vld [vmem:[#allocation4 + $0xdf8] sm:$0xff]
    %v1329 = vld [vmem:[#allocation4 + $0xe00] sm:$0xff]
    %v1330 = vld [vmem:[#allocation4 + $0xe08] sm:$0xff]
    %v1331 = vld [vmem:[#allocation4 + $0xe10] sm:$0xff]
    %v1332 = vld [vmem:[#allocation4 + $0xe18] sm:$0xff]
    %v1333 = vld [vmem:[#allocation4 + $0xe20] sm:$0xff]
    %v1334 = vld [vmem:[#allocation4 + $0xe28] sm:$0xff]
    %v1335 = vld [vmem:[#allocation4 + $0xe30] sm:$0xff]
    %v1336 = vld [vmem:[#allocation4 + $0xe38] sm:$0xff]
    %v1337 = vld [vmem:[#allocation4 + $0xe40] sm:$0xff]
    %v1338 = vld [vmem:[#allocation4 + $0xe48] sm:$0xff]
    %v1339 = vld [vmem:[#allocation4 + $0xe50] sm:$0xff]
    %v1340 = vld [vmem:[#allocation4 + $0xe58] sm:$0xff]
    %v1341 = vld [vmem:[#allocation4 + $0xe60] sm:$0xff]
    %v1342 = vld [vmem:[#allocation4 + $0xe68] sm:$0xff]
    %v1343 = vld [vmem:[#allocation4 + $0xe70] sm:$0xff]
    %v1344 = vld [vmem:[#allocation4 + $0xe78] sm:$0xff]
    %v1345 = vld [vmem:[#allocation4 + $0xe80] sm:$0xff]
    %v1346 = vld [vmem:[#allocation4 + $0xe88] sm:$0xff]
    %v1347 = vld [vmem:[#allocation4 + $0xe90] sm:$0xff]
    %v1348 = vld [vmem:[#allocation4 + $0xe98] sm:$0xff]
    %v1349 = vld [vmem:[#allocation4 + $0xea0] sm:$0xff]
    %v1350 = vld [vmem:[#allocation4 + $0xea8] sm:$0xff]
    %v1351 = vld [vmem:[#allocation4 + $0xeb0] sm:$0xff]
    %v1352 = vld [vmem:[#allocation4 + $0xeb8] sm:$0xff]
    %v1353 = vld [vmem:[#allocation4 + $0xec0] sm:$0xff]
    %v1354 = vld [vmem:[#allocation4 + $0xec8] sm:$0xff]
    %v1355 = vld [vmem:[#allocation4 + $0xed0] sm:$0xff]
    %v1356 = vld [vmem:[#allocation4 + $0xed8] sm:$0xff]
    %v1357 = vld [vmem:[#allocation4 + $0xee0] sm:$0xff]
    %v1358 = vld [vmem:[#allocation4 + $0xee8] sm:$0xff]
    %v1359 = vld [vmem:[#allocation4 + $0xef0] sm:$0xff]
    %v1360 = vld [vmem:[#allocation4 + $0xef8] sm:$0xff]
    %v1361 = vld [vmem:[#allocation4 + $0xf00] sm:$0xff]
    %v1362 = vld [vmem:[#allocation4 + $0xf08] sm:$0xff]
    %v1363 = vld [vmem:[#allocation4 + $0xf10] sm:$0xff]
    %v1364 = vld [vmem:[#allocation4 + $0xf18] sm:$0xff]
    %v1365 = vld [vmem:[#allocation4 + $0xf20] sm:$0xff]
    %v1366 = vld [vmem:[#allocation4 + $0xf28] sm:$0xff]
    %v1367 = vld [vmem:[#allocation4 + $0xf30] sm:$0xff]
    %v1368 = vld [vmem:[#allocation4 + $0xf38] sm:$0xff]
    %v1369 = vld [vmem:[#allocation4 + $0xf40] sm:$0xff]
    %v1370 = vld [vmem:[#allocation4 + $0xf48] sm:$0xff]
    %v1371 = vld [vmem:[#allocation4 + $0xf50] sm:$0xff]
    %v1372 = vld [vmem:[#allocation4 + $0xf58] sm:$0xff]
    %v1373 = vld [vmem:[#allocation4 + $0xf60] sm:$0xff]
    %v1374 = vld [vmem:[#allocation4 + $0xf68] sm:$0xff]
    %v1375 = vld [vmem:[#allocation4 + $0xf70] sm:$0xff]
    %v1376 = vld [vmem:[#allocation4 + $0xf78] sm:$0xff]
    %v1377 = vld [vmem:[#allocation4 + $0xf80] sm:$0xff]
    %v1378 = vld [vmem:[#allocation4 + $0xf88] sm:$0xff]
    %v1379 = vld [vmem:[#allocation4 + $0xf90] sm:$0xff]
    %v1380 = vld [vmem:[#allocation4 + $0xf98] sm:$0xff]
    %v1381 = vld [vmem:[#allocation4 + $0xfa0] sm:$0xff]
    %v1382 = vld [vmem:[#allocation4 + $0xfa8] sm:$0xff]
    %v1383 = vld [vmem:[#allocation4 + $0xfb0] sm:$0xff]
    %v1384 = vld [vmem:[#allocation4 + $0xfb8] sm:$0xff]
    %v1385 = vld [vmem:[#allocation4 + $0xfc0] sm:$0xff]
    %v1386 = vld [vmem:[#allocation4 + $0xfc8] sm:$0xff]
    %v1387 = vld [vmem:[#allocation4 + $0xfd0] sm:$0xff]
    %v1388 = vld [vmem:[#allocation4 + $0xfd8] sm:$0xff]
    %v1389 = vld [vmem:[#allocation4 + $0xfe0] sm:$0xff]
    %v1390 = vld [vmem:[#allocation4 + $0xfe8] sm:$0xff]
    %v1391 = vld [vmem:[#allocation4 + $0xff0] sm:$0xff]
    %v1392 = vld [vmem:[#allocation4 + $0xff8] sm:$0xff]
    %v1393 = vld [vmem:[#allocation4 + $0x1000] sm:$0xff]
    %v1394 = vld [vmem:[#allocation4 + $0x1008] sm:$0xff]
    %v1395 = vld [vmem:[#allocation4 + $0x1010] sm:$0xff]
    %v1396 = vld [vmem:[#allocation4 + $0x1018] sm:$0xff]
    %v1397 = vld [vmem:[#allocation4 + $0x1020] sm:$0xff]
    %v1398 = vld [vmem:[#allocation4 + $0x1028] sm:$0xff]
    %v1399 = vld [vmem:[#allocation4 + $0x1030] sm:$0xff]
    %v1400 = vld [vmem:[#allocation4 + $0x1038] sm:$0xff]
    %v1401 = vld [vmem:[#allocation4 + $0x1040] sm:$0xff]
    %v1402 = vld [vmem:[#allocation4 + $0x1048] sm:$0xff]
    %v1403 = vld [vmem:[#allocation4 + $0x1050] sm:$0xff]
    %v1404 = vld [vmem:[#allocation4 + $0x1058] sm:$0xff]
    %v1405 = vld [vmem:[#allocation4 + $0x1060] sm:$0xff]
    %v1406 = vld [vmem:[#allocation4 + $0x1068] sm:$0xff]
    %v1407 = vld [vmem:[#allocation4 + $0x1070] sm:$0xff]
    %v1408 = vld [vmem:[#allocation4 + $0x1078] sm:$0xff]
    %v1409 = vld [vmem:[#allocation4 + $0x1080] sm:$0xff]
    %v1410 = vld [vmem:[#allocation4 + $0x1088] sm:$0xff]
    %v1411 = vld [vmem:[#allocation4 + $0x1090] sm:$0xff]
    %v1412 = vld [vmem:[#allocation4 + $0x1098] sm:$0xff]
    %v1413 = vld [vmem:[#allocation4 + $0x10a0] sm:$0xff]
    %v1414 = vld [vmem:[#allocation4 + $0x10a8] sm:$0xff]
    %v1415 = vld [vmem:[#allocation4 + $0x10b0] sm:$0xff]
    %v1416 = vld [vmem:[#allocation4 + $0x10b8] sm:$0xff]
    %v1417 = vld [vmem:[#allocation4 + $0x10c0] sm:$0xff]
    %v1418 = vld [vmem:[#allocation4 + $0x10c8] sm:$0xff]
    %v1419 = vld [vmem:[#allocation4 + $0x10d0] sm:$0xff]
    %v1420 = vld [vmem:[#allocation4 + $0x10d8] sm:$0xff]
    %v1421 = vld [vmem:[#allocation4 + $0x10e0] sm:$0xff]
    %v1422 = vld [vmem:[#allocation4 + $0x10e8] sm:$0xff]
    %v1423 = vld [vmem:[#allocation4 + $0x10f0] sm:$0xff]
    %v1424 = vld [vmem:[#allocation4 + $0x10f8] sm:$0xff]
    %v1425 = vld [vmem:[#allocation4 + $0x1100] sm:$0xff]
    %v1426 = vld [vmem:[#allocation4 + $0x1108] sm:$0xff]
    %v1427 = vld [vmem:[#allocation4 + $0x1110] sm:$0xff]
    %v1428 = vld [vmem:[#allocation4 + $0x1118] sm:$0xff]
    %v1429 = vld [vmem:[#allocation4 + $0x1120] sm:$0xff]
    %v1430 = vld [vmem:[#allocation4 + $0x1128] sm:$0xff]
    %v1431 = vld [vmem:[#allocation4 + $0x1130] sm:$0xff]
    %v1432 = vld [vmem:[#allocation4 + $0x1138] sm:$0xff]
    %v1433 = vld [vmem:[#allocation4 + $0x1140] sm:$0xff]
    %v1434 = vld [vmem:[#allocation4 + $0x1148] sm:$0xff]
    %v1435 = vld [vmem:[#allocation4 + $0x1150] sm:$0xff]
    %v1436 = vld [vmem:[#allocation4 + $0x1158] sm:$0xff]
    %v1437 = vld [vmem:[#allocation4 + $0x1160] sm:$0xff]
    %v1438 = vld [vmem:[#allocation4 + $0x1168] sm:$0xff]
    %v1439 = vld [vmem:[#allocation4 + $0x1170] sm:$0xff]
    %v1440 = vld [vmem:[#allocation4 + $0x1178] sm:$0xff]
    %v1441 = vld [vmem:[#allocation4 + $0x1180] sm:$0xff]
    %v1442 = vld [vmem:[#allocation4 + $0x1188] sm:$0xff]
    %v1443 = vld [vmem:[#allocation4 + $0x1190] sm:$0xff]
    %v1444 = vld [vmem:[#allocation4 + $0x1198] sm:$0xff]
    %v1445 = vld [vmem:[#allocation4 + $0x11a0] sm:$0xff]
    %v1446 = vld [vmem:[#allocation4 + $0x11a8] sm:$0xff]
    %v1447 = vld [vmem:[#allocation4 + $0x11b0] sm:$0xff]
    %v1448 = vld [vmem:[#allocation4 + $0x11b8] sm:$0xff]
    %v1449 = vld [vmem:[#allocation4 + $0x11c0] sm:$0xff]
    %v1450 = vld [vmem:[#allocation4 + $0x11c8] sm:$0xff]
    %v1451 = vld [vmem:[#allocation4 + $0x11d0] sm:$0xff]
    %v1452 = vld [vmem:[#allocation4 + $0x11d8] sm:$0xff]
    %v1453 = vld [vmem:[#allocation4 + $0x11e0] sm:$0xff]
    %v1454 = vld [vmem:[#allocation4 + $0x11e8] sm:$0xff]
    %v1455 = vld [vmem:[#allocation4 + $0x11f0] sm:$0xff]
    %v1456 = vld [vmem:[#allocation4 + $0x11f8] sm:$0xff]
    %v1457 = vld [vmem:[#allocation4 + $0x1200] sm:$0xff]
    %v1458 = vld [vmem:[#allocation4 + $0x1208] sm:$0xff]
    %v1459 = vld [vmem:[#allocation4 + $0x1210] sm:$0xff]
    %v1460 = vld [vmem:[#allocation4 + $0x1218] sm:$0xff]
    %v1461 = vld [vmem:[#allocation4 + $0x1220] sm:$0xff]
    %v1462 = vld [vmem:[#allocation4 + $0x1228] sm:$0xff]
    %v1463 = vld [vmem:[#allocation4 + $0x1230] sm:$0xff]
    %v1464 = vld [vmem:[#allocation4 + $0x1238] sm:$0xff]
    %v1465 = vld [vmem:[#allocation4 + $0x1240] sm:$0xff]
    %v1466 = vld [vmem:[#allocation4 + $0x1248] sm:$0xff]
    %v1467 = vld [vmem:[#allocation4 + $0x1250] sm:$0xff]
    %v1468 = vld [vmem:[#allocation4 + $0x1258] sm:$0xff]
    %v1469 = vld [vmem:[#allocation4 + $0x1260] sm:$0xff]
    %v1470 = vld [vmem:[#allocation4 + $0x1268] sm:$0xff]
    %v1471 = vld [vmem:[#allocation4 + $0x1270] sm:$0xff]
    %v1472 = vld [vmem:[#allocation4 + $0x1278] sm:$0xff]
    %v1473 = vld [vmem:[#allocation4 + $0x1280] sm:$0xff]
    %v1474 = vld [vmem:[#allocation4 + $0x1288] sm:$0xff]
    %v1475 = vld [vmem:[#allocation4 + $0x1290] sm:$0xff]
    %v1476 = vld [vmem:[#allocation4 + $0x1298] sm:$0xff]
    %v1477 = vld [vmem:[#allocation4 + $0x12a0] sm:$0xff]
    %v1478 = vld [vmem:[#allocation4 + $0x12a8] sm:$0xff]
    %v1479 = vld [vmem:[#allocation4 + $0x12b0] sm:$0xff]
    %v1480 = vld [vmem:[#allocation4 + $0x12b8] sm:$0xff]
    %v1481 = vld [vmem:[#allocation4 + $0x12c0] sm:$0xff]
    %v1482 = vld [vmem:[#allocation4 + $0x12c8] sm:$0xff]
    %v1483 = vld [vmem:[#allocation4 + $0x12d0] sm:$0xff]
    %v1484 = vld [vmem:[#allocation4 + $0x12d8] sm:$0xff]
    %v1485 = vld [vmem:[#allocation4 + $0x12e0] sm:$0xff]
    %v1486 = vld [vmem:[#allocation4 + $0x12e8] sm:$0xff]
    %v1487 = vld [vmem:[#allocation4 + $0x12f0] sm:$0xff]
    %v1488 = vld [vmem:[#allocation4 + $0x12f8] sm:$0xff]
    %v1489 = vld [vmem:[#allocation4 + $0x1300] sm:$0xff]
    %v1490 = vld [vmem:[#allocation4 + $0x1308] sm:$0xff]
    %v1491 = vld [vmem:[#allocation4 + $0x1310] sm:$0xff]
    %v1492 = vld [vmem:[#allocation4 + $0x1318] sm:$0xff]
    %v1493 = vld [vmem:[#allocation4 + $0x1320] sm:$0xff]
    %v1494 = vld [vmem:[#allocation4 + $0x1328] sm:$0xff]
    %v1495 = vld [vmem:[#allocation4 + $0x1330] sm:$0xff]
    %v1496 = vld [vmem:[#allocation4 + $0x1338] sm:$0xff]
    %v1497 = vld [vmem:[#allocation4 + $0x1340] sm:$0xff]
    %v1498 = vld [vmem:[#allocation4 + $0x1348] sm:$0xff]
    %v1499 = vld [vmem:[#allocation4 + $0x1350] sm:$0xff]
    %v1500 = vld [vmem:[#allocation4 + $0x1358] sm:$0xff]
    %v1501 = vld [vmem:[#allocation4 + $0x1360] sm:$0xff]
    %v1502 = vld [vmem:[#allocation4 + $0x1368] sm:$0xff]
    %v1503 = vld [vmem:[#allocation4 + $0x1370] sm:$0xff]
    %v1504 = vld [vmem:[#allocation4 + $0x1378] sm:$0xff]
    %v1505 = vld [vmem:[#allocation4 + $0x1380] sm:$0xff]
    %v1506 = vld [vmem:[#allocation4 + $0x1388] sm:$0xff]
    %v1507 = vld [vmem:[#allocation4 + $0x1390] sm:$0xff]
    %v1508 = vld [vmem:[#allocation4 + $0x1398] sm:$0xff]
    %v1509 = vld [vmem:[#allocation4 + $0x13a0] sm:$0xff]
    %v1510 = vld [vmem:[#allocation4 + $0x13a8] sm:$0xff]
    %v1511 = vld [vmem:[#allocation4 + $0x13b0] sm:$0xff]
    %v1512 = vld [vmem:[#allocation4 + $0x13b8] sm:$0xff]
    %v1513 = vld [vmem:[#allocation4 + $0x13c0] sm:$0xff]
    %v1514 = vld [vmem:[#allocation4 + $0x13c8] sm:$0xff]
    %v1515 = vld [vmem:[#allocation4 + $0x13d0] sm:$0xff]
    %v1516 = vld [vmem:[#allocation4 + $0x13d8] sm:$0xff]
    %v1517 = vld [vmem:[#allocation4 + $0x13e0] sm:$0xff]
    %v1518 = vld [vmem:[#allocation4 + $0x13e8] sm:$0xff]
    %v1519 = vld [vmem:[#allocation4 + $0x13f0] sm:$0xff]
    %v1520 = vld [vmem:[#allocation4 + $0x13f8] sm:$0xff]
    %v1521 = vld [vmem:[#allocation4 + $0x1400] sm:$0xff]
    %v1522 = vld [vmem:[#allocation4 + $0x1408] sm:$0xff]
    %v1523 = vld [vmem:[#allocation4 + $0x1410] sm:$0xff]
    %v1524 = vld [vmem:[#allocation4 + $0x1418] sm:$0xff]
    %v1525 = vld [vmem:[#allocation4 + $0x1420] sm:$0xff]
    %v1526 = vld [vmem:[#allocation4 + $0x1428] sm:$0xff]
    %v1527 = vld [vmem:[#allocation4 + $0x1430] sm:$0xff]
    %v1528 = vld [vmem:[#allocation4 + $0x1438] sm:$0xff]
    %v1529 = vld [vmem:[#allocation4 + $0x1440] sm:$0xff]
    %v1530 = vld [vmem:[#allocation4 + $0x1448] sm:$0xff]
    %v1531 = vld [vmem:[#allocation4 + $0x1450] sm:$0xff]
    %v1532 = vld [vmem:[#allocation4 + $0x1458] sm:$0xff]
    %v1533 = vld [vmem:[#allocation4 + $0x1460] sm:$0xff]
    %v1534 = vld [vmem:[#allocation4 + $0x1468] sm:$0xff]
    %v1535 = vld [vmem:[#allocation4 + $0x1470] sm:$0xff]
    %v1536 = vld [vmem:[#allocation4 + $0x1478] sm:$0xff]
    %v1537 = vld [vmem:[#allocation4 + $0x1480] sm:$0xff]
    %v1538 = vld [vmem:[#allocation4 + $0x1488] sm:$0xff]
    %v1539 = vld [vmem:[#allocation4 + $0x1490] sm:$0xff]
    %v1540 = vld [vmem:[#allocation4 + $0x1498] sm:$0xff]
    %v1541 = vld [vmem:[#allocation4 + $0x14a0] sm:$0xff]
    %v1542 = vld [vmem:[#allocation4 + $0x14a8] sm:$0xff]
    %v1543 = vld [vmem:[#allocation4 + $0x14b0] sm:$0xff]
    %v1544 = vld [vmem:[#allocation4 + $0x14b8] sm:$0xff]
    %v1545 = vld [vmem:[#allocation4 + $0x14c0] sm:$0xff]
    %v1546 = vld [vmem:[#allocation4 + $0x14c8] sm:$0xff]
    %v1547 = vld [vmem:[#allocation4 + $0x14d0] sm:$0xff]
    %v1548 = vld [vmem:[#allocation4 + $0x14d8] sm:$0xff]
    %v1549 = vld [vmem:[#allocation4 + $0x14e0] sm:$0xff]
    %v1550 = vld [vmem:[#allocation4 + $0x14e8] sm:$0xff]
    %v1551 = vld [vmem:[#allocation4 + $0x14f0] sm:$0xff]
    %v1552 = vld [vmem:[#allocation4 + $0x14f8] sm:$0xff]
    %v1553 = vld [vmem:[#allocation4 + $0x1500] sm:$0xff]
    %v1554 = vld [vmem:[#allocation4 + $0x1508] sm:$0xff]
    %v1555 = vld [vmem:[#allocation4 + $0x1510] sm:$0xff]
    %v1556 = vld [vmem:[#allocation4 + $0x1518] sm:$0xff]
    %v1557 = vld [vmem:[#allocation4 + $0x1520] sm:$0xff]
    %v1558 = vld [vmem:[#allocation4 + $0x1528] sm:$0xff]
    %v1559 = vld [vmem:[#allocation4 + $0x1530] sm:$0xff]
    %v1560 = vld [vmem:[#allocation4 + $0x1538] sm:$0xff]
    %v1561 = vld [vmem:[#allocation4 + $0x1540] sm:$0xff]
    %v1562 = vld [vmem:[#allocation4 + $0x1548] sm:$0xff]
    %v1563 = vld [vmem:[#allocation4 + $0x1550] sm:$0xff]
    %v1564 = vld [vmem:[#allocation4 + $0x1558] sm:$0xff]
    %v1565 = vld [vmem:[#allocation4 + $0x1560] sm:$0xff]
    %v1566 = vld [vmem:[#allocation4 + $0x1568] sm:$0xff]
    %v1567 = vld [vmem:[#allocation4 + $0x1570] sm:$0xff]
    %v1568 = vld [vmem:[#allocation4 + $0x1578] sm:$0xff]
    %v1569 = vld [vmem:[#allocation4 + $0x1580] sm:$0xff]
    %v1570 = vld [vmem:[#allocation4 + $0x1588] sm:$0xff]
    %v1571 = vld [vmem:[#allocation4 + $0x1590] sm:$0xff]
    %v1572 = vld [vmem:[#allocation4 + $0x1598] sm:$0xff]
    %v1573 = vld [vmem:[#allocation4 + $0x15a0] sm:$0xff]
    %v1574 = vld [vmem:[#allocation4 + $0x15a8] sm:$0xff]
    %v1575 = vld [vmem:[#allocation4 + $0x15b0] sm:$0xff]
    %v1576 = vld [vmem:[#allocation4 + $0x15b8] sm:$0xff]
    %v1577 = vld [vmem:[#allocation4 + $0x15c0] sm:$0xff]
    %v1578 = vld [vmem:[#allocation4 + $0x15c8] sm:$0xff]
    %v1579 = vld [vmem:[#allocation4 + $0x15d0] sm:$0xff]
    %v1580 = vld [vmem:[#allocation4 + $0x15d8] sm:$0xff]
    %v1581 = vld [vmem:[#allocation4 + $0x15e0] sm:$0xff]
    %v1582 = vld [vmem:[#allocation4 + $0x15e8] sm:$0xff]
    %v1583 = vld [vmem:[#allocation4 + $0x15f0] sm:$0xff]
    %v1584 = vld [vmem:[#allocation4 + $0x15f8] sm:$0xff]
    %v1585 = vld [vmem:[#allocation4 + $0x1600] sm:$0xff]
    %v1586 = vld [vmem:[#allocation4 + $0x1608] sm:$0xff]
    %v1587 = vld [vmem:[#allocation4 + $0x1610] sm:$0xff]
    %v1588 = vld [vmem:[#allocation4 + $0x1618] sm:$0xff]
    %v1589 = vld [vmem:[#allocation4 + $0x1620] sm:$0xff]
    %v1590 = vld [vmem:[#allocation4 + $0x1628] sm:$0xff]
    %v1591 = vld [vmem:[#allocation4 + $0x1630] sm:$0xff]
    %v1592 = vld [vmem:[#allocation4 + $0x1638] sm:$0xff]
    %v1593 = vld [vmem:[#allocation4 + $0x1640] sm:$0xff]
    %v1594 = vld [vmem:[#allocation4 + $0x1648] sm:$0xff]
    %v1595 = vld [vmem:[#allocation4 + $0x1650] sm:$0xff]
    %v1596 = vld [vmem:[#allocation4 + $0x1658] sm:$0xff]
    %v1597 = vld [vmem:[#allocation4 + $0x1660] sm:$0xff]
    %v1598 = vld [vmem:[#allocation4 + $0x1668] sm:$0xff]
    %v1599 = vld [vmem:[#allocation4 + $0x1670] sm:$0xff]
    %v1600 = vld [vmem:[#allocation4 + $0x1678] sm:$0xff]
    %v1601 = vld [vmem:[#allocation4 + $0x1680] sm:$0xff]
    %v1602 = vld [vmem:[#allocation4 + $0x1688] sm:$0xff]
    %v1603 = vld [vmem:[#allocation4 + $0x1690] sm:$0xff]
    %v1604 = vld [vmem:[#allocation4 + $0x1698] sm:$0xff]
    %v1605 = vld [vmem:[#allocation4 + $0x16a0] sm:$0xff]
    %v1606 = vld [vmem:[#allocation4 + $0x16a8] sm:$0xff]
    %v1607 = vld [vmem:[#allocation4 + $0x16b0] sm:$0xff]
    %v1608 = vld [vmem:[#allocation4 + $0x16b8] sm:$0xff]
    %v1609 = vld [vmem:[#allocation4 + $0x16c0] sm:$0xff]
    %v1610 = vld [vmem:[#allocation4 + $0x16c8] sm:$0xff]
    %v1611 = vld [vmem:[#allocation4 + $0x16d0] sm:$0xff]
    %v1612 = vld [vmem:[#allocation4 + $0x16d8] sm:$0xff]
    %v1613 = vld [vmem:[#allocation4 + $0x16e0] sm:$0xff]
    %v1614 = vld [vmem:[#allocation4 + $0x16e8] sm:$0xff]
    %v1615 = vld [vmem:[#allocation4 + $0x16f0] sm:$0xff]
    %v1616 = vld [vmem:[#allocation4 + $0x16f8] sm:$0xff]
    %v1617 = vld [vmem:[#allocation4 + $0x1700] sm:$0xff]
    %v1618 = vld [vmem:[#allocation4 + $0x1708] sm:$0xff]
    %v1619 = vld [vmem:[#allocation4 + $0x1710] sm:$0xff]
    %v1620 = vld [vmem:[#allocation4 + $0x1718] sm:$0xff]
    %v1621 = vld [vmem:[#allocation4 + $0x1720] sm:$0xff]
    %v1622 = vld [vmem:[#allocation4 + $0x1728] sm:$0xff]
    %v1623 = vld [vmem:[#allocation4 + $0x1730] sm:$0xff]
    %v1624 = vld [vmem:[#allocation4 + $0x1738] sm:$0xff]
    %v1625 = vld [vmem:[#allocation4 + $0x1740] sm:$0xff]
    %v1626 = vld [vmem:[#allocation4 + $0x1748] sm:$0xff]
    %v1627 = vld [vmem:[#allocation4 + $0x1750] sm:$0xff]
    %v1628 = vld [vmem:[#allocation4 + $0x1758] sm:$0xff]
    %v1629 = vld [vmem:[#allocation4 + $0x1760] sm:$0xff]
    %v1630 = vld [vmem:[#allocation4 + $0x1768] sm:$0xff]
    %v1631 = vld [vmem:[#allocation4 + $0x1770] sm:$0xff]
    %v1632 = vld [vmem:[#allocation4 + $0x1778] sm:$0xff]
    %v1633 = vld [vmem:[#allocation4 + $0x1780] sm:$0xff]
    %v1634 = vld [vmem:[#allocation4 + $0x1788] sm:$0xff]
    %v1635 = vld [vmem:[#allocation4 + $0x1790] sm:$0xff]
    %v1636 = vld [vmem:[#allocation4 + $0x1798] sm:$0xff]
    %v1637 = vld [vmem:[#allocation4 + $0x17a0] sm:$0xff]
    %v1638 = vld [vmem:[#allocation4 + $0x17a8] sm:$0xff]
    %v1639 = vld [vmem:[#allocation4 + $0x17b0] sm:$0xff]
    %v1640 = vld [vmem:[#allocation4 + $0x17b8] sm:$0xff]
    %v1641 = vld [vmem:[#allocation4 + $0x17c0] sm:$0xff]
    %v1642 = vld [vmem:[#allocation4 + $0x17c8] sm:$0xff]
    %v1643 = vld [vmem:[#allocation4 + $0x17d0] sm:$0xff]
    %v1644 = vld [vmem:[#allocation4 + $0x17d8] sm:$0xff]
    %v1645 = vld [vmem:[#allocation4 + $0x17e0] sm:$0xff]
    %v1646 = vld [vmem:[#allocation4 + $0x17e8] sm:$0xff]
    %v1647 = vld [vmem:[#allocation4 + $0x17f0] sm:$0xff]
    %v1648 = vld [vmem:[#allocation4 + $0x17f8] sm:$0xff]
    %v1649 = vld [vmem:[#allocation4 + $0x1800] sm:$0xff]
    %v1650 = vld [vmem:[#allocation4 + $0x1808] sm:$0xff]
    %v1651 = vld [vmem:[#allocation4 + $0x1810] sm:$0xff]
    %v1652 = vld [vmem:[#allocation4 + $0x1818] sm:$0xff]
    %v1653 = vld [vmem:[#allocation4 + $0x1820] sm:$0xff]
    %v1654 = vld [vmem:[#allocation4 + $0x1828] sm:$0xff]
    %v1655 = vld [vmem:[#allocation4 + $0x1830] sm:$0xff]
    %v1656 = vld [vmem:[#allocation4 + $0x1838] sm:$0xff]
    %v1657 = vld [vmem:[#allocation4 + $0x1840] sm:$0xff]
    %v1658 = vld [vmem:[#allocation4 + $0x1848] sm:$0xff]
    %v1659 = vld [vmem:[#allocation4 + $0x1850] sm:$0xff]
    %v1660 = vld [vmem:[#allocation4 + $0x1858] sm:$0xff]
    %v1661 = vld [vmem:[#allocation4 + $0x1860] sm:$0xff]
    %v1662 = vld [vmem:[#allocation4 + $0x1868] sm:$0xff]
    %v1663 = vld [vmem:[#allocation4 + $0x1870] sm:$0xff]
    %v1664 = vld [vmem:[#allocation4 + $0x1878] sm:$0xff]
    %v1665 = vld [vmem:[#allocation4 + $0x1880] sm:$0xff]
    %v1666 = vld [vmem:[#allocation4 + $0x1888] sm:$0xff]
    %v1667 = vld [vmem:[#allocation4 + $0x1890] sm:$0xff]
    %v1668 = vld [vmem:[#allocation4 + $0x1898] sm:$0xff]
    %v1669 = vld [vmem:[#allocation4 + $0x18a0] sm:$0xff]
    %v1670 = vld [vmem:[#allocation4 + $0x18a8] sm:$0xff]
    %v1671 = vld [vmem:[#allocation4 + $0x18b0] sm:$0xff]
    %v1672 = vld [vmem:[#allocation4 + $0x18b8] sm:$0xff]
    %v1673 = vld [vmem:[#allocation4 + $0x18c0] sm:$0xff]
    %v1674 = vld [vmem:[#allocation4 + $0x18c8] sm:$0xff]
    %v1675 = vld [vmem:[#allocation4 + $0x18d0] sm:$0xff]
    %v1676 = vld [vmem:[#allocation4 + $0x18d8] sm:$0xff]
    %v1677 = vld [vmem:[#allocation4 + $0x18e0] sm:$0xff]
    %v1678 = vld [vmem:[#allocation4 + $0x18e8] sm:$0xff]
    %v1679 = vld [vmem:[#allocation4 + $0x18f0] sm:$0xff]
    %v1680 = vld [vmem:[#allocation4 + $0x18f8] sm:$0xff]
    %v1681 = vld [vmem:[#allocation4 + $0x1900] sm:$0xff]
    %v1682 = vld [vmem:[#allocation4 + $0x1908] sm:$0xff]
    %v1683 = vld [vmem:[#allocation4 + $0x1910] sm:$0xff]
    %v1684 = vld [vmem:[#allocation4 + $0x1918] sm:$0xff]
    %v1685 = vld [vmem:[#allocation4 + $0x1920] sm:$0xff]
    %v1686 = vld [vmem:[#allocation4 + $0x1928] sm:$0xff]
    %v1687 = vld [vmem:[#allocation4 + $0x1930] sm:$0xff]
    %v1688 = vld [vmem:[#allocation4 + $0x1938] sm:$0xff]
    %v1689 = vld [vmem:[#allocation4 + $0x1940] sm:$0xff]
    %v1690 = vld [vmem:[#allocation4 + $0x1948] sm:$0xff]
    %v1691 = vld [vmem:[#allocation4 + $0x1950] sm:$0xff]
    %v1692 = vld [vmem:[#allocation4 + $0x1958] sm:$0xff]
    %v1693 = vld [vmem:[#allocation4 + $0x1960] sm:$0xff]
    %v1694 = vld [vmem:[#allocation4 + $0x1968] sm:$0xff]
    %v1695 = vld [vmem:[#allocation4 + $0x1970] sm:$0xff]
    %v1696 = vld [vmem:[#allocation4 + $0x1978] sm:$0xff]
    %v1697 = vld [vmem:[#allocation4 + $0x1980] sm:$0xff]
    %v1698 = vld [vmem:[#allocation4 + $0x1988] sm:$0xff]
    %v1699 = vld [vmem:[#allocation4 + $0x1990] sm:$0xff]
    %v1700 = vld [vmem:[#allocation4 + $0x1998] sm:$0xff]
    %v1701 = vld [vmem:[#allocation4 + $0x19a0] sm:$0xff]
    %v1702 = vld [vmem:[#allocation4 + $0x19a8] sm:$0xff]
    %v1703 = vld [vmem:[#allocation4 + $0x19b0] sm:$0xff]
    %v1704 = vld [vmem:[#allocation4 + $0x19b8] sm:$0xff]
    %v1705 = vld [vmem:[#allocation4 + $0x19c0] sm:$0xff]
    %v1706 = vld [vmem:[#allocation4 + $0x19c8] sm:$0xff]
    %v1707 = vld [vmem:[#allocation4 + $0x19d0] sm:$0xff]
    %v1708 = vld [vmem:[#allocation4 + $0x19d8] sm:$0xff]
    %v1709 = vld [vmem:[#allocation4 + $0x19e0] sm:$0xff]
    %v1710 = vld [vmem:[#allocation4 + $0x19e8] sm:$0xff]
    %v1711 = vld [vmem:[#allocation4 + $0x19f0] sm:$0xff]
    %v1712 = vld [vmem:[#allocation4 + $0x19f8] sm:$0xff]
    %v1713 = vld [vmem:[#allocation4 + $0x1a00] sm:$0xff]
    %v1714 = vld [vmem:[#allocation4 + $0x1a08] sm:$0xff]
    %v1715 = vld [vmem:[#allocation4 + $0x1a10] sm:$0xff]
    %v1716 = vld [vmem:[#allocation4 + $0x1a18] sm:$0xff]
    %v1717 = vld [vmem:[#allocation4 + $0x1a20] sm:$0xff]
    %v1718 = vld [vmem:[#allocation4 + $0x1a28] sm:$0xff]
    %v1719 = vld [vmem:[#allocation4 + $0x1a30] sm:$0xff]
    %v1720 = vld [vmem:[#allocation4 + $0x1a38] sm:$0xff]
    %v1721 = vld [vmem:[#allocation4 + $0x1a40] sm:$0xff]
    %v1722 = vld [vmem:[#allocation4 + $0x1a48] sm:$0xff]
    %v1723 = vld [vmem:[#allocation4 + $0x1a50] sm:$0xff]
    %v1724 = vld [vmem:[#allocation4 + $0x1a58] sm:$0xff]
    %v1725 = vld [vmem:[#allocation4 + $0x1a60] sm:$0xff]
    %v1726 = vld [vmem:[#allocation4 + $0x1a68] sm:$0xff]
    %v1727 = vld [vmem:[#allocation4 + $0x1a70] sm:$0xff]
    %v1728 = vld [vmem:[#allocation4 + $0x1a78] sm:$0xff]
    %v1729 = vld [vmem:[#allocation4 + $0x1a80] sm:$0xff]
    %v1730 = vld [vmem:[#allocation4 + $0x1a88] sm:$0xff]
    %v1731 = vld [vmem:[#allocation4 + $0x1a90] sm:$0xff]
    %v1732 = vld [vmem:[#allocation4 + $0x1a98] sm:$0xff]
    %v1733 = vld [vmem:[#allocation4 + $0x1aa0] sm:$0xff]
    %v1734 = vld [vmem:[#allocation4 + $0x1aa8] sm:$0xff]
    %v1735 = vld [vmem:[#allocation4 + $0x1ab0] sm:$0xff]
    %v1736 = vld [vmem:[#allocation4 + $0x1ab8] sm:$0xff]
    %v1737 = vld [vmem:[#allocation4 + $0x1ac0] sm:$0xff]
    %v1738 = vld [vmem:[#allocation4 + $0x1ac8] sm:$0xff]
    %v1739 = vld [vmem:[#allocation4 + $0x1ad0] sm:$0xff]
    %v1740 = vld [vmem:[#allocation4 + $0x1ad8] sm:$0xff]
    %v1741 = vld [vmem:[#allocation4 + $0x1ae0] sm:$0xff]
    %v1742 = vld [vmem:[#allocation4 + $0x1ae8] sm:$0xff]
    %v1743 = vld [vmem:[#allocation4 + $0x1af0] sm:$0xff]
    %v1744 = vld [vmem:[#allocation4 + $0x1af8] sm:$0xff]
    %v1745 = vld [vmem:[#allocation4 + $0x1b00] sm:$0xff]
    %v1746 = vld [vmem:[#allocation4 + $0x1b08] sm:$0xff]
    %v1747 = vld [vmem:[#allocation4 + $0x1b10] sm:$0xff]
    %v1748 = vld [vmem:[#allocation4 + $0x1b18] sm:$0xff]
    %v1749 = vld [vmem:[#allocation4 + $0x1b20] sm:$0xff]
    %v1750 = vld [vmem:[#allocation4 + $0x1b28] sm:$0xff]
    %v1751 = vld [vmem:[#allocation4 + $0x1b30] sm:$0xff]
    %v1752 = vld [vmem:[#allocation4 + $0x1b38] sm:$0xff]
    %v1753 = vld [vmem:[#allocation4 + $0x1b40] sm:$0xff]
    %v1754 = vld [vmem:[#allocation4 + $0x1b48] sm:$0xff]
    %v1755 = vld [vmem:[#allocation4 + $0x1b50] sm:$0xff]
    %v1756 = vld [vmem:[#allocation4 + $0x1b58] sm:$0xff]
    %v1757 = vld [vmem:[#allocation4 + $0x1b60] sm:$0xff]
    %v1758 = vld [vmem:[#allocation4 + $0x1b68] sm:$0xff]
    %v1759 = vld [vmem:[#allocation4 + $0x1b70] sm:$0xff]
    %v1760 = vld [vmem:[#allocation4 + $0x1b78] sm:$0xff]
    %v1761 = vld [vmem:[#allocation4 + $0x1b80] sm:$0xff]
    %v1762 = vld [vmem:[#allocation4 + $0x1b88] sm:$0xff]
    %v1763 = vld [vmem:[#allocation4 + $0x1b90] sm:$0xff]
    %v1764 = vld [vmem:[#allocation4 + $0x1b98] sm:$0xff]
    %v1765 = vld [vmem:[#allocation4 + $0x1ba0] sm:$0xff]
    %v1766 = vld [vmem:[#allocation4 + $0x1ba8] sm:$0xff]
    %v1767 = vld [vmem:[#allocation4 + $0x1bb0] sm:$0xff]
    %v1768 = vld [vmem:[#allocation4 + $0x1bb8] sm:$0xff]
    %v1769 = vld [vmem:[#allocation4 + $0x1bc0] sm:$0xff]
    %v1770 = vld [vmem:[#allocation4 + $0x1bc8] sm:$0xff]
    %v1771 = vld [vmem:[#allocation4 + $0x1bd0] sm:$0xff]
    %v1772 = vld [vmem:[#allocation4 + $0x1bd8] sm:$0xff]
    %v1773 = vld [vmem:[#allocation4 + $0x1be0] sm:$0xff]
    %v1774 = vld [vmem:[#allocation4 + $0x1be8] sm:$0xff]
    %v1775 = vld [vmem:[#allocation4 + $0x1bf0] sm:$0xff]
    %v1776 = vld [vmem:[#allocation4 + $0x1bf8] sm:$0xff]
    %v1777 = vld [vmem:[#allocation4 + $0x1c00] sm:$0xff]
    %v1778 = vld [vmem:[#allocation4 + $0x1c08] sm:$0xff]
    %v1779 = vld [vmem:[#allocation4 + $0x1c10] sm:$0xff]
    %v1780 = vld [vmem:[#allocation4 + $0x1c18] sm:$0xff]
    %v1781 = vld [vmem:[#allocation4 + $0x1c20] sm:$0xff]
    %v1782 = vld [vmem:[#allocation4 + $0x1c28] sm:$0xff]
    %v1783 = vld [vmem:[#allocation4 + $0x1c30] sm:$0xff]
    %v1784 = vld [vmem:[#allocation4 + $0x1c38] sm:$0xff]
    %v1785 = vld [vmem:[#allocation4 + $0x1c40] sm:$0xff]
    %v1786 = vld [vmem:[#allocation4 + $0x1c48] sm:$0xff]
    %v1787 = vld [vmem:[#allocation4 + $0x1c50] sm:$0xff]
    %v1788 = vld [vmem:[#allocation4 + $0x1c58] sm:$0xff]
    %v1789 = vld [vmem:[#allocation4 + $0x1c60] sm:$0xff]
    %v1790 = vld [vmem:[#allocation4 + $0x1c68] sm:$0xff]
    %v1791 = vld [vmem:[#allocation4 + $0x1c70] sm:$0xff]
    %v1792 = vld [vmem:[#allocation4 + $0x1c78] sm:$0xff]
    %v1793 = vld [vmem:[#allocation4 + $0x1c80] sm:$0xff]
    %v1794 = vld [vmem:[#allocation4 + $0x1c88] sm:$0xff]
    %v1795 = vld [vmem:[#allocation4 + $0x1c90] sm:$0xff]
    %v1796 = vld [vmem:[#allocation4 + $0x1c98] sm:$0xff]
    %v1797 = vld [vmem:[#allocation4 + $0x1ca0] sm:$0xff]
    %v1798 = vld [vmem:[#allocation4 + $0x1ca8] sm:$0xff]
    %v1799 = vld [vmem:[#allocation4 + $0x1cb0] sm:$0xff]
    %v1800 = vld [vmem:[#allocation4 + $0x1cb8] sm:$0xff]
    %v1801 = vld [vmem:[#allocation4 + $0x1cc0] sm:$0xff]
    %v1802 = vld [vmem:[#allocation4 + $0x1cc8] sm:$0xff]
    %v1803 = vld [vmem:[#allocation4 + $0x1cd0] sm:$0xff]
    %v1804 = vld [vmem:[#allocation4 + $0x1cd8] sm:$0xff]
    %v1805 = vld [vmem:[#allocation4 + $0x1ce0] sm:$0xff]
    %v1806 = vld [vmem:[#allocation4 + $0x1ce8] sm:$0xff]
    %v1807 = vld [vmem:[#allocation4 + $0x1cf0] sm:$0xff]
    %v1808 = vld [vmem:[#allocation4 + $0x1cf8] sm:$0xff]
    %v1809 = vld [vmem:[#allocation4 + $0x1d00] sm:$0xff]
    %v1810 = vld [vmem:[#allocation4 + $0x1d08] sm:$0xff]
    %v1811 = vld [vmem:[#allocation4 + $0x1d10] sm:$0xff]
    %v1812 = vld [vmem:[#allocation4 + $0x1d18] sm:$0xff]
    %v1813 = vld [vmem:[#allocation4 + $0x1d20] sm:$0xff]
    %v1814 = vld [vmem:[#allocation4 + $0x1d28] sm:$0xff]
    %v1815 = vld [vmem:[#allocation4 + $0x1d30] sm:$0xff]
    %v1816 = vld [vmem:[#allocation4 + $0x1d38] sm:$0xff]
    %v1817 = vld [vmem:[#allocation4 + $0x1d40] sm:$0xff]
    %v1818 = vld [vmem:[#allocation4 + $0x1d48] sm:$0xff]
    %v1819 = vld [vmem:[#allocation4 + $0x1d50] sm:$0xff]
    %v1820 = vld [vmem:[#allocation4 + $0x1d58] sm:$0xff]
    %v1821 = vld [vmem:[#allocation4 + $0x1d60] sm:$0xff]
    %v1822 = vld [vmem:[#allocation4 + $0x1d68] sm:$0xff]
    %v1823 = vld [vmem:[#allocation4 + $0x1d70] sm:$0xff]
    %v1824 = vld [vmem:[#allocation4 + $0x1d78] sm:$0xff]
    %v1825 = vld [vmem:[#allocation4 + $0x1d80] sm:$0xff]
    %v1826 = vld [vmem:[#allocation4 + $0x1d88] sm:$0xff]
    %v1827 = vld [vmem:[#allocation4 + $0x1d90] sm:$0xff]
    %v1828 = vld [vmem:[#allocation4 + $0x1d98] sm:$0xff]
    %v1829 = vld [vmem:[#allocation4 + $0x1da0] sm:$0xff]
    %v1830 = vld [vmem:[#allocation4 + $0x1da8] sm:$0xff]
    %v1831 = vld [vmem:[#allocation4 + $0x1db0] sm:$0xff]
    %v1832 = vld [vmem:[#allocation4 + $0x1db8] sm:$0xff]
    %v1833 = vld [vmem:[#allocation4 + $0x1dc0] sm:$0xff]
    %v1834 = vld [vmem:[#allocation4 + $0x1dc8] sm:$0xff]
    %v1835 = vld [vmem:[#allocation4 + $0x1dd0] sm:$0xff]
    %v1836 = vld [vmem:[#allocation4 + $0x1dd8] sm:$0xff]
    %v1837 = vld [vmem:[#allocation4 + $0x1de0] sm:$0xff]
    %v1838 = vld [vmem:[#allocation4 + $0x1de8] sm:$0xff]
    %v1839 = vld [vmem:[#allocation4 + $0x1df0] sm:$0xff]
    %v1840 = vld [vmem:[#allocation4 + $0x1df8] sm:$0xff]
    %v1841 = vld [vmem:[#allocation4 + $0x1e00] sm:$0xff]
    %v1842 = vld [vmem:[#allocation4 + $0x1e08] sm:$0xff]
    %v1843 = vld [vmem:[#allocation4 + $0x1e10] sm:$0xff]
    %v1844 = vld [vmem:[#allocation4 + $0x1e18] sm:$0xff]
    %v1845 = vld [vmem:[#allocation4 + $0x1e20] sm:$0xff]
    %v1846 = vld [vmem:[#allocation4 + $0x1e28] sm:$0xff]
    %v1847 = vld [vmem:[#allocation4 + $0x1e30] sm:$0xff]
    %v1848 = vld [vmem:[#allocation4 + $0x1e38] sm:$0xff]
    %v1849 = vld [vmem:[#allocation4 + $0x1e40] sm:$0xff]
    %v1850 = vld [vmem:[#allocation4 + $0x1e48] sm:$0xff]
    %v1851 = vld [vmem:[#allocation4 + $0x1e50] sm:$0xff]
    %v1852 = vld [vmem:[#allocation4 + $0x1e58] sm:$0xff]
    %v1853 = vld [vmem:[#allocation4 + $0x1e60] sm:$0xff]
    %v1854 = vld [vmem:[#allocation4 + $0x1e68] sm:$0xff]
    %v1855 = vld [vmem:[#allocation4 + $0x1e70] sm:$0xff]
    %v1856 = vld [vmem:[#allocation4 + $0x1e78] sm:$0xff]
    %v1857 = vld [vmem:[#allocation4 + $0x1e80] sm:$0xff]
    %v1858 = vld [vmem:[#allocation4 + $0x1e88] sm:$0xff]
    %v1859 = vld [vmem:[#allocation4 + $0x1e90] sm:$0xff]
    %v1860 = vld [vmem:[#allocation4 + $0x1e98] sm:$0xff]
    %v1861 = vld [vmem:[#allocation4 + $0x1ea0] sm:$0xff]
    %v1862 = vld [vmem:[#allocation4 + $0x1ea8] sm:$0xff]
    %v1863 = vld [vmem:[#allocation4 + $0x1eb0] sm:$0xff]
    %v1864 = vld [vmem:[#allocation4 + $0x1eb8] sm:$0xff]
    %v1865 = vld [vmem:[#allocation4 + $0x1ec0] sm:$0xff]
    %v1866 = vld [vmem:[#allocation4 + $0x1ec8] sm:$0xff]
    %v1867 = vld [vmem:[#allocation4 + $0x1ed0] sm:$0xff]
    %v1868 = vld [vmem:[#allocation4 + $0x1ed8] sm:$0xff]
    %v1869 = vld [vmem:[#allocation4 + $0x1ee0] sm:$0xff]
    %v1870 = vld [vmem:[#allocation4 + $0x1ee8] sm:$0xff]
    %v1871 = vld [vmem:[#allocation4 + $0x1ef0] sm:$0xff]
    %v1872 = vld [vmem:[#allocation4 + $0x1ef8] sm:$0xff]
    %v1873 = vld [vmem:[#allocation4 + $0x1f00] sm:$0xff]
    %v1874 = vld [vmem:[#allocation4 + $0x1f08] sm:$0xff]
    %v1875 = vld [vmem:[#allocation4 + $0x1f10] sm:$0xff]
    %v1876 = vld [vmem:[#allocation4 + $0x1f18] sm:$0xff]
    %v1877 = vld [vmem:[#allocation4 + $0x1f20] sm:$0xff]
    %v1878 = vld [vmem:[#allocation4 + $0x1f28] sm:$0xff]
    %v1879 = vld [vmem:[#allocation4 + $0x1f30] sm:$0xff]
    %v1880 = vld [vmem:[#allocation4 + $0x1f38] sm:$0xff]
    %v1881 = vld [vmem:[#allocation4 + $0x1f40] sm:$0xff]
    %v1882 = vld [vmem:[#allocation4 + $0x1f48] sm:$0xff]
    %v1883 = vld [vmem:[#allocation4 + $0x1f50] sm:$0xff]
    %v1884 = vld [vmem:[#allocation4 + $0x1f58] sm:$0xff]
    %v1885 = vld [vmem:[#allocation4 + $0x1f60] sm:$0xff]
    %v1886 = vld [vmem:[#allocation4 + $0x1f68] sm:$0xff]
    %v1887 = vld [vmem:[#allocation4 + $0x1f70] sm:$0xff]
    %v1888 = vld [vmem:[#allocation4 + $0x1f78] sm:$0xff]
    %v1889 = vld [vmem:[#allocation4 + $0x1f80] sm:$0xff]
    %v1890 = vld [vmem:[#allocation4 + $0x1f88] sm:$0xff]
    %v1891 = vld [vmem:[#allocation4 + $0x1f90] sm:$0xff]
    %v1892 = vld [vmem:[#allocation4 + $0x1f98] sm:$0xff]
    %v1893 = vld [vmem:[#allocation4 + $0x1fa0] sm:$0xff]
    %v1894 = vld [vmem:[#allocation4 + $0x1fa8] sm:$0xff]
    %v1895 = vld [vmem:[#allocation4 + $0x1fb0] sm:$0xff]
    %v1896 = vld [vmem:[#allocation4 + $0x1fb8] sm:$0xff]
    %v1897 = vld [vmem:[#allocation4 + $0x1fc0] sm:$0xff]
    %v1898 = vld [vmem:[#allocation4 + $0x1fc8] sm:$0xff]
    %v1899 = vld [vmem:[#allocation4 + $0x1fd0] sm:$0xff]
    %v1900 = vld [vmem:[#allocation4 + $0x1fd8] sm:$0xff]
    %v1901 = vld [vmem:[#allocation4 + $0x1fe0] sm:$0xff]
    %v1902 = vld [vmem:[#allocation4 + $0x1fe8] sm:$0xff]
    %v1903 = vld [vmem:[#allocation4 + $0x1ff0] sm:$0xff]
    %v1904 = vld [vmem:[#allocation4 + $0x1ff8] sm:$0xff]
    %1905 = vmatprep.subr.mxu0 %v882
    %1906 = vmatpush1.msra.mxu0 %v881
    %1907 = vmatprep.subr.mxu0 %v890
    %1908 = vmatpush1.msra.mxu0 %v889
    %1909 = vmatprep.subr.mxu0 %v898
    %1910 = vmatpush1.msra.mxu0 %v897
    %1911 = vmatprep.subr.mxu0 %v906
    %1912 = vmatpush1.msra.mxu0 %v905
    %1913 = vmatprep.subr.mxu0 %v914
    %1914 = vmatpush1.msra.mxu0 %v913
    %1915 = vmatprep.subr.mxu0 %v922
    %1916 = vmatpush1.msra.mxu0 %v921
    %1917 = vmatprep.subr.mxu0 %v930
    %1918 = vmatpush1.msra.mxu0 %v929
    %1919 = vmatprep.subr.mxu0 %v938
    %1920 = vmatpush1.msra.mxu0 %v937
    %1921 = vmatprep.subr.mxu0 %v946
    %1922 = vmatpush1.msra.mxu0 %v945
    %1923 = vmatprep.subr.mxu0 %v954
    %1924 = vmatpush1.msra.mxu0 %v953
    %1925 = vmatprep.subr.mxu0 %v962
    %1926 = vmatpush1.msra.mxu0 %v961
    %1927 = vmatprep.subr.mxu0 %v970
    %1928 = vmatpush1.msra.mxu0 %v969
    %1929 = vmatprep.subr.mxu0 %v978
    %1930 = vmatpush1.msra.mxu0 %v977
    %1931 = vmatprep.subr.mxu0 %v986
    %1932 = vmatpush1.msra.mxu0 %v985
    %1933 = vmatprep.subr.mxu0 %v994
    %1934 = vmatpush1.msra.mxu0 %v993
    %1935 = vmatprep.subr.mxu0 %v1002
    %1936 = vmatpush1.msra.mxu0 %v1001
    %1937 = vmatprep.subr.mxu0 %v1010
    %1938 = vmatpush1.msra.mxu0 %v1009
    %1939 = vmatprep.subr.mxu0 %v1018
    %1940 = vmatpush1.msra.mxu0 %v1017
    %1941 = vmatprep.subr.mxu0 %v1026
    %1942 = vmatpush1.msra.mxu0 %v1025
    %1943 = vmatprep.subr.mxu0 %v1034
    %1944 = vmatpush1.msra.mxu0 %v1033
    %1945 = vmatprep.subr.mxu0 %v1042
    %1946 = vmatpush1.msra.mxu0 %v1041
    %1947 = vmatprep.subr.mxu0 %v1050
    %1948 = vmatpush1.msra.mxu0 %v1049
    %1949 = vmatprep.subr.mxu0 %v1058
    %1950 = vmatpush1.msra.mxu0 %v1057
    %1951 = vmatprep.subr.mxu0 %v1066
    %1952 = vmatpush1.msra.mxu0 %v1065
    %1953 = vmatprep.subr.mxu0 %v1074
    %1954 = vmatpush1.msra.mxu0 %v1073
    %1955 = vmatprep.subr.mxu0 %v1082
    %1956 = vmatpush1.msra.mxu0 %v1081
    %1957 = vmatprep.subr.mxu0 %v1090
    %1958 = vmatpush1.msra.mxu0 %v1089
    %1959 = vmatprep.subr.mxu0 %v1098
    %1960 = vmatpush1.msra.mxu0 %v1097
    %1961 = vmatprep.subr.mxu0 %v1106
    %1962 = vmatpush1.msra.mxu0 %v1105
    %1963 = vmatprep.subr.mxu0 %v1114
    %1964 = vmatpush1.msra.mxu0 %v1113
    %1965 = vmatprep.subr.mxu0 %v1122
    %1966 = vmatpush1.msra.mxu0 %v1121
    %1967 = vmatprep.subr.mxu0 %v1130
    %1968 = vmatpush1.msra.mxu0 %v1129
    %1969 = vmatprep.mubr.f32.mxu0 %v874
    %1970 = vmatmul.mubr.f32.gmra.mrb[0].mxu0 %v873
    %v1971 = vpop.f32.mrb[0].mxu0
    %v1972 = vadd.f32 0.0, %v1971
    %v1973 = vpop.f32.mrb[0].mxu0
    %v1974 = vadd.f32 0.0, %v1973
    %1975 = vdwg.mxu0
    %1976 = vmatprep.subr.mxu0 %v1138
    %1977 = vmatpush1.msra.mxu0 %v1137
    %1978 = vmatprep.subr.mxu0 %v1146
    %1979 = vmatpush1.msra.mxu0 %v1145
    %1980 = vmatprep.subr.mxu0 %v1154
    %1981 = vmatpush1.msra.mxu0 %v1153
    %1982 = vmatprep.subr.mxu0 %v1162
    %1983 = vmatpush1.msra.mxu0 %v1161
    %1984 = vmatprep.subr.mxu0 %v1170
    %1985 = vmatpush1.msra.mxu0 %v1169
    %1986 = vmatprep.subr.mxu0 %v1178
    %1987 = vmatpush1.msra.mxu0 %v1177
    %1988 = vmatprep.subr.mxu0 %v1186
    %1989 = vmatpush1.msra.mxu0 %v1185
    %1990 = vmatprep.subr.mxu0 %v1194
    %1991 = vmatpush1.msra.mxu0 %v1193
    %1992 = vmatprep.subr.mxu0 %v1202
    %1993 = vmatpush1.msra.mxu0 %v1201
    %1994 = vmatprep.subr.mxu0 %v1210
    %1995 = vmatpush1.msra.mxu0 %v1209
    %1996 = vmatprep.subr.mxu0 %v1218
    %1997 = vmatpush1.msra.mxu0 %v1217
    %1998 = vmatprep.subr.mxu0 %v1226
    %1999 = vmatpush1.msra.mxu0 %v1225
    %2000 = vmatprep.subr.mxu0 %v1234
    %2001 = vmatpush1.msra.mxu0 %v1233
    %2002 = vmatprep.subr.mxu0 %v1242
    %2003 = vmatpush1.msra.mxu0 %v1241
    %2004 = vmatprep.subr.mxu0 %v1250
    %2005 = vmatpush1.msra.mxu0 %v1249
    %2006 = vmatprep.subr.mxu0 %v1258
    %2007 = vmatpush1.msra.mxu0 %v1257
    %2008 = vmatprep.subr.mxu0 %v1266
    %2009 = vmatpush1.msra.mxu0 %v1265
    %2010 = vmatprep.subr.mxu0 %v1274
    %2011 = vmatpush1.msra.mxu0 %v1273
    %2012 = vmatprep.subr.mxu0 %v1282
    %2013 = vmatpush1.msra.mxu0 %v1281
    %2014 = vmatprep.subr.mxu0 %v1290
    %2015 = vmatpush1.msra.mxu0 %v1289
    %2016 = vmatprep.subr.mxu0 %v1298
    %2017 = vmatpush1.msra.mxu0 %v1297
    %2018 = vmatprep.subr.mxu0 %v1306
    %2019 = vmatpush1.msra.mxu0 %v1305
    %2020 = vmatprep.subr.mxu0 %v1314
    %2021 = vmatpush1.msra.mxu0 %v1313
    %2022 = vmatprep.subr.mxu0 %v1322
    %2023 = vmatpush1.msra.mxu0 %v1321
    %2024 = vmatprep.subr.mxu0 %v1330
    %2025 = vmatpush1.msra.mxu0 %v1329
    %2026 = vmatprep.subr.mxu0 %v1338
    %2027 = vmatpush1.msra.mxu0 %v1337
    %2028 = vmatprep.subr.mxu0 %v1346
    %2029 = vmatpush1.msra.mxu0 %v1345
    %2030 = vmatprep.subr.mxu0 %v1354
    %2031 = vmatpush1.msra.mxu0 %v1353
    %2032 = vmatprep.subr.mxu0 %v1362
    %2033 = vmatpush1.msra.mxu0 %v1361
    %2034 = vmatprep.subr.mxu0 %v1370
    %2035 = vmatpush1.msra.mxu0 %v1369
    %2036 = vmatprep.subr.mxu0 %v1378
    %2037 = vmatpush1.msra.mxu0 %v1377
    %2038 = vmatprep.subr.mxu0 %v1386
    %2039 = vmatpush1.msra.mxu0 %v1385
    %2040 = vmatprep.mubr.f32.mxu0 %v876
    %2041 = vmatmul.mubr.f32.gmra.mrb[0].mxu0 %v875
    %v2042 = vpop.f32.mrb[0].mxu0
    %v2043 = vadd.f32 %v1972, %v2042
    %v2044 = vpop.f32.mrb[0].mxu0
    %v2045 = vadd.f32 %v1974, %v2044
    %2046 = vdwg.mxu0
    %2047 = vmatprep.subr.mxu0 %v1394
    %2048 = vmatpush1.msra.mxu0 %v1393
    %2049 = vmatprep.subr.mxu0 %v1402
    %2050 = vmatpush1.msra.mxu0 %v1401
    %2051 = vmatprep.subr.mxu0 %v1410
    %2052 = vmatpush1.msra.mxu0 %v1409
    %2053 = vmatprep.subr.mxu0 %v1418
    %2054 = vmatpush1.msra.mxu0 %v1417
    %2055 = vmatprep.subr.mxu0 %v1426
    %2056 = vmatpush1.msra.mxu0 %v1425
    %2057 = vmatprep.subr.mxu0 %v1434
    %2058 = vmatpush1.msra.mxu0 %v1433
    %2059 = vmatprep.subr.mxu0 %v1442
    %2060 = vmatpush1.msra.mxu0 %v1441
    %2061 = vmatprep.subr.mxu0 %v1450
    %2062 = vmatpush1.msra.mxu0 %v1449
    %2063 = vmatprep.subr.mxu0 %v1458
    %2064 = vmatpush1.msra.mxu0 %v1457
    %2065 = vmatprep.subr.mxu0 %v1466
    %2066 = vmatpush1.msra.mxu0 %v1465
    %2067 = vmatprep.subr.mxu0 %v1474
    %2068 = vmatpush1.msra.mxu0 %v1473
    %2069 = vmatprep.subr.mxu0 %v1482
    %2070 = vmatpush1.msra.mxu0 %v1481
    %2071 = vmatprep.subr.mxu0 %v1490
    %2072 = vmatpush1.msra.mxu0 %v1489
    %2073 = vmatprep.subr.mxu0 %v1498
    %2074 = vmatpush1.msra.mxu0 %v1497
    %2075 = vmatprep.subr.mxu0 %v1506
    %2076 = vmatpush1.msra.mxu0 %v1505
    %2077 = vmatprep.subr.mxu0 %v1514
    %2078 = vmatpush1.msra.mxu0 %v1513
    %2079 = vmatprep.subr.mxu0 %v1522
    %2080 = vmatpush1.msra.mxu0 %v1521
    %2081 = vmatprep.subr.mxu0 %v1530
    %2082 = vmatpush1.msra.mxu0 %v1529
    %2083 = vmatprep.subr.mxu0 %v1538
    %2084 = vmatpush1.msra.mxu0 %v1537
    %2085 = vmatprep.subr.mxu0 %v1546
    %2086 = vmatpush1.msra.mxu0 %v1545
    %2087 = vmatprep.subr.mxu0 %v1554
    %2088 = vmatpush1.msra.mxu0 %v1553
    %2089 = vmatprep.subr.mxu0 %v1562
    %2090 = vmatpush1.msra.mxu0 %v1561
    %2091 = vmatprep.subr.mxu0 %v1570
    %2092 = vmatpush1.msra.mxu0 %v1569
    %2093 = vmatprep.subr.mxu0 %v1578
    %2094 = vmatpush1.msra.mxu0 %v1577
    %2095 = vmatprep.subr.mxu0 %v1586
    %2096 = vmatpush1.msra.mxu0 %v1585
    %2097 = vmatprep.subr.mxu0 %v1594
    %2098 = vmatpush1.msra.mxu0 %v1593
    %2099 = vmatprep.subr.mxu0 %v1602
    %2100 = vmatpush1.msra.mxu0 %v1601
    %2101 = vmatprep.subr.mxu0 %v1610
    %2102 = vmatpush1.msra.mxu0 %v1609
    %2103 = vmatprep.subr.mxu0 %v1618
    %2104 = vmatpush1.msra.mxu0 %v1617
    %2105 = vmatprep.subr.mxu0 %v1626
    %2106 = vmatpush1.msra.mxu0 %v1625
    %2107 = vmatprep.subr.mxu0 %v1634
    %2108 = vmatpush1.msra.mxu0 %v1633
    %2109 = vmatprep.subr.mxu0 %v1642
    %2110 = vmatpush1.msra.mxu0 %v1641
    %2111 = vmatprep.mubr.f32.mxu0 %v878
    %2112 = vmatmul.mubr.f32.gmra.mrb[0].mxu0 %v877
    %v2113 = vpop.f32.mrb[0].mxu0
    %v2114 = vadd.f32 %v2043, %v2113
    %v2115 = vpop.f32.mrb[0].mxu0
    %v2116 = vadd.f32 %v2045, %v2115
    %2117 = vdwg.mxu0
    %2118 = vmatprep.subr.mxu0 %v1650
    %2119 = vmatpush1.msra.mxu0 %v1649
    %2120 = vmatprep.subr.mxu0 %v1658
    %2121 = vmatpush1.msra.mxu0 %v1657
    %2122 = vmatprep.subr.mxu0 %v1666
    %2123 = vmatpush1.msra.mxu0 %v1665
    %2124 = vmatprep.subr.mxu0 %v1674
    %2125 = vmatpush1.msra.mxu0 %v1673
    %2126 = vmatprep.subr.mxu0 %v1682
    %2127 = vmatpush1.msra.mxu0 %v1681
    %2128 = vmatprep.subr.mxu0 %v1690
    %2129 = vmatpush1.msra.mxu0 %v1689
    %2130 = vmatprep.subr.mxu0 %v1698
    %2131 = vmatpush1.msra.mxu0 %v1697
    %2132 = vmatprep.subr.mxu0 %v1706
    %2133 = vmatpush1.msra.mxu0 %v1705
    %2134 = vmatprep.subr.mxu0 %v1714
    %2135 = vmatpush1.msra.mxu0 %v1713
    %2136 = vmatprep.subr.mxu0 %v1722
    %2137 = vmatpush1.msra.mxu0 %v1721
    %2138 = vmatprep.subr.mxu0 %v1730
    %2139 = vmatpush1.msra.mxu0 %v1729
    %2140 = vmatprep.subr.mxu0 %v1738
    %2141 = vmatpush1.msra.mxu0 %v1737
    %2142 = vmatprep.subr.mxu0 %v1746
    %2143 = vmatpush1.msra.mxu0 %v1745
    %2144 = vmatprep.subr.mxu0 %v1754
    %2145 = vmatpush1.msra.mxu0 %v1753
    %2146 = vmatprep.subr.mxu0 %v1762
    %2147 = vmatpush1.msra.mxu0 %v1761
    %2148 = vmatprep.subr.mxu0 %v1770
    %2149 = vmatpush1.msra.mxu0 %v1769
    %2150 = vmatprep.subr.mxu0 %v1778
    %2151 = vmatpush1.msra.mxu0 %v1777
    %2152 = vmatprep.subr.mxu0 %v1786
    %2153 = vmatpush1.msra.mxu0 %v1785
    %2154 = vmatprep.subr.mxu0 %v1794
    %2155 = vmatpush1.msra.mxu0 %v1793
    %2156 = vmatprep.subr.mxu0 %v1802
    %2157 = vmatpush1.msra.mxu0 %v1801
    %2158 = vmatprep.subr.mxu0 %v1810
    %2159 = vmatpush1.msra.mxu0 %v1809
    %2160 = vmatprep.subr.mxu0 %v1818
    %2161 = vmatpush1.msra.mxu0 %v1817
    %2162 = vmatprep.subr.mxu0 %v1826
    %2163 = vmatpush1.msra.mxu0 %v1825
    %2164 = vmatprep.subr.mxu0 %v1834
    %2165 = vmatpush1.msra.mxu0 %v1833
    %2166 = vmatprep.subr.mxu0 %v1842
    %2167 = vmatpush1.msra.mxu0 %v1841
    %2168 = vmatprep.subr.mxu0 %v1850
    %2169 = vmatpush1.msra.mxu0 %v1849
    %2170 = vmatprep.subr.mxu0 %v1858
    %2171 = vmatpush1.msra.mxu0 %v1857
    %2172 = vmatprep.subr.mxu0 %v1866
    %2173 = vmatpush1.msra.mxu0 %v1865
    %2174 = vmatprep.subr.mxu0 %v1874
    %2175 = vmatpush1.msra.mxu0 %v1873
    %2176 = vmatprep.subr.mxu0 %v1882
    %2177 = vmatpush1.msra.mxu0 %v1881
    %2178 = vmatprep.subr.mxu0 %v1890
    %2179 = vmatpush1.msra.mxu0 %v1889
    %2180 = vmatprep.subr.mxu0 %v1898
    %2181 = vmatpush1.msra.mxu0 %v1897
    %2182 = vmatprep.mubr.f32.mxu0 %v880
    %2183 = vmatmul.mubr.f32.gmra.mrb[0].mxu0 %v879
    %v2184 = vpop.f32.mrb[0].mxu0
    %v2185 = vadd.f32 %v2114, %v2184
    %v2186 = vpop.f32.mrb[0].mxu0
    %v2187 = vadd.f32 %v2116, %v2186
    %2188 = vdwg.mxu0
    %2189 = vmatprep.subr.mxu0 %v884
    %2190 = vmatpush1.msra.mxu0 %v883
    %2191 = vmatprep.subr.mxu0 %v892
    %2192 = vmatpush1.msra.mxu0 %v891
    %2193 = vmatprep.subr.mxu0 %v900
    %2194 = vmatpush1.msra.mxu0 %v899
    %2195 = vmatprep.subr.mxu0 %v908
    %2196 = vmatpush1.msra.mxu0 %v907
    %2197 = vmatprep.subr.mxu0 %v916
    %2198 = vmatpush1.msra.mxu0 %v915
    %2199 = vmatprep.subr.mxu0 %v924
    %2200 = vmatpush1.msra.mxu0 %v923
    %2201 = vmatprep.subr.mxu0 %v932
    %2202 = vmatpush1.msra.mxu0 %v931
    %2203 = vmatprep.subr.mxu0 %v940
    %2204 = vmatpush1.msra.mxu0 %v939
    %2205 = vmatprep.subr.mxu0 %v948
    %2206 = vmatpush1.msra.mxu0 %v947
    %2207 = vmatprep.subr.mxu0 %v956
    %2208 = vmatpush1.msra.mxu0 %v955
    %2209 = vmatprep.subr.mxu0 %v964
    %2210 = vmatpush1.msra.mxu0 %v963
    %2211 = vmatprep.subr.mxu0 %v972
    %2212 = vmatpush1.msra.mxu0 %v971
    %2213 = vmatprep.subr.mxu0 %v980
    %2214 = vmatpush1.msra.mxu0 %v979
    %2215 = vmatprep.subr.mxu0 %v988
    %2216 = vmatpush1.msra.mxu0 %v987
    %2217 = vmatprep.subr.mxu0 %v996
    %2218 = vmatpush1.msra.mxu0 %v995
    %2219 = vmatprep.subr.mxu0 %v1004
    %2220 = vmatpush1.msra.mxu0 %v1003
    %2221 = vmatprep.subr.mxu0 %v1012
    %2222 = vmatpush1.msra.mxu0 %v1011
    %2223 = vmatprep.subr.mxu0 %v1020
    %2224 = vmatpush1.msra.mxu0 %v1019
    %2225 = vmatprep.subr.mxu0 %v1028
    %2226 = vmatpush1.msra.mxu0 %v1027
    %2227 = vmatprep.subr.mxu0 %v1036
    %2228 = vmatpush1.msra.mxu0 %v1035
    %2229 = vmatprep.subr.mxu0 %v1044
    %2230 = vmatpush1.msra.mxu0 %v1043
    %2231 = vmatprep.subr.mxu0 %v1052
    %2232 = vmatpush1.msra.mxu0 %v1051
    %2233 = vmatprep.subr.mxu0 %v1060
    %2234 = vmatpush1.msra.mxu0 %v1059
    %2235 = vmatprep.subr.mxu0 %v1068
    %2236 = vmatpush1.msra.mxu0 %v1067
    %2237 = vmatprep.subr.mxu0 %v1076
    %2238 = vmatpush1.msra.mxu0 %v1075
    %2239 = vmatprep.subr.mxu0 %v1084
    %2240 = vmatpush1.msra.mxu0 %v1083
    %2241 = vmatprep.subr.mxu0 %v1092
    %2242 = vmatpush1.msra.mxu0 %v1091
    %2243 = vmatprep.subr.mxu0 %v1100
    %2244 = vmatpush1.msra.mxu0 %v1099
    %2245 = vmatprep.subr.mxu0 %v1108
    %2246 = vmatpush1.msra.mxu0 %v1107
    %2247 = vmatprep.subr.mxu0 %v1116
    %2248 = vmatpush1.msra.mxu0 %v1115
    %2249 = vmatprep.subr.mxu0 %v1124
    %2250 = vmatpush1.msra.mxu0 %v1123
    %2251 = vmatprep.subr.mxu0 %v1132
    %2252 = vmatpush1.msra.mxu0 %v1131
    %2253 = vmatprep.mubr.f32.mxu0 %v874
    %2254 = vmatmul.mubr.f32.gmra.mrb[0].mxu0 %v873
    %v2255 = vpop.f32.mrb[0].mxu0
    %v2256 = vadd.f32 0.0, %v2255
    %v2257 = vpop.f32.mrb[0].mxu0
    %v2258 = vadd.f32 0.0, %v2257
    %2259 = vdwg.mxu0
    %2260 = vmatprep.subr.mxu0 %v1140
    %2261 = vmatpush1.msra.mxu0 %v1139
    %2262 = vmatprep.subr.mxu0 %v1148
    %2263 = vmatpush1.msra.mxu0 %v1147
    %2264 = vmatprep.subr.mxu0 %v1156
    %2265 = vmatpush1.msra.mxu0 %v1155
    %2266 = vmatprep.subr.mxu0 %v1164
    %2267 = vmatpush1.msra.mxu0 %v1163
    %2268 = vmatprep.subr.mxu0 %v1172
    %2269 = vmatpush1.msra.mxu0 %v1171
    %2270 = vmatprep.subr.mxu0 %v1180
    %2271 = vmatpush1.msra.mxu0 %v1179
    %2272 = vmatprep.subr.mxu0 %v1188
    %2273 = vmatpush1.msra.mxu0 %v1187
    %2274 = vmatprep.subr.mxu0 %v1196
    %2275 = vmatpush1.msra.mxu0 %v1195
    %2276 = vmatprep.subr.mxu0 %v1204
    %2277 = vmatpush1.msra.mxu0 %v1203
    %2278 = vmatprep.subr.mxu0 %v1212
    %2279 = vmatpush1.msra.mxu0 %v1211
    %2280 = vmatprep.subr.mxu0 %v1220
    %2281 = vmatpush1.msra.mxu0 %v1219
    %2282 = vmatprep.subr.mxu0 %v1228
    %2283 = vmatpush1.msra.mxu0 %v1227
    %2284 = vmatprep.subr.mxu0 %v1236
    %2285 = vmatpush1.msra.mxu0 %v1235
    %2286 = vmatprep.subr.mxu0 %v1244
    %2287 = vmatpush1.msra.mxu0 %v1243
    %2288 = vmatprep.subr.mxu0 %v1252
    %2289 = vmatpush1.msra.mxu0 %v1251
    %2290 = vmatprep.subr.mxu0 %v1260
    %2291 = vmatpush1.msra.mxu0 %v1259
    %2292 = vmatprep.subr.mxu0 %v1268
    %2293 = vmatpush1.msra.mxu0 %v1267
    %2294 = vmatprep.subr.mxu0 %v1276
    %2295 = vmatpush1.msra.mxu0 %v1275
    %2296 = vmatprep.subr.mxu0 %v1284
    %2297 = vmatpush1.msra.mxu0 %v1283
    %2298 = vmatprep.subr.mxu0 %v1292
    %2299 = vmatpush1.msra.mxu0 %v1291
    %2300 = vmatprep.subr.mxu0 %v1300
    %2301 = vmatpush1.msra.mxu0 %v1299
    %2302 = vmatprep.subr.mxu0 %v1308
    %2303 = vmatpush1.msra.mxu0 %v1307
    %2304 = vmatprep.subr.mxu0 %v1316
    %2305 = vmatpush1.msra.mxu0 %v1315
    %2306 = vmatprep.subr.mxu0 %v1324
    %2307 = vmatpush1.msra.mxu0 %v1323
    %2308 = vmatprep.subr.mxu0 %v1332
    %2309 = vmatpush1.msra.mxu0 %v1331
    %2310 = vmatprep.subr.mxu0 %v1340
    %2311 = vmatpush1.msra.mxu0 %v1339
    %2312 = vmatprep.subr.mxu0 %v1348
    %2313 = vmatpush1.msra.mxu0 %v1347
    %2314 = vmatprep.subr.mxu0 %v1356
    %2315 = vmatpush1.msra.mxu0 %v1355
    %2316 = vmatprep.subr.mxu0 %v1364
    %2317 = vmatpush1.msra.mxu0 %v1363
    %2318 = vmatprep.subr.mxu0 %v1372
    %2319 = vmatpush1.msra.mxu0 %v1371
    %2320 = vmatprep.subr.mxu0 %v1380
    %2321 = vmatpush1.msra.mxu0 %v1379
    %2322 = vmatprep.subr.mxu0 %v1388
    %2323 = vmatpush1.msra.mxu0 %v1387
    %2324 = vmatprep.mubr.f32.mxu0 %v876
    %2325 = vmatmul.mubr.f32.gmra.mrb[0].mxu0 %v875
    %v2326 = vpop.f32.mrb[0].mxu0
    %v2327 = vadd.f32 %v2256, %v2326
    %v2328 = vpop.f32.mrb[0].mxu0
    %v2329 = vadd.f32 %v2258, %v2328
    %2330 = vdwg.mxu0
    %2331 = vmatprep.subr.mxu0 %v1396
    %2332 = vmatpush1.msra.mxu0 %v1395
    %2333 = vmatprep.subr.mxu0 %v1404
    %2334 = vmatpush1.msra.mxu0 %v1403
    %2335 = vmatprep.subr.mxu0 %v1412
    %2336 = vmatpush1.msra.mxu0 %v1411
    %2337 = vmatprep.subr.mxu0 %v1420
    %2338 = vmatpush1.msra.mxu0 %v1419
    %2339 = vmatprep.subr.mxu0 %v1428
    %2340 = vmatpush1.msra.mxu0 %v1427
    %2341 = vmatprep.subr.mxu0 %v1436
    %2342 = vmatpush1.msra.mxu0 %v1435
    %2343 = vmatprep.subr.mxu0 %v1444
    %2344 = vmatpush1.msra.mxu0 %v1443
    %2345 = vmatprep.subr.mxu0 %v1452
    %2346 = vmatpush1.msra.mxu0 %v1451
    %2347 = vmatprep.subr.mxu0 %v1460
    %2348 = vmatpush1.msra.mxu0 %v1459
    %2349 = vmatprep.subr.mxu0 %v1468
    %2350 = vmatpush1.msra.mxu0 %v1467
    %2351 = vmatprep.subr.mxu0 %v1476
    %2352 = vmatpush1.msra.mxu0 %v1475
    %2353 = vmatprep.subr.mxu0 %v1484
    %2354 = vmatpush1.msra.mxu0 %v1483
    %2355 = vmatprep.subr.mxu0 %v1492
    %2356 = vmatpush1.msra.mxu0 %v1491
    %2357 = vmatprep.subr.mxu0 %v1500
    %2358 = vmatpush1.msra.mxu0 %v1499
    %2359 = vmatprep.subr.mxu0 %v1508
    %2360 = vmatpush1.msra.mxu0 %v1507
    %2361 = vmatprep.subr.mxu0 %v1516
    %2362 = vmatpush1.msra.mxu0 %v1515
    %2363 = vmatprep.subr.mxu0 %v1524
    %2364 = vmatpush1.msra.mxu0 %v1523
    %2365 = vmatprep.subr.mxu0 %v1532
    %2366 = vmatpush1.msra.mxu0 %v1531
    %2367 = vmatprep.subr.mxu0 %v1540
    %2368 = vmatpush1.msra.mxu0 %v1539
    %2369 = vmatprep.subr.mxu0 %v1548
    %2370 = vmatpush1.msra.mxu0 %v1547
    %2371 = vmatprep.subr.mxu0 %v1556
    %2372 = vmatpush1.msra.mxu0 %v1555
    %2373 = vmatprep.subr.mxu0 %v1564
    %2374 = vmatpush1.msra.mxu0 %v1563
    %2375 = vmatprep.subr.mxu0 %v1572
    %2376 = vmatpush1.msra.mxu0 %v1571
    %2377 = vmatprep.subr.mxu0 %v1580
    %2378 = vmatpush1.msra.mxu0 %v1579
    %2379 = vmatprep.subr.mxu0 %v1588
    %2380 = vmatpush1.msra.mxu0 %v1587
    %2381 = vmatprep.subr.mxu0 %v1596
    %2382 = vmatpush1.msra.mxu0 %v1595
    %2383 = vmatprep.subr.mxu0 %v1604
    %2384 = vmatpush1.msra.mxu0 %v1603
    %2385 = vmatprep.subr.mxu0 %v1612
    %2386 = vmatpush1.msra.mxu0 %v1611
    %2387 = vmatprep.subr.mxu0 %v1620
    %2388 = vmatpush1.msra.mxu0 %v1619
    %2389 = vmatprep.subr.mxu0 %v1628
    %2390 = vmatpush1.msra.mxu0 %v1627
    %2391 = vmatprep.subr.mxu0 %v1636
    %2392 = vmatpush1.msra.mxu0 %v1635
    %2393 = vmatprep.subr.mxu0 %v1644
    %2394 = vmatpush1.msra.mxu0 %v1643
    %2395 = vmatprep.mubr.f32.mxu0 %v878
    %2396 = vmatmul.mubr.f32.gmra.mrb[0].mxu0 %v877
    %v2397 = vpop.f32.mrb[0].mxu0
    %v2398 = vadd.f32 %v2327, %v2397
    %v2399 = vpop.f32.mrb[0].mxu0
    %v2400 = vadd.f32 %v2329, %v2399
    %2401 = vdwg.mxu0
    %2402 = vmatprep.subr.mxu0 %v1652
    %2403 = vmatpush1.msra.mxu0 %v1651
    %2404 = vmatprep.subr.mxu0 %v1660
    %2405 = vmatpush1.msra.mxu0 %v1659
    %2406 = vmatprep.subr.mxu0 %v1668
    %2407 = vmatpush1.msra.mxu0 %v1667
    %2408 = vmatprep.subr.mxu0 %v1676
    %2409 = vmatpush1.msra.mxu0 %v1675
    %2410 = vmatprep.subr.mxu0 %v1684
    %2411 = vmatpush1.msra.mxu0 %v1683
    %2412 = vmatprep.subr.mxu0 %v1692
    %2413 = vmatpush1.msra.mxu0 %v1691
    %2414 = vmatprep.subr.mxu0 %v1700
    %2415 = vmatpush1.msra.mxu0 %v1699
    %2416 = vmatprep.subr.mxu0 %v1708
    %2417 = vmatpush1.msra.mxu0 %v1707
    %2418 = vmatprep.subr.mxu0 %v1716
    %2419 = vmatpush1.msra.mxu0 %v1715
    %2420 = vmatprep.subr.mxu0 %v1724
    %2421 = vmatpush1.msra.mxu0 %v1723
    %2422 = vmatprep.subr.mxu0 %v1732
    %2423 = vmatpush1.msra.mxu0 %v1731
    %2424 = vmatprep.subr.mxu0 %v1740
    %2425 = vmatpush1.msra.mxu0 %v1739
    %2426 = vmatprep.subr.mxu0 %v1748
    %2427 = vmatpush1.msra.mxu0 %v1747
    %2428 = vmatprep.subr.mxu0 %v1756
    %2429 = vmatpush1.msra.mxu0 %v1755
    %2430 = vmatprep.subr.mxu0 %v1764
    %2431 = vmatpush1.msra.mxu0 %v1763
    %2432 = vmatprep.subr.mxu0 %v1772
    %2433 = vmatpush1.msra.mxu0 %v1771
    %2434 = vmatprep.subr.mxu0 %v1780
    %2435 = vmatpush1.msra.mxu0 %v1779
    %2436 = vmatprep.subr.mxu0 %v1788
    %2437 = vmatpush1.msra.mxu0 %v1787
    %2438 = vmatprep.subr.mxu0 %v1796
    %2439 = vmatpush1.msra.mxu0 %v1795
    %2440 = vmatprep.subr.mxu0 %v1804
    %2441 = vmatpush1.msra.mxu0 %v1803
    %2442 = vmatprep.subr.mxu0 %v1812
    %2443 = vmatpush1.msra.mxu0 %v1811
    %2444 = vmatprep.subr.mxu0 %v1820
    %2445 = vmatpush1.msra.mxu0 %v1819
    %2446 = vmatprep.subr.mxu0 %v1828
    %2447 = vmatpush1.msra.mxu0 %v1827
    %2448 = vmatprep.subr.mxu0 %v1836
    %2449 = vmatpush1.msra.mxu0 %v1835
    %2450 = vmatprep.subr.mxu0 %v1844
    %2451 = vmatpush1.msra.mxu0 %v1843
    %2452 = vmatprep.subr.mxu0 %v1852
    %2453 = vmatpush1.msra.mxu0 %v1851
    %2454 = vmatprep.subr.mxu0 %v1860
    %2455 = vmatpush1.msra.mxu0 %v1859
    %2456 = vmatprep.subr.mxu0 %v1868
    %2457 = vmatpush1.msra.mxu0 %v1867
    %2458 = vmatprep.subr.mxu0 %v1876
    %2459 = vmatpush1.msra.mxu0 %v1875
    %2460 = vmatprep.subr.mxu0 %v1884
    %2461 = vmatpush1.msra.mxu0 %v1883
    %2462 = vmatprep.subr.mxu0 %v1892
    %2463 = vmatpush1.msra.mxu0 %v1891
    %2464 = vmatprep.subr.mxu0 %v1900
    %2465 = vmatpush1.msra.mxu0 %v1899
    %2466 = vmatprep.mubr.f32.mxu0 %v880
    %2467 = vmatmul.mubr.f32.gmra.mrb[0].mxu0 %v879
    %v2468 = vpop.f32.mrb[0].mxu0
    %v2469 = vadd.f32 %v2398, %v2468
    %v2470 = vpop.f32.mrb[0].mxu0
    %v2471 = vadd.f32 %v2400, %v2470
    %2472 = vdwg.mxu0
    %2473 = vmatprep.subr.mxu0 %v886
    %2474 = vmatpush1.msra.mxu0 %v885
    %2475 = vmatprep.subr.mxu0 %v894
    %2476 = vmatpush1.msra.mxu0 %v893
    %2477 = vmatprep.subr.mxu0 %v902
    %2478 = vmatpush1.msra.mxu0 %v901
    %2479 = vmatprep.subr.mxu0 %v910
    %2480 = vmatpush1.msra.mxu0 %v909
    %2481 = vmatprep.subr.mxu0 %v918
    %2482 = vmatpush1.msra.mxu0 %v917
    %2483 = vmatprep.subr.mxu0 %v926
    %2484 = vmatpush1.msra.mxu0 %v925
    %2485 = vmatprep.subr.mxu0 %v934
    %2486 = vmatpush1.msra.mxu0 %v933
    %2487 = vmatprep.subr.mxu0 %v942
    %2488 = vmatpush1.msra.mxu0 %v941
    %2489 = vmatprep.subr.mxu0 %v950
    %2490 = vmatpush1.msra.mxu0 %v949
    %2491 = vmatprep.subr.mxu0 %v958
    %2492 = vmatpush1.msra.mxu0 %v957
    %2493 = vmatprep.subr.mxu0 %v966
    %2494 = vmatpush1.msra.mxu0 %v965
    %2495 = vmatprep.subr.mxu0 %v974
    %2496 = vmatpush1.msra.mxu0 %v973
    %2497 = vmatprep.subr.mxu0 %v982
    %2498 = vmatpush1.msra.mxu0 %v981
    %2499 = vmatprep.subr.mxu0 %v990
    %2500 = vmatpush1.msra.mxu0 %v989
    %2501 = vmatprep.subr.mxu0 %v998
    %2502 = vmatpush1.msra.mxu0 %v997
    %2503 = vmatprep.subr.mxu0 %v1006
    %2504 = vmatpush1.msra.mxu0 %v1005
    %2505 = vmatprep.subr.mxu0 %v1014
    %2506 = vmatpush1.msra.mxu0 %v1013
    %2507 = vmatprep.subr.mxu0 %v1022
    %2508 = vmatpush1.msra.mxu0 %v1021
    %2509 = vmatprep.subr.mxu0 %v1030
    %2510 = vmatpush1.msra.mxu0 %v1029
    %2511 = vmatprep.subr.mxu0 %v1038
    %2512 = vmatpush1.msra.mxu0 %v1037
    %2513 = vmatprep.subr.mxu0 %v1046
    %2514 = vmatpush1.msra.mxu0 %v1045
    %2515 = vmatprep.subr.mxu0 %v1054
    %2516 = vmatpush1.msra.mxu0 %v1053
    %2517 = vmatprep.subr.mxu0 %v1062
    %2518 = vmatpush1.msra.mxu0 %v1061
    %2519 = vmatprep.subr.mxu0 %v1070
    %2520 = vmatpush1.msra.mxu0 %v1069
    %2521 = vmatprep.subr.mxu0 %v1078
    %2522 = vmatpush1.msra.mxu0 %v1077
    %2523 = vmatprep.subr.mxu0 %v1086
    %2524 = vmatpush1.msra.mxu0 %v1085
    %2525 = vmatprep.subr.mxu0 %v1094
    %2526 = vmatpush1.msra.mxu0 %v1093
    %2527 = vmatprep.subr.mxu0 %v1102
    %2528 = vmatpush1.msra.mxu0 %v1101
    %2529 = vmatprep.subr.mxu0 %v1110
    %2530 = vmatpush1.msra.mxu0 %v1109
    %2531 = vmatprep.subr.mxu0 %v1118
    %2532 = vmatpush1.msra.mxu0 %v1117
    %2533 = vmatprep.subr.mxu0 %v1126
    %2534 = vmatpush1.msra.mxu0 %v1125
    %2535 = vmatprep.subr.mxu0 %v1134
    %2536 = vmatpush1.msra.mxu0 %v1133
    %2537 = vmatprep.mubr.f32.mxu0 %v874
    %2538 = vmatmul.mubr.f32.gmra.mrb[0].mxu0 %v873
    %v2539 = vpop.f32.mrb[0].mxu0
    %v2540 = vadd.f32 0.0, %v2539
    %v2541 = vpop.f32.mrb[0].mxu0
    %v2542 = vadd.f32 0.0, %v2541
    %2543 = vdwg.mxu0
    %2544 = vmatprep.subr.mxu0 %v1142
    %2545 = vmatpush1.msra.mxu0 %v1141
    %2546 = vmatprep.subr.mxu0 %v1150
    %2547 = vmatpush1.msra.mxu0 %v1149
    %2548 = vmatprep.subr.mxu0 %v1158
    %2549 = vmatpush1.msra.mxu0 %v1157
    %2550 = vmatprep.subr.mxu0 %v1166
    %2551 = vmatpush1.msra.mxu0 %v1165
    %2552 = vmatprep.subr.mxu0 %v1174
    %2553 = vmatpush1.msra.mxu0 %v1173
    %2554 = vmatprep.subr.mxu0 %v1182
    %2555 = vmatpush1.msra.mxu0 %v1181
    %2556 = vmatprep.subr.mxu0 %v1190
    %2557 = vmatpush1.msra.mxu0 %v1189
    %2558 = vmatprep.subr.mxu0 %v1198
    %2559 = vmatpush1.msra.mxu0 %v1197
    %2560 = vmatprep.subr.mxu0 %v1206
    %2561 = vmatpush1.msra.mxu0 %v1205
    %2562 = vmatprep.subr.mxu0 %v1214
    %2563 = vmatpush1.msra.mxu0 %v1213
    %2564 = vmatprep.subr.mxu0 %v1222
    %2565 = vmatpush1.msra.mxu0 %v1221
    %2566 = vmatprep.subr.mxu0 %v1230
    %2567 = vmatpush1.msra.mxu0 %v1229
    %2568 = vmatprep.subr.mxu0 %v1238
    %2569 = vmatpush1.msra.mxu0 %v1237
    %2570 = vmatprep.subr.mxu0 %v1246
    %2571 = vmatpush1.msra.mxu0 %v1245
    %2572 = vmatprep.subr.mxu0 %v1254
    %2573 = vmatpush1.msra.mxu0 %v1253
    %2574 = vmatprep.subr.mxu0 %v1262
    %2575 = vmatpush1.msra.mxu0 %v1261
    %2576 = vmatprep.subr.mxu0 %v1270
    %2577 = vmatpush1.msra.mxu0 %v1269
    %2578 = vmatprep.subr.mxu0 %v1278
    %2579 = vmatpush1.msra.mxu0 %v1277
    %2580 = vmatprep.subr.mxu0 %v1286
    %2581 = vmatpush1.msra.mxu0 %v1285
    %2582 = vmatprep.subr.mxu0 %v1294
    %2583 = vmatpush1.msra.mxu0 %v1293
    %2584 = vmatprep.subr.mxu0 %v1302
    %2585 = vmatpush1.msra.mxu0 %v1301
    %2586 = vmatprep.subr.mxu0 %v1310
    %2587 = vmatpush1.msra.mxu0 %v1309
    %2588 = vmatprep.subr.mxu0 %v1318
    %2589 = vmatpush1.msra.mxu0 %v1317
    %2590 = vmatprep.subr.mxu0 %v1326
    %2591 = vmatpush1.msra.mxu0 %v1325
    %2592 = vmatprep.subr.mxu0 %v1334
    %2593 = vmatpush1.msra.mxu0 %v1333
    %2594 = vmatprep.subr.mxu0 %v1342
    %2595 = vmatpush1.msra.mxu0 %v1341
    %2596 = vmatprep.subr.mxu0 %v1350
    %2597 = vmatpush1.msra.mxu0 %v1349
    %2598 = vmatprep.subr.mxu0 %v1358
    %2599 = vmatpush1.msra.mxu0 %v1357
    %2600 = vmatprep.subr.mxu0 %v1366
    %2601 = vmatpush1.msra.mxu0 %v1365
    %2602 = vmatprep.subr.mxu0 %v1374
    %2603 = vmatpush1.msra.mxu0 %v1373
    %2604 = vmatprep.subr.mxu0 %v1382
    %2605 = vmatpush1.msra.mxu0 %v1381
    %2606 = vmatprep.subr.mxu0 %v1390
    %2607 = vmatpush1.msra.mxu0 %v1389
    %2608 = vmatprep.mubr.f32.mxu0 %v876
    %2609 = vmatmul.mubr.f32.gmra.mrb[0].mxu0 %v875
    %v2610 = vpop.f32.mrb[0].mxu0
    %v2611 = vadd.f32 %v2540, %v2610
    %v2612 = vpop.f32.mrb[0].mxu0
    %v2613 = vadd.f32 %v2542, %v2612
    %2614 = vdwg.mxu0
    %2615 = vmatprep.subr.mxu0 %v1398
    %2616 = vmatpush1.msra.mxu0 %v1397
    %2617 = vmatprep.subr.mxu0 %v1406
    %2618 = vmatpush1.msra.mxu0 %v1405
    %2619 = vmatprep.subr.mxu0 %v1414
    %2620 = vmatpush1.msra.mxu0 %v1413
    %2621 = vmatprep.subr.mxu0 %v1422
    %2622 = vmatpush1.msra.mxu0 %v1421
    %2623 = vmatprep.subr.mxu0 %v1430
    %2624 = vmatpush1.msra.mxu0 %v1429
    %2625 = vmatprep.subr.mxu0 %v1438
    %2626 = vmatpush1.msra.mxu0 %v1437
    %2627 = vmatprep.subr.mxu0 %v1446
    %2628 = vmatpush1.msra.mxu0 %v1445
    %2629 = vmatprep.subr.mxu0 %v1454
    %2630 = vmatpush1.msra.mxu0 %v1453
    %2631 = vmatprep.subr.mxu0 %v1462
    %2632 = vmatpush1.msra.mxu0 %v1461
    %2633 = vmatprep.subr.mxu0 %v1470
    %2634 = vmatpush1.msra.mxu0 %v1469
    %2635 = vmatprep.subr.mxu0 %v1478
    %2636 = vmatpush1.msra.mxu0 %v1477
    %2637 = vmatprep.subr.mxu0 %v1486
    %2638 = vmatpush1.msra.mxu0 %v1485
    %2639 = vmatprep.subr.mxu0 %v1494
    %2640 = vmatpush1.msra.mxu0 %v1493
    %2641 = vmatprep.subr.mxu0 %v1502
    %2642 = vmatpush1.msra.mxu0 %v1501
    %2643 = vmatprep.subr.mxu0 %v1510
    %2644 = vmatpush1.msra.mxu0 %v1509
    %2645 = vmatprep.subr.mxu0 %v1518
    %2646 = vmatpush1.msra.mxu0 %v1517
    %2647 = vmatprep.subr.mxu0 %v1526
    %2648 = vmatpush1.msra.mxu0 %v1525
    %2649 = vmatprep.subr.mxu0 %v1534
    %2650 = vmatpush1.msra.mxu0 %v1533
    %2651 = vmatprep.subr.mxu0 %v1542
    %2652 = vmatpush1.msra.mxu0 %v1541
    %2653 = vmatprep.subr.mxu0 %v1550
    %2654 = vmatpush1.msra.mxu0 %v1549
    %2655 = vmatprep.subr.mxu0 %v1558
    %2656 = vmatpush1.msra.mxu0 %v1557
    %2657 = vmatprep.subr.mxu0 %v1566
    %2658 = vmatpush1.msra.mxu0 %v1565
    %2659 = vmatprep.subr.mxu0 %v1574
    %2660 = vmatpush1.msra.mxu0 %v1573
    %2661 = vmatprep.subr.mxu0 %v1582
    %2662 = vmatpush1.msra.mxu0 %v1581
    %2663 = vmatprep.subr.mxu0 %v1590
    %2664 = vmatpush1.msra.mxu0 %v1589
    %2665 = vmatprep.subr.mxu0 %v1598
    %2666 = vmatpush1.msra.mxu0 %v1597
    %2667 = vmatprep.subr.mxu0 %v1606
    %2668 = vmatpush1.msra.mxu0 %v1605
    %2669 = vmatprep.subr.mxu0 %v1614
    %2670 = vmatpush1.msra.mxu0 %v1613
    %2671 = vmatprep.subr.mxu0 %v1622
    %2672 = vmatpush1.msra.mxu0 %v1621
    %2673 = vmatprep.subr.mxu0 %v1630
    %2674 = vmatpush1.msra.mxu0 %v1629
    %2675 = vmatprep.subr.mxu0 %v1638
    %2676 = vmatpush1.msra.mxu0 %v1637
    %2677 = vmatprep.subr.mxu0 %v1646
    %2678 = vmatpush1.msra.mxu0 %v1645
    %2679 = vmatprep.mubr.f32.mxu0 %v878
    %2680 = vmatmul.mubr.f32.gmra.mrb[0].mxu0 %v877
    %v2681 = vpop.f32.mrb[0].mxu0
    %v2682 = vadd.f32 %v2611, %v2681
    %v2683 = vpop.f32.mrb[0].mxu0
    %v2684 = vadd.f32 %v2613, %v2683
    %2685 = vdwg.mxu0
    %2686 = vmatprep.subr.mxu0 %v1654
    %2687 = vmatpush1.msra.mxu0 %v1653
    %2688 = vmatprep.subr.mxu0 %v1662
    %2689 = vmatpush1.msra.mxu0 %v1661
    %2690 = vmatprep.subr.mxu0 %v1670
    %2691 = vmatpush1.msra.mxu0 %v1669
    %2692 = vmatprep.subr.mxu0 %v1678
    %2693 = vmatpush1.msra.mxu0 %v1677
    %2694 = vmatprep.subr.mxu0 %v1686
    %2695 = vmatpush1.msra.mxu0 %v1685
    %2696 = vmatprep.subr.mxu0 %v1694
    %2697 = vmatpush1.msra.mxu0 %v1693
    %2698 = vmatprep.subr.mxu0 %v1702
    %2699 = vmatpush1.msra.mxu0 %v1701
    %2700 = vmatprep.subr.mxu0 %v1710
    %2701 = vmatpush1.msra.mxu0 %v1709
    %2702 = vmatprep.subr.mxu0 %v1718
    %2703 = vmatpush1.msra.mxu0 %v1717
    %2704 = vmatprep.subr.mxu0 %v1726
    %2705 = vmatpush1.msra.mxu0 %v1725
    %2706 = vmatprep.subr.mxu0 %v1734
    %2707 = vmatpush1.msra.mxu0 %v1733
    %2708 = vmatprep.subr.mxu0 %v1742
    %2709 = vmatpush1.msra.mxu0 %v1741
    %2710 = vmatprep.subr.mxu0 %v1750
    %2711 = vmatpush1.msra.mxu0 %v1749
    %2712 = vmatprep.subr.mxu0 %v1758
    %2713 = vmatpush1.msra.mxu0 %v1757
    %2714 = vmatprep.subr.mxu0 %v1766
    %2715 = vmatpush1.msra.mxu0 %v1765
    %2716 = vmatprep.subr.mxu0 %v1774
    %2717 = vmatpush1.msra.mxu0 %v1773
    %2718 = vmatprep.subr.mxu0 %v1782
    %2719 = vmatpush1.msra.mxu0 %v1781
    %2720 = vmatprep.subr.mxu0 %v1790
    %2721 = vmatpush1.msra.mxu0 %v1789
    %2722 = vmatprep.subr.mxu0 %v1798
    %2723 = vmatpush1.msra.mxu0 %v1797
    %2724 = vmatprep.subr.mxu0 %v1806
    %2725 = vmatpush1.msra.mxu0 %v1805
    %2726 = vmatprep.subr.mxu0 %v1814
    %2727 = vmatpush1.msra.mxu0 %v1813
    %2728 = vmatprep.subr.mxu0 %v1822
    %2729 = vmatpush1.msra.mxu0 %v1821
    %2730 = vmatprep.subr.mxu0 %v1830
    %2731 = vmatpush1.msra.mxu0 %v1829
    %2732 = vmatprep.subr.mxu0 %v1838
    %2733 = vmatpush1.msra.mxu0 %v1837
    %2734 = vmatprep.subr.mxu0 %v1846
    %2735 = vmatpush1.msra.mxu0 %v1845
    %2736 = vmatprep.subr.mxu0 %v1854
    %2737 = vmatpush1.msra.mxu0 %v1853
    %2738 = vmatprep.subr.mxu0 %v1862
    %2739 = vmatpush1.msra.mxu0 %v1861
    %2740 = vmatprep.subr.mxu0 %v1870
    %2741 = vmatpush1.msra.mxu0 %v1869
    %2742 = vmatprep.subr.mxu0 %v1878
    %2743 = vmatpush1.msra.mxu0 %v1877
    %2744 = vmatprep.subr.mxu0 %v1886
    %2745 = vmatpush1.msra.mxu0 %v1885
    %2746 = vmatprep.subr.mxu0 %v1894
    %2747 = vmatpush1.msra.mxu0 %v1893
    %2748 = vmatprep.subr.mxu0 %v1902
    %2749 = vmatpush1.msra.mxu0 %v1901
    %2750 = vmatprep.mubr.f32.mxu0 %v880
    %2751 = vmatmul.mubr.f32.gmra.mrb[0].mxu0 %v879
    %v2752 = vpop.f32.mrb[0].mxu0
    %v2753 = vadd.f32 %v2682, %v2752
    %v2754 = vpop.f32.mrb[0].mxu0
    %v2755 = vadd.f32 %v2684, %v2754
    %2756 = vdwg.mxu0
    %2757 = vmatprep.subr.mxu0 %v888
    %2758 = vmatpush1.msra.mxu0 %v887
    %2759 = vmatprep.subr.mxu0 %v896
    %2760 = vmatpush1.msra.mxu0 %v895
    %2761 = vmatprep.subr.mxu0 %v904
    %2762 = vmatpush1.msra.mxu0 %v903
    %2763 = vmatprep.subr.mxu0 %v912
    %2764 = vmatpush1.msra.mxu0 %v911
    %2765 = vmatprep.subr.mxu0 %v920
    %2766 = vmatpush1.msra.mxu0 %v919
    %2767 = vmatprep.subr.mxu0 %v928
    %2768 = vmatpush1.msra.mxu0 %v927
    %2769 = vmatprep.subr.mxu0 %v936
    %2770 = vmatpush1.msra.mxu0 %v935
    %2771 = vmatprep.subr.mxu0 %v944
    %2772 = vmatpush1.msra.mxu0 %v943
    %2773 = vmatprep.subr.mxu0 %v952
    %2774 = vmatpush1.msra.mxu0 %v951
    %2775 = vmatprep.subr.mxu0 %v960
    %2776 = vmatpush1.msra.mxu0 %v959
    %2777 = vmatprep.subr.mxu0 %v968
    %2778 = vmatpush1.msra.mxu0 %v967
    %2779 = vmatprep.subr.mxu0 %v976
    %2780 = vmatpush1.msra.mxu0 %v975
    %2781 = vmatprep.subr.mxu0 %v984
    %2782 = vmatpush1.msra.mxu0 %v983
    %2783 = vmatprep.subr.mxu0 %v992
    %2784 = vmatpush1.msra.mxu0 %v991
    %2785 = vmatprep.subr.mxu0 %v1000
    %2786 = vmatpush1.msra.mxu0 %v999
    %2787 = vmatprep.subr.mxu0 %v1008
    %2788 = vmatpush1.msra.mxu0 %v1007
    %2789 = vmatprep.subr.mxu0 %v1016
    %2790 = vmatpush1.msra.mxu0 %v1015
    %2791 = vmatprep.subr.mxu0 %v1024
    %2792 = vmatpush1.msra.mxu0 %v1023
    %2793 = vmatprep.subr.mxu0 %v1032
    %2794 = vmatpush1.msra.mxu0 %v1031
    %2795 = vmatprep.subr.mxu0 %v1040
    %2796 = vmatpush1.msra.mxu0 %v1039
    %2797 = vmatprep.subr.mxu0 %v1048
    %2798 = vmatpush1.msra.mxu0 %v1047
    %2799 = vmatprep.subr.mxu0 %v1056
    %2800 = vmatpush1.msra.mxu0 %v1055
    %2801 = vmatprep.subr.mxu0 %v1064
    %2802 = vmatpush1.msra.mxu0 %v1063
    %2803 = vmatprep.subr.mxu0 %v1072
    %2804 = vmatpush1.msra.mxu0 %v1071
    %2805 = vmatprep.subr.mxu0 %v1080
    %2806 = vmatpush1.msra.mxu0 %v1079
    %2807 = vmatprep.subr.mxu0 %v1088
    %2808 = vmatpush1.msra.mxu0 %v1087
    %2809 = vmatprep.subr.mxu0 %v1096
    %2810 = vmatpush1.msra.mxu0 %v1095
    %2811 = vmatprep.subr.mxu0 %v1104
    %2812 = vmatpush1.msra.mxu0 %v1103
    %2813 = vmatprep.subr.mxu0 %v1112
    %2814 = vmatpush1.msra.mxu0 %v1111
    %2815 = vmatprep.subr.mxu0 %v1120
    %2816 = vmatpush1.msra.mxu0 %v1119
    %2817 = vmatprep.subr.mxu0 %v1128
    %2818 = vmatpush1.msra.mxu0 %v1127
    %2819 = vmatprep.subr.mxu0 %v1136
    %2820 = vmatpush1.msra.mxu0 %v1135
    %2821 = vmatprep.mubr.f32.mxu0 %v874
    %2822 = vmatmul.mubr.f32.gmra.mrb[0].mxu0 %v873
    %v2823 = vpop.f32.mrb[0].mxu0
    %v2824 = vadd.f32 0.0, %v2823
    %v2825 = vpop.f32.mrb[0].mxu0
    %v2826 = vadd.f32 0.0, %v2825
    %2827 = vdwg.mxu0
    %2828 = vmatprep.subr.mxu0 %v1144
    %2829 = vmatpush1.msra.mxu0 %v1143
    %2830 = vmatprep.subr.mxu0 %v1152
    %2831 = vmatpush1.msra.mxu0 %v1151
    %2832 = vmatprep.subr.mxu0 %v1160
    %2833 = vmatpush1.msra.mxu0 %v1159
    %2834 = vmatprep.subr.mxu0 %v1168
    %2835 = vmatpush1.msra.mxu0 %v1167
    %2836 = vmatprep.subr.mxu0 %v1176
    %2837 = vmatpush1.msra.mxu0 %v1175
    %2838 = vmatprep.subr.mxu0 %v1184
    %2839 = vmatpush1.msra.mxu0 %v1183
    %2840 = vmatprep.subr.mxu0 %v1192
    %2841 = vmatpush1.msra.mxu0 %v1191
    %2842 = vmatprep.subr.mxu0 %v1200
    %2843 = vmatpush1.msra.mxu0 %v1199
    %2844 = vmatprep.subr.mxu0 %v1208
    %2845 = vmatpush1.msra.mxu0 %v1207
    %2846 = vmatprep.subr.mxu0 %v1216
    %2847 = vmatpush1.msra.mxu0 %v1215
    %2848 = vmatprep.subr.mxu0 %v1224
    %2849 = vmatpush1.msra.mxu0 %v1223
    %2850 = vmatprep.subr.mxu0 %v1232
    %2851 = vmatpush1.msra.mxu0 %v1231
    %2852 = vmatprep.subr.mxu0 %v1240
    %2853 = vmatpush1.msra.mxu0 %v1239
    %2854 = vmatprep.subr.mxu0 %v1248
    %2855 = vmatpush1.msra.mxu0 %v1247
    %2856 = vmatprep.subr.mxu0 %v1256
    %2857 = vmatpush1.msra.mxu0 %v1255
    %2858 = vmatprep.subr.mxu0 %v1264
    %2859 = vmatpush1.msra.mxu0 %v1263
    %2860 = vmatprep.subr.mxu0 %v1272
    %2861 = vmatpush1.msra.mxu0 %v1271
    %2862 = vmatprep.subr.mxu0 %v1280
    %2863 = vmatpush1.msra.mxu0 %v1279
    %2864 = vmatprep.subr.mxu0 %v1288
    %2865 = vmatpush1.msra.mxu0 %v1287
    %2866 = vmatprep.subr.mxu0 %v1296
    %2867 = vmatpush1.msra.mxu0 %v1295
    %2868 = vmatprep.subr.mxu0 %v1304
    %2869 = vmatpush1.msra.mxu0 %v1303
    %2870 = vmatprep.subr.mxu0 %v1312
    %2871 = vmatpush1.msra.mxu0 %v1311
    %2872 = vmatprep.subr.mxu0 %v1320
    %2873 = vmatpush1.msra.mxu0 %v1319
    %2874 = vmatprep.subr.mxu0 %v1328
    %2875 = vmatpush1.msra.mxu0 %v1327
    %2876 = vmatprep.subr.mxu0 %v1336
    %2877 = vmatpush1.msra.mxu0 %v1335
    %2878 = vmatprep.subr.mxu0 %v1344
    %2879 = vmatpush1.msra.mxu0 %v1343
    %2880 = vmatprep.subr.mxu0 %v1352
    %2881 = vmatpush1.msra.mxu0 %v1351
    %2882 = vmatprep.subr.mxu0 %v1360
    %2883 = vmatpush1.msra.mxu0 %v1359
    %2884 = vmatprep.subr.mxu0 %v1368
    %2885 = vmatpush1.msra.mxu0 %v1367
    %2886 = vmatprep.subr.mxu0 %v1376
    %2887 = vmatpush1.msra.mxu0 %v1375
    %2888 = vmatprep.subr.mxu0 %v1384
    %2889 = vmatpush1.msra.mxu0 %v1383
    %2890 = vmatprep.subr.mxu0 %v1392
    %2891 = vmatpush1.msra.mxu0 %v1391
    %2892 = vmatprep.mubr.f32.mxu0 %v876
    %2893 = vmatmul.mubr.f32.gmra.mrb[0].mxu0 %v875
    %v2894 = vpop.f32.mrb[0].mxu0
    %v2895 = vadd.f32 %v2824, %v2894
    %v2896 = vpop.f32.mrb[0].mxu0
    %v2897 = vadd.f32 %v2826, %v2896
    %2898 = vdwg.mxu0
    %2899 = vmatprep.subr.mxu0 %v1400
    %2900 = vmatpush1.msra.mxu0 %v1399
    %2901 = vmatprep.subr.mxu0 %v1408
    %2902 = vmatpush1.msra.mxu0 %v1407
    %2903 = vmatprep.subr.mxu0 %v1416
    %2904 = vmatpush1.msra.mxu0 %v1415
    %2905 = vmatprep.subr.mxu0 %v1424
    %2906 = vmatpush1.msra.mxu0 %v1423
    %2907 = vmatprep.subr.mxu0 %v1432
    %2908 = vmatpush1.msra.mxu0 %v1431
    %2909 = vmatprep.subr.mxu0 %v1440
    %2910 = vmatpush1.msra.mxu0 %v1439
    %2911 = vmatprep.subr.mxu0 %v1448
    %2912 = vmatpush1.msra.mxu0 %v1447
    %2913 = vmatprep.subr.mxu0 %v1456
    %2914 = vmatpush1.msra.mxu0 %v1455
    %2915 = vmatprep.subr.mxu0 %v1464
    %2916 = vmatpush1.msra.mxu0 %v1463
    %2917 = vmatprep.subr.mxu0 %v1472
    %2918 = vmatpush1.msra.mxu0 %v1471
    %2919 = vmatprep.subr.mxu0 %v1480
    %2920 = vmatpush1.msra.mxu0 %v1479
    %2921 = vmatprep.subr.mxu0 %v1488
    %2922 = vmatpush1.msra.mxu0 %v1487
    %2923 = vmatprep.subr.mxu0 %v1496
    %2924 = vmatpush1.msra.mxu0 %v1495
    %2925 = vmatprep.subr.mxu0 %v1504
    %2926 = vmatpush1.msra.mxu0 %v1503
    %2927 = vmatprep.subr.mxu0 %v1512
    %2928 = vmatpush1.msra.mxu0 %v1511
    %2929 = vmatprep.subr.mxu0 %v1520
    %2930 = vmatpush1.msra.mxu0 %v1519
    %2931 = vmatprep.subr.mxu0 %v1528
    %2932 = vmatpush1.msra.mxu0 %v1527
    %2933 = vmatprep.subr.mxu0 %v1536
    %2934 = vmatpush1.msra.mxu0 %v1535
    %2935 = vmatprep.subr.mxu0 %v1544
    %2936 = vmatpush1.msra.mxu0 %v1543
    %2937 = vmatprep.subr.mxu0 %v1552
    %2938 = vmatpush1.msra.mxu0 %v1551
    %2939 = vmatprep.subr.mxu0 %v1560
    %2940 = vmatpush1.msra.mxu0 %v1559
    %2941 = vmatprep.subr.mxu0 %v1568
    %2942 = vmatpush1.msra.mxu0 %v1567
    %2943 = vmatprep.subr.mxu0 %v1576
    %2944 = vmatpush1.msra.mxu0 %v1575
    %2945 = vmatprep.subr.mxu0 %v1584
    %2946 = vmatpush1.msra.mxu0 %v1583
    %2947 = vmatprep.subr.mxu0 %v1592
    %2948 = vmatpush1.msra.mxu0 %v1591
    %2949 = vmatprep.subr.mxu0 %v1600
    %2950 = vmatpush1.msra.mxu0 %v1599
    %2951 = vmatprep.subr.mxu0 %v1608
    %2952 = vmatpush1.msra.mxu0 %v1607
    %2953 = vmatprep.subr.mxu0 %v1616
    %2954 = vmatpush1.msra.mxu0 %v1615
    %2955 = vmatprep.subr.mxu0 %v1624
    %2956 = vmatpush1.msra.mxu0 %v1623
    %2957 = vmatprep.subr.mxu0 %v1632
    %2958 = vmatpush1.msra.mxu0 %v1631
    %2959 = vmatprep.subr.mxu0 %v1640
    %2960 = vmatpush1.msra.mxu0 %v1639
    %2961 = vmatprep.subr.mxu0 %v1648
    %2962 = vmatpush1.msra.mxu0 %v1647
    %2963 = vmatprep.mubr.f32.mxu0 %v878
    %2964 = vmatmul.mubr.f32.gmra.mrb[0].mxu0 %v877
    %v2965 = vpop.f32.mrb[0].mxu0
    %v2966 = vadd.f32 %v2895, %v2965
    %v2967 = vpop.f32.mrb[0].mxu0
    %v2968 = vadd.f32 %v2897, %v2967
    %2969 = vdwg.mxu0
    %2970 = vmatprep.subr.mxu0 %v1656
    %2971 = vmatpush1.msra.mxu0 %v1655
    %2972 = vmatprep.subr.mxu0 %v1664
    %2973 = vmatpush1.msra.mxu0 %v1663
    %2974 = vmatprep.subr.mxu0 %v1672
    %2975 = vmatpush1.msra.mxu0 %v1671
    %2976 = vmatprep.subr.mxu0 %v1680
    %2977 = vmatpush1.msra.mxu0 %v1679
    %2978 = vmatprep.subr.mxu0 %v1688
    %2979 = vmatpush1.msra.mxu0 %v1687
    %2980 = vmatprep.subr.mxu0 %v1696
    %2981 = vmatpush1.msra.mxu0 %v1695
    %2982 = vmatprep.subr.mxu0 %v1704
    %2983 = vmatpush1.msra.mxu0 %v1703
    %2984 = vmatprep.subr.mxu0 %v1712
    %2985 = vmatpush1.msra.mxu0 %v1711
    %2986 = vmatprep.subr.mxu0 %v1720
    %2987 = vmatpush1.msra.mxu0 %v1719
    %2988 = vmatprep.subr.mxu0 %v1728
    %2989 = vmatpush1.msra.mxu0 %v1727
    %2990 = vmatprep.subr.mxu0 %v1736
    %2991 = vmatpush1.msra.mxu0 %v1735
    %2992 = vmatprep.subr.mxu0 %v1744
    %2993 = vmatpush1.msra.mxu0 %v1743
    %2994 = vmatprep.subr.mxu0 %v1752
    %2995 = vmatpush1.msra.mxu0 %v1751
    %2996 = vmatprep.subr.mxu0 %v1760
    %2997 = vmatpush1.msra.mxu0 %v1759
    %2998 = vmatprep.subr.mxu0 %v1768
    %2999 = vmatpush1.msra.mxu0 %v1767
    %3000 = vmatprep.subr.mxu0 %v1776
    %3001 = vmatpush1.msra.mxu0 %v1775
    %3002 = vmatprep.subr.mxu0 %v1784
    %3003 = vmatpush1.msra.mxu0 %v1783
    %3004 = vmatprep.subr.mxu0 %v1792
    %3005 = vmatpush1.msra.mxu0 %v1791
    %3006 = vmatprep.subr.mxu0 %v1800
    %3007 = vmatpush1.msra.mxu0 %v1799
    %3008 = vmatprep.subr.mxu0 %v1808
    %3009 = vmatpush1.msra.mxu0 %v1807
    %3010 = vmatprep.subr.mxu0 %v1816
    %3011 = vmatpush1.msra.mxu0 %v1815
    %3012 = vmatprep.subr.mxu0 %v1824
    %3013 = vmatpush1.msra.mxu0 %v1823
    %3014 = vmatprep.subr.mxu0 %v1832
    %3015 = vmatpush1.msra.mxu0 %v1831
    %3016 = vmatprep.subr.mxu0 %v1840
    %3017 = vmatpush1.msra.mxu0 %v1839
    %3018 = vmatprep.subr.mxu0 %v1848
    %3019 = vmatpush1.msra.mxu0 %v1847
    %3020 = vmatprep.subr.mxu0 %v1856
    %3021 = vmatpush1.msra.mxu0 %v1855
    %3022 = vmatprep.subr.mxu0 %v1864
    %3023 = vmatpush1.msra.mxu0 %v1863
    %3024 = vmatprep.subr.mxu0 %v1872
    %3025 = vmatpush1.msra.mxu0 %v1871
    %3026 = vmatprep.subr.mxu0 %v1880
    %3027 = vmatpush1.msra.mxu0 %v1879
    %3028 = vmatprep.subr.mxu0 %v1888
    %3029 = vmatpush1.msra.mxu0 %v1887
    %3030 = vmatprep.subr.mxu0 %v1896
    %3031 = vmatpush1.msra.mxu0 %v1895
    %3032 = vmatprep.subr.mxu0 %v1904
    %3033 = vmatpush1.msra.mxu0 %v1903
    %3034 = vmatprep.mubr.f32.mxu0 %v880
    %3035 = vmatmul.mubr.f32.gmra.mrb[0].mxu0 %v879
    %v3036 = vpop.f32.mrb[0].mxu0
    %v3037 = vadd.f32 %v2966, %v3036
    %v3038 = vpop.f32.mrb[0].mxu0
    %v3039 = vadd.f32 %v2968, %v3038
    %3040 = vdwg.mxu0
    %v3041 = vmul.f32 %v873, %v2185
    %v3042 = vmul.f32 %v874, %v2187
    %v3043 = vmul.f32 %v875, %v2469
    %v3044 = vmul.f32 %v876, %v2471
    %v3045 = vmul.f32 %v877, %v2753
    %v3046 = vmul.f32 %v878, %v2755
    %v3047 = vmul.f32 %v879, %v3037
    %v3048 = vmul.f32 %v880, %v3039
    %v3049 = vadd.f32 %v3041, %v3042
    %v3050 = vadd.f32 %v3049, %v3043
    %v3051 = vadd.f32 %v3050, %v3044
    %v3052 = vadd.f32 %v3051, %v3045
    %v3053 = vadd.f32 %v3052, %v3046
    %v3054 = vadd.f32 %v3053, %v3047
    %v3055 = vadd.f32 %v3054, %v3048
    %3056 = vadd.xlane.f32.xlu0 %v3055
    %v3057 = vpop.xlane.xlu0 %3056
    %v3058 = vsub.f32 0.0, %v3057
    %v3059 = vmul.f32 %v3058, 1.442695
    %v3060 = vpow.pop %v3059
    %v3061 = vadd.f32 %v3060, 1.0
    %v3062 = vrcp.pop %v3061
    %v3063 = vmul.f32 1.0, %v3062
    %vm3064 = vcmask 7168
    %3065 = vst.msk [vmem:[%s2] sm:$0xff] %vm3064, %v3063
    // Predicated region
    $region18: #{tpu_custom_call.1} parent=1 // pred_check
      _
    $region19: #{tpu_custom_call.1} parent=1 // pred_check_branch
      %3067 = sbr.rel (0) target = $region21
    $region20: #{tpu_custom_call.1} parent=1 // pred_region
      _
    $region21: #{tpu_custom_call.1} parent=1 // pred_fallthru
      _
    // Predicated region
    $region22: #{tpu_custom_call.1} parent=1 // pred_check
      _
    $region23: #{tpu_custom_call.1} parent=1 // pred_check_branch
      %3069 = sbr.rel (0) target = $region25
    $region24: #{tpu_custom_call.1} parent=1 // pred_region
      _
    $region25: #{tpu_custom_call.1} parent=1 // pred_fallthru
      _
    %3070 = vsyncpa [#allocation3], 1
    %3071 = vsyncpa [#allocation5], 1

</llo_original>
